<compile_context>
chip_gen: v7x
topology: tpu7x:2x2x1
jax: 0.10.0
libtpu: 0.0.40
codegen_flags: <defaults>
</compile_context>

<pallas_src>
import jax
import jax.numpy as jnp
from jax.experimental import pallas as pl
from jax.experimental.pallas import tpu as pltpu

IN_FEATURES = 7936           # already a multiple of 128
OUT_FEATURES = 180
OUT_PADDED = 256             # 180 lane-padded to the next multiple of 128


def _round_up(x, m):
    return (x + m - 1) // m * m


def fc1_kernel(x_ref, w_ref, b_ref, o_ref):
    # x_ref: (TILE_B, 7936) f32, w_ref: (7936, 256) bf16, b_ref: (1, 256) f32
    # Cast x -> bf16 in-kernel (VPU work hidden under the x DMA), MXU accumulates f32.
    x_bf16 = x_ref[...].astype(jnp.bfloat16)
    acc = jnp.dot(x_bf16, w_ref[...], preferred_element_type=jnp.float32)
    o_ref[...] = (acc + b_ref[...]).astype(o_ref.dtype)


def prepare_fc1_params(weight, bias):
    """One-time prep of the PyTorch-layout parameters.

    weight: [180, 7936], bias: [180]  ->  (w_bf16 [7936, 256], b_f32 [1, 256])
    Call once and reuse the result across fc1_forward calls.
    """
    w_bf16 = jnp.zeros((IN_FEATURES, OUT_PADDED), jnp.bfloat16)
    w_bf16 = w_bf16.at[:, :OUT_FEATURES].set(weight.T.astype(jnp.bfloat16))
    b_f32 = jnp.zeros((1, OUT_PADDED), jnp.float32)
    b_f32 = b_f32.at[:, :OUT_FEATURES].set(bias.astype(jnp.float32)[None, :])
    return w_bf16, b_f32


def _choose_tiling(B, tile_b):
    """Pick (b_pad, tile_b) s.t. b_pad % tile_b == 0, tiles are multiples of 8,
    and the grid has >= 2 steps when possible (v7x megacore)."""
    b_pad = _round_up(max(B, 16), 16)
    tile_b = min(tile_b, b_pad)
    if b_pad // tile_b < 2 and b_pad >= 16:
        # Split into (at least) two tiles so both v7x TensorCores get work.
        tile_b = max(8, _round_up((b_pad + 1) // 2, 8))
    b_pad = _round_up(b_pad, tile_b)
    return b_pad, tile_b


def fc1_forward(x, w_bf16, b_f32, *, tile_b=512):
    """x: [B, 7936] f32; (w_bf16, b_f32) from prepare_fc1_params."""
    B = x.shape[0]
    assert x.shape[1] == IN_FEATURES, x.shape
    assert w_bf16.shape == (IN_FEATURES, OUT_PADDED), w_bf16.shape
    assert b_f32.shape == (1, OUT_PADDED), b_f32.shape

    b_pad, tile_b = _choose_tiling(B, tile_b)
    grid = (b_pad // tile_b,)

    x_in = x.astype(jnp.float32)
    if b_pad != B:
        # Pad only the batch remainder; no full-array copy in the common case.
        x_in = jnp.pad(x_in, ((0, b_pad - B), (0, 0)))

    # VMEM budget for this tiling: x (f32, double-buffered), W (bf16, single
    # buffer), bias, out (f32, double-buffered) + headroom.
    vmem_bytes = (2 * tile_b * IN_FEATURES * 4
                  + IN_FEATURES * OUT_PADDED * 2
                  + OUT_PADDED * 4
                  + 2 * tile_b * OUT_PADDED * 4)
    vmem_limit = min(100 * 1024 * 1024,
                     _round_up(vmem_bytes + (8 << 20), 1 << 20))

    flops = 2 * b_pad * IN_FEATURES * OUT_PADDED
    bytes_accessed = (x_in.size * 4 + w_bf16.size * 2 + b_f32.size * 4
                      + b_pad * OUT_PADDED * 4)

    out_padded = pl.pallas_call(
        fc1_kernel,
        out_shape=jax.ShapeDtypeStruct((b_pad, OUT_PADDED), jnp.float32),
        grid_spec=pltpu.PrefetchScalarGridSpec(
            num_scalar_prefetch=0,
            grid=grid,
            in_specs=[
                pl.BlockSpec((tile_b, IN_FEATURES), lambda i: (i, 0)),
                # Resident operands: constant index_map + single buffer.
                pl.BlockSpec((IN_FEATURES, OUT_PADDED), lambda i: (0, 0),
                             pipeline_mode=pl.Buffered(1)),
                pl.BlockSpec((1, OUT_PADDED), lambda i: (0, 0),
                             pipeline_mode=pl.Buffered(1)),
            ],
            out_specs=pl.BlockSpec((tile_b, OUT_PADDED), lambda i: (i, 0)),
        ),
        compiler_params=pltpu.CompilerParams(
            dimension_semantics=("parallel",),
            vmem_limit_bytes=vmem_limit,
        ),
        cost_estimate=pl.CostEstimate(
            flops=flops, transcendentals=0, bytes_accessed=bytes_accessed),
    )(x_in, w_bf16, b_f32)

    # Slice away batch padding and the lane padding of the output features.
    # TODO(synk): if the downstream consumer accepts bf16 / the padded block,
    # return out_padded directly and skip this slice.
    return out_padded[:B, :OUT_FEATURES]


if __name__ == "__main__":
    key = jax.random.PRNGKey(0)
    kx, kw, kb = jax.random.split(key, 3)

    B = 8
    x = jax.random.normal(kx, (B, IN_FEATURES), jnp.float32)

    # PyTorch nn.Linear default init: uniform(-1/sqrt(fan_in), +1/sqrt(fan_in)).
    bound = 1.0 / jnp.sqrt(float(IN_FEATURES))
    weight = jax.random.uniform(kw, (OUT_FEATURES, IN_FEATURES), jnp.float32,
                                -bound, bound)
    bias = jax.random.uniform(kb, (OUT_FEATURES,), jnp.float32, -bound, bound)

    # One-time parameter prep (reused across calls).
    w_bf16, b_f32 = prepare_fc1_params(weight, bias)

    out = fc1_forward(x, w_bf16, b_f32)
    out = jax.block_until_ready(out)
    assert out.shape == (B, OUT_FEATURES), out.shape

    # Tight check vs a reference using the same bf16 operand precision
    # (f32 accumulation), plus a looser check vs the pure-f32 reference
    # (bf16 streaming introduces small, expected drift).
    ref_bf16 = (jnp.dot(x.astype(jnp.bfloat16).astype(jnp.float32),
                        weight.T.astype(jnp.bfloat16).astype(jnp.float32))
                + bias[None, :])
    ref_f32 = x @ weight.T + bias[None, :]

    assert jnp.allclose(out, ref_bf16, atol=2e-3, rtol=2e-3), \
        float(jnp.max(jnp.abs(out - ref_bf16)))
    assert jnp.allclose(out, ref_f32, atol=5e-2, rtol=5e-2), \
        float(jnp.max(jnp.abs(out - ref_f32)))

    print("KERNEL_OK")
</pallas_src>

<mosaic_0001>
module attributes {stable_mosaic.version = 11 : i64} {
  func.func @fc1_kernel(%arg0: i32, %arg1: memref<8x7936xf32, #tpu.memory_space<vmem>>, %arg2: memref<7936x256xbf16, #tpu.memory_space<vmem>>, %arg3: memref<1x256xf32, #tpu.memory_space<vmem>>, %arg4: memref<8x256xf32, #tpu.memory_space<vmem>>) attributes {dimension_semantics = [#tpu.dimension_semantics<parallel>], iteration_bounds = array<i64: 2>, scalar_prefetch = 0 : i64, scratch_operands = 0 : i64, tpu.core_type = #tpu.core_type<tc>, window_params = [{transform_indices = @transform_0, window_bounds = array<i64: 8, 7936>}, {pipeline_mode = #tpu.pipeline_mode<synchronous>, transform_indices = @transform_1, window_bounds = array<i64: 7936, 256>}, {pipeline_mode = #tpu.pipeline_mode<synchronous>, transform_indices = @transform_2, window_bounds = array<i64: 1, 256>}, {transform_indices = @transform_3, window_bounds = array<i64: 8, 256>}]} {
    %c0 = arith.constant 0 : index
    %c0_0 = arith.constant 0 : index
    %0 = vector.load %arg1[%c0, %c0_0] : memref<8x7936xf32, #tpu.memory_space<vmem>>, vector<8x7936xf32>
    %1 = arith.truncf %0 : vector<8x7936xf32> to vector<8x7936xbf16>
    %c0_1 = arith.constant 0 : index
    %c0_2 = arith.constant 0 : index
    %2 = vector.load %arg2[%c0_1, %c0_2] : memref<7936x256xbf16, #tpu.memory_space<vmem>>, vector<7936x256xbf16>
    %cst = arith.constant dense<0.000000e+00> : vector<8x256xf32>
    %3 = tpu.matmul %1, %2, %cst {dimension_numbers = #tpu.dot_dimension_numbers<[1], [0], [0], [1], [0, 0, 1, 1], [], []>} : vector<8x7936xbf16>, vector<7936x256xbf16>, vector<8x256xf32> -> vector<8x256xf32>
    %c0_3 = arith.constant 0 : index
    %c0_4 = arith.constant 0 : index
    %4 = vector.load %arg3[%c0_3, %c0_4] : memref<1x256xf32, #tpu.memory_space<vmem>>, vector<1x256xf32>
    %5 = vector.broadcast %4 : vector<1x256xf32> to vector<8x256xf32>
    %6 = arith.addf %3, %5 : vector<8x256xf32>
    %c0_5 = arith.constant 0 : index
    %c0_6 = arith.constant 0 : index
    %7 = vector.load %arg4[%c0_5, %c0_6] : memref<8x256xf32, #tpu.memory_space<vmem>>, vector<8x256xf32>
    tpu.vector_store %arg4[%c0_5, %c0_6], %6 {strides = array<i32>} : memref<8x256xf32, #tpu.memory_space<vmem>>, vector<8x256xf32>,
    return
  }
  func.func @transform_0(%arg0: i32) -> (i32, i32) {
    %c0_i32 = arith.constant 0 : i32
    %c0_i32_0 = arith.constant 0 : i32
    return %arg0, %c0_i32 : i32, i32
  }
  func.func @transform_1(%arg0: i32) -> (i32, i32) {
    %c0_i32 = arith.constant 0 : i32
    %c0_i32_0 = arith.constant 0 : i32
    %c0_i32_1 = arith.constant 0 : i32
    return %c0_i32, %c0_i32_0 : i32, i32
  }
  func.func @transform_2(%arg0: i32) -> (i32, i32) {
    %c0_i32 = arith.constant 0 : i32
    %c0_i32_0 = arith.constant 0 : i32
    %c0_i32_1 = arith.constant 0 : i32
    return %c0_i32, %c0_i32_0 : i32, i32
  }
  func.func @transform_3(%arg0: i32) -> (i32, i32) {
    %c0_i32 = arith.constant 0 : i32
    %c0_i32_0 = arith.constant 0 : i32
    return %arg0, %c0_i32 : i32, i32
  }
}

</mosaic_0001>

<llo_original>
// kernel: tpu_custom_call.1
$region0: #{tpu_custom_call.1}
  #allocation0 [shape = 'u32[]', space=smem, size = 0x4, offset = 0x4, fixed_abs, tag = 'smem constant byte address 0x4 - core index']
  #allocation1 [shape = 'u32[144,128]{1,0:T(1,128)}', space=vmem, size = 0x12000, scoped, tag = 'internal scratch']
  %s0 = inlined_call_operand.hbm [shape: f32[16,7936], index: 0, kind: input, shape index: {}]
  %s1 = inlined_call_operand.hbm [shape: bf16[7936,256], index: 1, kind: input, shape index: {}]
  %s2 = inlined_call_operand.hbm [shape: f32[1,256], index: 2, kind: input, shape index: {}]
  %s3 = inlined_call_operand.hbm [shape: f32[16,256], index: 3, kind: output, shape index: {}]
  %s4 = sld [smem:[#allocation0]]
  $region57: #{tpu_custom_call.1} parent=0
    _
  %s6 = ssub.s32 1, %s4
  %s7 = scalar_select 0, %s6, %s4
  $region1: #{tpu_custom_call.1} parent=0
    #allocation2 [shape = 'u8[507904]{0}', space=vmem, size = 0x7c000, scoped, tag = 'input window, operand 0']
    #allocation3 [shape = 's32[2]{0}', space=sflag, size = 0x8, scoped, tag = 'scoped memory for tpu_custom_call.1']
    #allocation4 [shape = 's32[2]{0}', space=sflag, size = 0x8, scoped, tag = 'scoped memory for tpu_custom_call.1']
    #allocation5 [shape = 'u8[4063232]{0}', space=vmem, size = 0x3e0000, scoped, tag = 'input window, operand 1, single buffered']
    #allocation6 [shape = 's32[1]{0}', space=sflag, size = 0x4, scoped, tag = 'scoped memory for tpu_custom_call.1']
    #allocation7 [shape = 'u8[1024]{0}', space=vmem, size = 0x400, scoped, tag = 'input window, operand 2, single buffered']
    #allocation8 [shape = 'u8[16384]{0}', space=vmem, size = 0x4000, scoped, tag = 'output window, operand 0']
    %8 = vsyncpa [#allocation3], 0
    %s9 = scalar_lea.sflag [#allocation3], 1
    %10 = vsyncpa %s9, 0
    %11 = vsyncpa [#allocation6], 0
    %12 = vsyncpa [#allocation4], 0
    %s13 = scalar_lea.sflag [#allocation4], 1
    %14 = vsyncpa %s13, 0
    loop: start=0, step=1, limit=4
    $region2: #{tpu_custom_call.1} parent=1 // loop_pre_header
      _
    $region3: #{tpu_custom_call.1} parent=1 // loop_header
      %s16 = sphi 0, %s20
      %p17 = scmp.ge.s32.totalorder %s16, 4
      %s26 = sphi 0, %s28
      %s29 = sphi 0, %s26
      %s30 = sphi 0, %s29
      %s46 = sphi 0, %s30
      %s50 = sphi 0, %s50
      %s52 = sphi 0, %s50
      %s53 = sphi 0, %s52
      %s67 = sphi 0, %s53
      %s71 = sphi 0, %s71
      %s73 = sphi 0, %s71
      %s74 = sphi 0, %s73
      %s88 = sphi 0, %s74
      %s94 = sphi 0, %s96
      %s97 = sphi 0, %s94
      %s98 = sphi 0, %s97
      %s114 = sphi 0, %s98
    $region4: #{tpu_custom_call.1} parent=1 // loop_header_branch
      %19 = sbr.rel (%p17) target = $region8
    $region5: #{tpu_custom_call.1} parent=1 // loop_body
      %s21 = ssub.s32 %s16, 1
      %s22 = ssub.s32 %s16, 2
      %s23 = sadd.s32 %s16, 1
      %s24 = ssub.s32 %s16, %s23
      %p25 = scmp.eq.s32.totalorder %s24, 0
      %s27 = sadd.s32 %s26, 1
      %s28 = scalar_select %p25, %s26, %s27
      %p31 = pneg %p25
      %p32 = scmp.eq.s32.totalorder %s16, 1
      %p33 = por %p31, %p32
      %p34 = scmp.ne.s32.totalorder %s26, %s29
      %p35 = scmp.eq.s32.totalorder %s16, 0
      %p36 = por %p34, %p35
      %p37 = scmp.ne.s32.totalorder %s26, %s29
      %p38 = scmp.eq.s32.totalorder %s21, 1
      %p39 = por %p37, %p38
      %p40 = scmp.ne.s32.totalorder %s29, %s30
      %p41 = scmp.eq.s32.totalorder %s21, 0
      %p42 = por %p40, %p41
      %p43 = scmp.ne.s32.totalorder %s29, %s30
      %p44 = scmp.eq.s32.totalorder %s22, 1
      %p45 = por %p43, %p44
      %p47 = scmp.ne.s32.totalorder %s30, %s46
      %p48 = scmp.eq.s32.totalorder %s22, 0
      %p49 = por %p47, %p48
      %s51 = sadd.s32 %s50, 1
      %p54 = scmp.eq.s32.totalorder %s16, 1
      %p55 = scmp.ne.s32.totalorder %s50, %s52
      %p56 = scmp.eq.s32.totalorder %s16, 0
      %p57 = por %p55, %p56
      %p58 = scmp.ne.s32.totalorder %s50, %s52
      %p59 = scmp.eq.s32.totalorder %s21, 1
      %p60 = por %p58, %p59
      %p61 = scmp.ne.s32.totalorder %s52, %s53
      %p62 = scmp.eq.s32.totalorder %s21, 0
      %p63 = por %p61, %p62
      %p64 = scmp.ne.s32.totalorder %s52, %s53
      %p65 = scmp.eq.s32.totalorder %s22, 1
      %p66 = por %p64, %p65
      %p68 = scmp.ne.s32.totalorder %s53, %s67
      %p69 = scmp.eq.s32.totalorder %s22, 0
      %p70 = por %p68, %p69
      %s72 = sadd.s32 %s71, 1
      %p75 = scmp.eq.s32.totalorder %s16, 1
      %p76 = scmp.ne.s32.totalorder %s71, %s73
      %p77 = scmp.eq.s32.totalorder %s16, 0
      %p78 = por %p76, %p77
      %p79 = scmp.ne.s32.totalorder %s71, %s73
      %p80 = scmp.eq.s32.totalorder %s21, 1
      %p81 = por %p79, %p80
      %p82 = scmp.ne.s32.totalorder %s73, %s74
      %p83 = scmp.eq.s32.totalorder %s21, 0
      %p84 = por %p82, %p83
      %p85 = scmp.ne.s32.totalorder %s73, %s74
      %p86 = scmp.eq.s32.totalorder %s22, 1
      %p87 = por %p85, %p86
      %p89 = scmp.ne.s32.totalorder %s74, %s88
      %p90 = scmp.eq.s32.totalorder %s22, 0
      %p91 = por %p89, %p90
      %s92 = ssub.s32 %s16, %s23
      %p93 = scmp.eq.s32.totalorder %s92, 0
      %s95 = sadd.s32 %s94, 1
      %s96 = scalar_select %p93, %s94, %s95
      %p99 = pneg %p93
      %p100 = scmp.eq.s32.totalorder %s16, 1
      %p101 = por %p99, %p100
      %p102 = scmp.ne.s32.totalorder %s94, %s97
      %p103 = scmp.eq.s32.totalorder %s16, 0
      %p104 = por %p102, %p103
      %p105 = scmp.ne.s32.totalorder %s94, %s97
      %p106 = scmp.eq.s32.totalorder %s21, 1
      %p107 = por %p105, %p106
      %p108 = scmp.ne.s32.totalorder %s97, %s98
      %p109 = scmp.eq.s32.totalorder %s21, 0
      %p110 = por %p108, %p109
      %p111 = scmp.ne.s32.totalorder %s97, %s98
      %p112 = scmp.eq.s32.totalorder %s22, 1
      %p113 = por %p111, %p112
      %p115 = scmp.ne.s32.totalorder %s98, %s114
      %p116 = scmp.eq.s32.totalorder %s22, 0
      %p117 = por %p115, %p116
      %p118 = scmp.le.s32.totalorder 1, %s16
      %p119 = scmp.lt.s32.totalorder %s16, 3
      %p120 = pnand %p118, %p119
      %p121 = pneg %p120
      // Predicated region
      $region9: #{tpu_custom_call.1} parent=5 // pred_check
        _
      $region10: #{tpu_custom_call.1} parent=5 // pred_check_branch
        %123 = sbr.rel (%p120) target = $region12
      $region11: #{tpu_custom_call.1} parent=5 // pred_region
        %s124 = ssub.s32 %s16, 1
        // Predicated region
        $region13: #{tpu_custom_call.1} parent=11 // pred_check
          %p125 = pneg %p63
        $region14: #{tpu_custom_call.1} parent=11 // pred_check_branch
          %127 = sbr.rel (%p125) target = $region16
        $region15: #{tpu_custom_call.1} parent=11 // pred_region
          %s129 = ssub.s32 126976, 126976
          %130 = vsyncadd [#allocation6], %s129
          %s131 = sshll.u32 [#allocation5], 4
          %s132 = int_to_ptr.vmem [resolvable:$true] %s131
          %137 = dma.hbm_to_vmem [thread:$0]  %s1, 126976, %s132, [#allocation6], 128, 128, 8
        $region16: #{tpu_custom_call.1} parent=11 // pred_fallthru
          _
        // Predicated region
        $region17: #{tpu_custom_call.1} parent=11 // pred_check
          %p138 = pneg %p84
        $region18: #{tpu_custom_call.1} parent=11 // pred_check_branch
          %140 = sbr.rel (%p138) target = $region20
        $region19: #{tpu_custom_call.1} parent=11 // pred_region
          %s142 = ssub.s32 32, 32
          %143 = vsyncadd [#allocation6], %s142
          %s145 = sshll.u32 [#allocation7], 4
          %s146 = int_to_ptr.vmem [resolvable:$true] %s145
          %148 = dma.hbm_to_vmem [thread:$0]  %s2, 32, %s146, [#allocation6]
        $region20: #{tpu_custom_call.1} parent=11 // pred_fallthru
          _
      $region12: #{tpu_custom_call.1} parent=5 // pred_fallthru
        _
      %p149 = scmp.lt.s32.totalorder %s16, 2
      // Predicated region
      $region21: #{tpu_custom_call.1} parent=5 // pred_check
        %p150 = pneg %p149
      $region22: #{tpu_custom_call.1} parent=5 // pred_check_branch
        %152 = sbr.rel (%p150) target = $region24
      $region23: #{tpu_custom_call.1} parent=5 // pred_region
        // Predicated region
        $region25: #{tpu_custom_call.1} parent=23 // pred_check
          %p153 = pneg %p36
        $region26: #{tpu_custom_call.1} parent=23 // pred_check_branch
          %155 = sbr.rel (%p153) target = $region28
        $region27: #{tpu_custom_call.1} parent=23 // pred_region
          %s156 = sand.u32 %s26, 1
          %s157 = scalar_lea.sflag [#allocation3], %s156
          %s158 = sand.u32 %s26, 1
          %s159 = smul.addr %s158, 496
          %s160 = scalar_lea.vmem [#allocation2], %s159
          %s162 = ssub.s32 7936, 7936
          %163 = vsyncadd %s157, %s162
          %s164 = smul.addr %s16, 62
          %s165 = smul.addr %s164, 128
          %s166 = scalar_lea.hbm %s0, %s165
          %s168 = sshll.u32 %s160, 4
          %s169 = int_to_ptr.vmem [resolvable:$true] %s168
          %171 = dma.hbm_to_vmem [thread:$0]  %s166, 7936, %s169, %s157
        $region28: #{tpu_custom_call.1} parent=23 // pred_fallthru
          _
      $region24: #{tpu_custom_call.1} parent=5 // pred_fallthru
        _
      %p172 = scmp.le.s32.totalorder 1, %s16
      %p173 = scmp.lt.s32.totalorder %s16, 3
      %p174 = pnand %p172, %p173
      %p175 = pneg %p174
      // Predicated region
      $region29: #{tpu_custom_call.1} parent=5 // pred_check
        _
      $region30: #{tpu_custom_call.1} parent=5 // pred_check_branch
        %177 = sbr.rel (%p174) target = $region32
      $region31: #{tpu_custom_call.1} parent=5 // pred_region
        %s178 = ssub.s32 %s16, 1
        %s179 = sand.u32 %s29, 1
        %s180 = scalar_lea.sflag [#allocation3], %s179
        %s181 = sand.u32 %s29, 1
        %s182 = smul.addr %s181, 496
        %s183 = scalar_lea.vmem [#allocation2], %s182
        // Predicated region
        $region33: #{tpu_custom_call.1} parent=31 // pred_check
          %p184 = pneg %p42
        $region34: #{tpu_custom_call.1} parent=31 // pred_check_branch
          %186 = sbr.rel (%p184) target = $region36
        $region35: #{tpu_custom_call.1} parent=31 // pred_region
          %187 = dma.done %s180, 7936
        $region36: #{tpu_custom_call.1} parent=31 // pred_fallthru
          _
        // Predicated region
        $region37: #{tpu_custom_call.1} parent=31 // pred_check
          %p188 = pneg %p63
        $region38: #{tpu_custom_call.1} parent=31 // pred_check_branch
          %190 = sbr.rel (%p188) target = $region40
        $region39: #{tpu_custom_call.1} parent=31 // pred_region
          %191 = dma.done [#allocation6], 126976
        $region40: #{tpu_custom_call.1} parent=31 // pred_fallthru
          _
        // Predicated region
        $region41: #{tpu_custom_call.1} parent=31 // pred_check
          %p192 = pneg %p84
        $region42: #{tpu_custom_call.1} parent=31 // pred_check_branch
          %194 = sbr.rel (%p192) target = $region44
        $region43: #{tpu_custom_call.1} parent=31 // pred_region
          %195 = dma.done [#allocation6], 32
        $region44: #{tpu_custom_call.1} parent=31 // pred_fallthru
          _
        %s196 = sand.u32 %s29, 1
        %s197 = scalar_lea.sflag [#allocation3], %s196
        %s198 = sand.u32 %s29, 1
        %s199 = smul.addr %s198, 496
        %s200 = scalar_lea.vmem [#allocation2], %s199
        %p201 = pneg %p42
        %p202 = pneg %p39
        %p203 = pneg %p63
        %p204 = pneg %p60
        %p205 = pneg %p84
        %p206 = pneg %p81
        %p207 = pneg %p110
        %p208 = pneg %p107
        %s209 = sand.u32 %s97, 1
        %s210 = scalar_lea.sflag [#allocation4], %s209
        %s211 = sand.u32 %s97, 1
        %s212 = smul.addr %s211, 16
        %s213 = scalar_lea.vmem [#allocation8], %s212
        %v214 = vld [vmem:[%s183] sm:$0xff]
        %v215 = vld [vmem:[%s183 + $0x8] sm:$0xff]
        %v216 = vld [vmem:[%s183 + $0x10] sm:$0xff]
        %v217 = vld [vmem:[%s183 + $0x18] sm:$0xff]
        %v218 = vld [vmem:[%s183 + $0x20] sm:$0xff]
        %v219 = vld [vmem:[%s183 + $0x28] sm:$0xff]
        %v220 = vld [vmem:[%s183 + $0x30] sm:$0xff]
        %v221 = vld [vmem:[%s183 + $0x38] sm:$0xff]
        %v222 = vld [vmem:[%s183 + $0x40] sm:$0xff]
        %v223 = vld [vmem:[%s183 + $0x48] sm:$0xff]
        %v224 = vld [vmem:[%s183 + $0x50] sm:$0xff]
        %v225 = vld [vmem:[%s183 + $0x58] sm:$0xff]
        %v226 = vld [vmem:[%s183 + $0x60] sm:$0xff]
        %v227 = vld [vmem:[%s183 + $0x68] sm:$0xff]
        %v228 = vld [vmem:[%s183 + $0x70] sm:$0xff]
        %v229 = vld [vmem:[%s183 + $0x78] sm:$0xff]
        %v230 = vld [vmem:[%s183 + $0x80] sm:$0xff]
        %v231 = vld [vmem:[%s183 + $0x88] sm:$0xff]
        %v232 = vld [vmem:[%s183 + $0x90] sm:$0xff]
        %v233 = vld [vmem:[%s183 + $0x98] sm:$0xff]
        %v234 = vld [vmem:[%s183 + $0xa0] sm:$0xff]
        %v235 = vld [vmem:[%s183 + $0xa8] sm:$0xff]
        %v236 = vld [vmem:[%s183 + $0xb0] sm:$0xff]
        %v237 = vld [vmem:[%s183 + $0xb8] sm:$0xff]
        %v238 = vld [vmem:[%s183 + $0xc0] sm:$0xff]
        %v239 = vld [vmem:[%s183 + $0xc8] sm:$0xff]
        %v240 = vld [vmem:[%s183 + $0xd0] sm:$0xff]
        %v241 = vld [vmem:[%s183 + $0xd8] sm:$0xff]
        %v242 = vld [vmem:[%s183 + $0xe0] sm:$0xff]
        %v243 = vld [vmem:[%s183 + $0xe8] sm:$0xff]
        %v244 = vld [vmem:[%s183 + $0xf0] sm:$0xff]
        %v245 = vld [vmem:[%s183 + $0xf8] sm:$0xff]
        %v246 = vld [vmem:[%s183 + $0x100] sm:$0xff]
        %v247 = vld [vmem:[%s183 + $0x108] sm:$0xff]
        %v248 = vld [vmem:[%s183 + $0x110] sm:$0xff]
        %v249 = vld [vmem:[%s183 + $0x118] sm:$0xff]
        %v250 = vld [vmem:[%s183 + $0x120] sm:$0xff]
        %v251 = vld [vmem:[%s183 + $0x128] sm:$0xff]
        %v252 = vld [vmem:[%s183 + $0x130] sm:$0xff]
        %v253 = vld [vmem:[%s183 + $0x138] sm:$0xff]
        %v254 = vld [vmem:[%s183 + $0x140] sm:$0xff]
        %v255 = vld [vmem:[%s183 + $0x148] sm:$0xff]
        %v256 = vld [vmem:[%s183 + $0x150] sm:$0xff]
        %v257 = vld [vmem:[%s183 + $0x158] sm:$0xff]
        %v258 = vld [vmem:[%s183 + $0x160] sm:$0xff]
        %v259 = vld [vmem:[%s183 + $0x168] sm:$0xff]
        %v260 = vld [vmem:[%s183 + $0x170] sm:$0xff]
        %v261 = vld [vmem:[%s183 + $0x178] sm:$0xff]
        %v262 = vld [vmem:[%s183 + $0x180] sm:$0xff]
        %v263 = vld [vmem:[%s183 + $0x188] sm:$0xff]
        %v264 = vld [vmem:[%s183 + $0x190] sm:$0xff]
        %v265 = vld [vmem:[%s183 + $0x198] sm:$0xff]
        %v266 = vld [vmem:[%s183 + $0x1a0] sm:$0xff]
        %v267 = vld [vmem:[%s183 + $0x1a8] sm:$0xff]
        %v268 = vld [vmem:[%s183 + $0x1b0] sm:$0xff]
        %v269 = vld [vmem:[%s183 + $0x1b8] sm:$0xff]
        %v270 = vld [vmem:[%s183 + $0x1c0] sm:$0xff]
        %v271 = vld [vmem:[%s183 + $0x1c8] sm:$0xff]
        %v272 = vld [vmem:[%s183 + $0x1d0] sm:$0xff]
        %v273 = vld [vmem:[%s183 + $0x1d8] sm:$0xff]
        %v274 = vld [vmem:[%s183 + $0x1e0] sm:$0xff]
        %v275 = vld [vmem:[%s183 + $0x1e8] sm:$0xff]
        %v276 = vpack.c.bf16 %v214, %v214
        %v277 = vpack.c.bf16 %v215, %v215
        %v278 = vpack.c.bf16 %v216, %v216
        %v279 = vpack.c.bf16 %v217, %v217
        %v280 = vpack.c.bf16 %v218, %v218
        %v281 = vpack.c.bf16 %v219, %v219
        %v282 = vpack.c.bf16 %v220, %v220
        %v283 = vpack.c.bf16 %v221, %v221
        %v284 = vpack.c.bf16 %v222, %v222
        %v285 = vpack.c.bf16 %v223, %v223
        %v286 = vpack.c.bf16 %v224, %v224
        %v287 = vpack.c.bf16 %v225, %v225
        %v288 = vpack.c.bf16 %v226, %v226
        %v289 = vpack.c.bf16 %v227, %v227
        %v290 = vpack.c.bf16 %v228, %v228
        %v291 = vpack.c.bf16 %v229, %v229
        %v292 = vpack.c.bf16 %v230, %v230
        %v293 = vpack.c.bf16 %v231, %v231
        %v294 = vpack.c.bf16 %v232, %v232
        %v295 = vpack.c.bf16 %v233, %v233
        %v296 = vpack.c.bf16 %v234, %v234
        %v297 = vpack.c.bf16 %v235, %v235
        %v298 = vpack.c.bf16 %v236, %v236
        %v299 = vpack.c.bf16 %v237, %v237
        %v300 = vpack.c.bf16 %v238, %v238
        %v301 = vpack.c.bf16 %v239, %v239
        %v302 = vpack.c.bf16 %v240, %v240
        %v303 = vpack.c.bf16 %v241, %v241
        %v304 = vpack.c.bf16 %v242, %v242
        %v305 = vpack.c.bf16 %v243, %v243
        %v306 = vpack.c.bf16 %v244, %v244
        %v307 = vpack.c.bf16 %v245, %v245
        %v308 = vpack.c.bf16 %v246, %v246
        %v309 = vpack.c.bf16 %v247, %v247
        %v310 = vpack.c.bf16 %v248, %v248
        %v311 = vpack.c.bf16 %v249, %v249
        %v312 = vpack.c.bf16 %v250, %v250
        %v313 = vpack.c.bf16 %v251, %v251
        %v314 = vpack.c.bf16 %v252, %v252
        %v315 = vpack.c.bf16 %v253, %v253
        %v316 = vpack.c.bf16 %v254, %v254
        %v317 = vpack.c.bf16 %v255, %v255
        %v318 = vpack.c.bf16 %v256, %v256
        %v319 = vpack.c.bf16 %v257, %v257
        %v320 = vpack.c.bf16 %v258, %v258
        %v321 = vpack.c.bf16 %v259, %v259
        %v322 = vpack.c.bf16 %v260, %v260
        %v323 = vpack.c.bf16 %v261, %v261
        %v324 = vpack.c.bf16 %v262, %v262
        %v325 = vpack.c.bf16 %v263, %v263
        %v326 = vpack.c.bf16 %v264, %v264
        %v327 = vpack.c.bf16 %v265, %v265
        %v328 = vpack.c.bf16 %v266, %v266
        %v329 = vpack.c.bf16 %v267, %v267
        %v330 = vpack.c.bf16 %v268, %v268
        %v331 = vpack.c.bf16 %v269, %v269
        %v332 = vpack.c.bf16 %v270, %v270
        %v333 = vpack.c.bf16 %v271, %v271
        %v334 = vpack.c.bf16 %v272, %v272
        %v335 = vpack.c.bf16 %v273, %v273
        %v336 = vpack.c.bf16 %v274, %v274
        %v337 = vpack.c.bf16 %v275, %v275
        %v338 = vld [vmem:[#allocation5] sm:$0xff]
        %v339 = vld [vmem:[#allocation5 + $0x8] sm:$0xff]
        %v340 = vld [vmem:[#allocation5 + $0x10] sm:$0xff]
        %v341 = vld [vmem:[#allocation5 + $0x18] sm:$0xff]
        %v342 = vld [vmem:[#allocation5 + $0x20] sm:$0xff]
        %v343 = vld [vmem:[#allocation5 + $0x28] sm:$0xff]
        %v344 = vld [vmem:[#allocation5 + $0x30] sm:$0xff]
        %v345 = vld [vmem:[#allocation5 + $0x38] sm:$0xff]
        %v346 = vld [vmem:[#allocation5 + $0x40] sm:$0xff]
        %v347 = vld [vmem:[#allocation5 + $0x48] sm:$0xff]
        %v348 = vld [vmem:[#allocation5 + $0x50] sm:$0xff]
        %v349 = vld [vmem:[#allocation5 + $0x58] sm:$0xff]
        %v350 = vld [vmem:[#allocation5 + $0x60] sm:$0xff]
        %v351 = vld [vmem:[#allocation5 + $0x68] sm:$0xff]
        %v352 = vld [vmem:[#allocation5 + $0x70] sm:$0xff]
        %v353 = vld [vmem:[#allocation5 + $0x78] sm:$0xff]
        %v354 = vld [vmem:[#allocation5 + $0x80] sm:$0xff]
        %v355 = vld [vmem:[#allocation5 + $0x88] sm:$0xff]
        %v356 = vld [vmem:[#allocation5 + $0x90] sm:$0xff]
        %v357 = vld [vmem:[#allocation5 + $0x98] sm:$0xff]
        %v358 = vld [vmem:[#allocation5 + $0xa0] sm:$0xff]
        %v359 = vld [vmem:[#allocation5 + $0xa8] sm:$0xff]
        %v360 = vld [vmem:[#allocation5 + $0xb0] sm:$0xff]
        %v361 = vld [vmem:[#allocation5 + $0xb8] sm:$0xff]
        %v362 = vld [vmem:[#allocation5 + $0xc0] sm:$0xff]
        %v363 = vld [vmem:[#allocation5 + $0xc8] sm:$0xff]
        %v364 = vld [vmem:[#allocation5 + $0xd0] sm:$0xff]
        %v365 = vld [vmem:[#allocation5 + $0xd8] sm:$0xff]
        %v366 = vld [vmem:[#allocation5 + $0xe0] sm:$0xff]
        %v367 = vld [vmem:[#allocation5 + $0xe8] sm:$0xff]
        %v368 = vld [vmem:[#allocation5 + $0xf0] sm:$0xff]
        %v369 = vld [vmem:[#allocation5 + $0xf8] sm:$0xff]
        %v370 = vld [vmem:[#allocation5 + $0x100] sm:$0xff]
        %v371 = vld [vmem:[#allocation5 + $0x108] sm:$0xff]
        %v372 = vld [vmem:[#allocation5 + $0x110] sm:$0xff]
        %v373 = vld [vmem:[#allocation5 + $0x118] sm:$0xff]
        %v374 = vld [vmem:[#allocation5 + $0x120] sm:$0xff]
        %v375 = vld [vmem:[#allocation5 + $0x128] sm:$0xff]
        %v376 = vld [vmem:[#allocation5 + $0x130] sm:$0xff]
        %v377 = vld [vmem:[#allocation5 + $0x138] sm:$0xff]
        %v378 = vld [vmem:[#allocation5 + $0x140] sm:$0xff]
        %v379 = vld [vmem:[#allocation5 + $0x148] sm:$0xff]
        %v380 = vld [vmem:[#allocation5 + $0x150] sm:$0xff]
        %v381 = vld [vmem:[#allocation5 + $0x158] sm:$0xff]
        %v382 = vld [vmem:[#allocation5 + $0x160] sm:$0xff]
        %v383 = vld [vmem:[#allocation5 + $0x168] sm:$0xff]
        %v384 = vld [vmem:[#allocation5 + $0x170] sm:$0xff]
        %v385 = vld [vmem:[#allocation5 + $0x178] sm:$0xff]
        %v386 = vld [vmem:[#allocation5 + $0x180] sm:$0xff]
        %v387 = vld [vmem:[#allocation5 + $0x188] sm:$0xff]
        %v388 = vld [vmem:[#allocation5 + $0x190] sm:$0xff]
        %v389 = vld [vmem:[#allocation5 + $0x198] sm:$0xff]
        %v390 = vld [vmem:[#allocation5 + $0x1a0] sm:$0xff]
        %v391 = vld [vmem:[#allocation5 + $0x1a8] sm:$0xff]
        %v392 = vld [vmem:[#allocation5 + $0x1b0] sm:$0xff]
        %v393 = vld [vmem:[#allocation5 + $0x1b8] sm:$0xff]
        %v394 = vld [vmem:[#allocation5 + $0x1c0] sm:$0xff]
        %v395 = vld [vmem:[#allocation5 + $0x1c8] sm:$0xff]
        %v396 = vld [vmem:[#allocation5 + $0x1d0] sm:$0xff]
        %v397 = vld [vmem:[#allocation5 + $0x1d8] sm:$0xff]
        %v398 = vld [vmem:[#allocation5 + $0x1e0] sm:$0xff]
        %v399 = vld [vmem:[#allocation5 + $0x1e8] sm:$0xff]
        %v400 = vld [vmem:[#allocation5 + $0x1f0] sm:$0xff]
        %v401 = vld [vmem:[#allocation5 + $0x1f8] sm:$0xff]
        %v402 = vld [vmem:[#allocation5 + $0x200] sm:$0xff]
        %v403 = vld [vmem:[#allocation5 + $0x208] sm:$0xff]
        %v404 = vld [vmem:[#allocation5 + $0x210] sm:$0xff]
        %v405 = vld [vmem:[#allocation5 + $0x218] sm:$0xff]
        %v406 = vld [vmem:[#allocation5 + $0x220] sm:$0xff]
        %v407 = vld [vmem:[#allocation5 + $0x228] sm:$0xff]
        %v408 = vld [vmem:[#allocation5 + $0x230] sm:$0xff]
        %v409 = vld [vmem:[#allocation5 + $0x238] sm:$0xff]
        %v410 = vld [vmem:[#allocation5 + $0x240] sm:$0xff]
        %v411 = vld [vmem:[#allocation5 + $0x248] sm:$0xff]
        %v412 = vld [vmem:[#allocation5 + $0x250] sm:$0xff]
        %v413 = vld [vmem:[#allocation5 + $0x258] sm:$0xff]
        %v414 = vld [vmem:[#allocation5 + $0x260] sm:$0xff]
        %v415 = vld [vmem:[#allocation5 + $0x268] sm:$0xff]
        %v416 = vld [vmem:[#allocation5 + $0x270] sm:$0xff]
        %v417 = vld [vmem:[#allocation5 + $0x278] sm:$0xff]
        %v418 = vld [vmem:[#allocation5 + $0x280] sm:$0xff]
        %v419 = vld [vmem:[#allocation5 + $0x288] sm:$0xff]
        %v420 = vld [vmem:[#allocation5 + $0x290] sm:$0xff]
        %v421 = vld [vmem:[#allocation5 + $0x298] sm:$0xff]
        %v422 = vld [vmem:[#allocation5 + $0x2a0] sm:$0xff]
        %v423 = vld [vmem:[#allocation5 + $0x2a8] sm:$0xff]
        %v424 = vld [vmem:[#allocation5 + $0x2b0] sm:$0xff]
        %v425 = vld [vmem:[#allocation5 + $0x2b8] sm:$0xff]
        %v426 = vld [vmem:[#allocation5 + $0x2c0] sm:$0xff]
        %v427 = vld [vmem:[#allocation5 + $0x2c8] sm:$0xff]
        %v428 = vld [vmem:[#allocation5 + $0x2d0] sm:$0xff]
        %v429 = vld [vmem:[#allocation5 + $0x2d8] sm:$0xff]
        %v430 = vld [vmem:[#allocation5 + $0x2e0] sm:$0xff]
        %v431 = vld [vmem:[#allocation5 + $0x2e8] sm:$0xff]
        %v432 = vld [vmem:[#allocation5 + $0x2f0] sm:$0xff]
        %v433 = vld [vmem:[#allocation5 + $0x2f8] sm:$0xff]
        %v434 = vld [vmem:[#allocation5 + $0x300] sm:$0xff]
        %v435 = vld [vmem:[#allocation5 + $0x308] sm:$0xff]
        %v436 = vld [vmem:[#allocation5 + $0x310] sm:$0xff]
        %v437 = vld [vmem:[#allocation5 + $0x318] sm:$0xff]
        %v438 = vld [vmem:[#allocation5 + $0x320] sm:$0xff]
        %v439 = vld [vmem:[#allocation5 + $0x328] sm:$0xff]
        %v440 = vld [vmem:[#allocation5 + $0x330] sm:$0xff]
        %v441 = vld [vmem:[#allocation5 + $0x338] sm:$0xff]
        %v442 = vld [vmem:[#allocation5 + $0x340] sm:$0xff]
        %v443 = vld [vmem:[#allocation5 + $0x348] sm:$0xff]
        %v444 = vld [vmem:[#allocation5 + $0x350] sm:$0xff]
        %v445 = vld [vmem:[#allocation5 + $0x358] sm:$0xff]
        %v446 = vld [vmem:[#allocation5 + $0x360] sm:$0xff]
        %v447 = vld [vmem:[#allocation5 + $0x368] sm:$0xff]
        %v448 = vld [vmem:[#allocation5 + $0x370] sm:$0xff]
        %v449 = vld [vmem:[#allocation5 + $0x378] sm:$0xff]
        %v450 = vld [vmem:[#allocation5 + $0x380] sm:$0xff]
        %v451 = vld [vmem:[#allocation5 + $0x388] sm:$0xff]
        %v452 = vld [vmem:[#allocation5 + $0x390] sm:$0xff]
        %v453 = vld [vmem:[#allocation5 + $0x398] sm:$0xff]
        %v454 = vld [vmem:[#allocation5 + $0x3a0] sm:$0xff]
        %v455 = vld [vmem:[#allocation5 + $0x3a8] sm:$0xff]
        %v456 = vld [vmem:[#allocation5 + $0x3b0] sm:$0xff]
        %v457 = vld [vmem:[#allocation5 + $0x3b8] sm:$0xff]
        %v458 = vld [vmem:[#allocation5 + $0x3c0] sm:$0xff]
        %v459 = vld [vmem:[#allocation5 + $0x3c8] sm:$0xff]
        %v460 = vld [vmem:[#allocation5 + $0x3d0] sm:$0xff]
        %v461 = vld [vmem:[#allocation5 + $0x3d8] sm:$0xff]
        %v462 = vld [vmem:[#allocation5 + $0x3e0] sm:$0xff]
        %v463 = vld [vmem:[#allocation5 + $0x3e8] sm:$0xff]
        %v464 = vld [vmem:[#allocation5 + $0x3f0] sm:$0xff]
        %v465 = vld [vmem:[#allocation5 + $0x3f8] sm:$0xff]
        %v466 = vld [vmem:[#allocation5 + $0x400] sm:$0xff]
        %v467 = vld [vmem:[#allocation5 + $0x408] sm:$0xff]
        %v468 = vld [vmem:[#allocation5 + $0x410] sm:$0xff]
        %v469 = vld [vmem:[#allocation5 + $0x418] sm:$0xff]
        %v470 = vld [vmem:[#allocation5 + $0x420] sm:$0xff]
        %v471 = vld [vmem:[#allocation5 + $0x428] sm:$0xff]
        %v472 = vld [vmem:[#allocation5 + $0x430] sm:$0xff]
        %v473 = vld [vmem:[#allocation5 + $0x438] sm:$0xff]
        %v474 = vld [vmem:[#allocation5 + $0x440] sm:$0xff]
        %v475 = vld [vmem:[#allocation5 + $0x448] sm:$0xff]
        %v476 = vld [vmem:[#allocation5 + $0x450] sm:$0xff]
        %v477 = vld [vmem:[#allocation5 + $0x458] sm:$0xff]
        %v478 = vld [vmem:[#allocation5 + $0x460] sm:$0xff]
        %v479 = vld [vmem:[#allocation5 + $0x468] sm:$0xff]
        %v480 = vld [vmem:[#allocation5 + $0x470] sm:$0xff]
        %v481 = vld [vmem:[#allocation5 + $0x478] sm:$0xff]
        %v482 = vld [vmem:[#allocation5 + $0x480] sm:$0xff]
        %v483 = vld [vmem:[#allocation5 + $0x488] sm:$0xff]
        %v484 = vld [vmem:[#allocation5 + $0x490] sm:$0xff]
        %v485 = vld [vmem:[#allocation5 + $0x498] sm:$0xff]
        %v486 = vld [vmem:[#allocation5 + $0x4a0] sm:$0xff]
        %v487 = vld [vmem:[#allocation5 + $0x4a8] sm:$0xff]
        %v488 = vld [vmem:[#allocation5 + $0x4b0] sm:$0xff]
        %v489 = vld [vmem:[#allocation5 + $0x4b8] sm:$0xff]
        %v490 = vld [vmem:[#allocation5 + $0x4c0] sm:$0xff]
        %v491 = vld [vmem:[#allocation5 + $0x4c8] sm:$0xff]
        %v492 = vld [vmem:[#allocation5 + $0x4d0] sm:$0xff]
        %v493 = vld [vmem:[#allocation5 + $0x4d8] sm:$0xff]
        %v494 = vld [vmem:[#allocation5 + $0x4e0] sm:$0xff]
        %v495 = vld [vmem:[#allocation5 + $0x4e8] sm:$0xff]
        %v496 = vld [vmem:[#allocation5 + $0x4f0] sm:$0xff]
        %v497 = vld [vmem:[#allocation5 + $0x4f8] sm:$0xff]
        %v498 = vld [vmem:[#allocation5 + $0x500] sm:$0xff]
        %v499 = vld [vmem:[#allocation5 + $0x508] sm:$0xff]
        %v500 = vld [vmem:[#allocation5 + $0x510] sm:$0xff]
        %v501 = vld [vmem:[#allocation5 + $0x518] sm:$0xff]
        %v502 = vld [vmem:[#allocation5 + $0x520] sm:$0xff]
        %v503 = vld [vmem:[#allocation5 + $0x528] sm:$0xff]
        %v504 = vld [vmem:[#allocation5 + $0x530] sm:$0xff]
        %v505 = vld [vmem:[#allocation5 + $0x538] sm:$0xff]
        %v506 = vld [vmem:[#allocation5 + $0x540] sm:$0xff]
        %v507 = vld [vmem:[#allocation5 + $0x548] sm:$0xff]
        %v508 = vld [vmem:[#allocation5 + $0x550] sm:$0xff]
        %v509 = vld [vmem:[#allocation5 + $0x558] sm:$0xff]
        %v510 = vld [vmem:[#allocation5 + $0x560] sm:$0xff]
        %v511 = vld [vmem:[#allocation5 + $0x568] sm:$0xff]
        %v512 = vld [vmem:[#allocation5 + $0x570] sm:$0xff]
        %v513 = vld [vmem:[#allocation5 + $0x578] sm:$0xff]
        %v514 = vld [vmem:[#allocation5 + $0x580] sm:$0xff]
        %v515 = vld [vmem:[#allocation5 + $0x588] sm:$0xff]
        %v516 = vld [vmem:[#allocation5 + $0x590] sm:$0xff]
        %v517 = vld [vmem:[#allocation5 + $0x598] sm:$0xff]
        %v518 = vld [vmem:[#allocation5 + $0x5a0] sm:$0xff]
        %v519 = vld [vmem:[#allocation5 + $0x5a8] sm:$0xff]
        %v520 = vld [vmem:[#allocation5 + $0x5b0] sm:$0xff]
        %v521 = vld [vmem:[#allocation5 + $0x5b8] sm:$0xff]
        %v522 = vld [vmem:[#allocation5 + $0x5c0] sm:$0xff]
        %v523 = vld [vmem:[#allocation5 + $0x5c8] sm:$0xff]
        %v524 = vld [vmem:[#allocation5 + $0x5d0] sm:$0xff]
        %v525 = vld [vmem:[#allocation5 + $0x5d8] sm:$0xff]
        %v526 = vld [vmem:[#allocation5 + $0x5e0] sm:$0xff]
        %v527 = vld [vmem:[#allocation5 + $0x5e8] sm:$0xff]
        %v528 = vld [vmem:[#allocation5 + $0x5f0] sm:$0xff]
        %v529 = vld [vmem:[#allocation5 + $0x5f8] sm:$0xff]
        %v530 = vld [vmem:[#allocation5 + $0x600] sm:$0xff]
        %v531 = vld [vmem:[#allocation5 + $0x608] sm:$0xff]
        %v532 = vld [vmem:[#allocation5 + $0x610] sm:$0xff]
        %v533 = vld [vmem:[#allocation5 + $0x618] sm:$0xff]
        %v534 = vld [vmem:[#allocation5 + $0x620] sm:$0xff]
        %v535 = vld [vmem:[#allocation5 + $0x628] sm:$0xff]
        %v536 = vld [vmem:[#allocation5 + $0x630] sm:$0xff]
        %v537 = vld [vmem:[#allocation5 + $0x638] sm:$0xff]
        %v538 = vld [vmem:[#allocation5 + $0x640] sm:$0xff]
        %v539 = vld [vmem:[#allocation5 + $0x648] sm:$0xff]
        %v540 = vld [vmem:[#allocation5 + $0x650] sm:$0xff]
        %v541 = vld [vmem:[#allocation5 + $0x658] sm:$0xff]
        %v542 = vld [vmem:[#allocation5 + $0x660] sm:$0xff]
        %v543 = vld [vmem:[#allocation5 + $0x668] sm:$0xff]
        %v544 = vld [vmem:[#allocation5 + $0x670] sm:$0xff]
        %v545 = vld [vmem:[#allocation5 + $0x678] sm:$0xff]
        %v546 = vld [vmem:[#allocation5 + $0x680] sm:$0xff]
        %v547 = vld [vmem:[#allocation5 + $0x688] sm:$0xff]
        %v548 = vld [vmem:[#allocation5 + $0x690] sm:$0xff]
        %v549 = vld [vmem:[#allocation5 + $0x698] sm:$0xff]
        %v550 = vld [vmem:[#allocation5 + $0x6a0] sm:$0xff]
        %v551 = vld [vmem:[#allocation5 + $0x6a8] sm:$0xff]
        %v552 = vld [vmem:[#allocation5 + $0x6b0] sm:$0xff]
        %v553 = vld [vmem:[#allocation5 + $0x6b8] sm:$0xff]
        %v554 = vld [vmem:[#allocation5 + $0x6c0] sm:$0xff]
        %v555 = vld [vmem:[#allocation5 + $0x6c8] sm:$0xff]
        %v556 = vld [vmem:[#allocation5 + $0x6d0] sm:$0xff]
        %v557 = vld [vmem:[#allocation5 + $0x6d8] sm:$0xff]
        %v558 = vld [vmem:[#allocation5 + $0x6e0] sm:$0xff]
        %v559 = vld [vmem:[#allocation5 + $0x6e8] sm:$0xff]
        %v560 = vld [vmem:[#allocation5 + $0x6f0] sm:$0xff]
        %v561 = vld [vmem:[#allocation5 + $0x6f8] sm:$0xff]
        %v562 = vld [vmem:[#allocation5 + $0x700] sm:$0xff]
        %v563 = vld [vmem:[#allocation5 + $0x708] sm:$0xff]
        %v564 = vld [vmem:[#allocation5 + $0x710] sm:$0xff]
        %v565 = vld [vmem:[#allocation5 + $0x718] sm:$0xff]
        %v566 = vld [vmem:[#allocation5 + $0x720] sm:$0xff]
        %v567 = vld [vmem:[#allocation5 + $0x728] sm:$0xff]
        %v568 = vld [vmem:[#allocation5 + $0x730] sm:$0xff]
        %v569 = vld [vmem:[#allocation5 + $0x738] sm:$0xff]
        %v570 = vld [vmem:[#allocation5 + $0x740] sm:$0xff]
        %v571 = vld [vmem:[#allocation5 + $0x748] sm:$0xff]
        %v572 = vld [vmem:[#allocation5 + $0x750] sm:$0xff]
        %v573 = vld [vmem:[#allocation5 + $0x758] sm:$0xff]
        %v574 = vld [vmem:[#allocation5 + $0x760] sm:$0xff]
        %v575 = vld [vmem:[#allocation5 + $0x768] sm:$0xff]
        %v576 = vld [vmem:[#allocation5 + $0x770] sm:$0xff]
        %v577 = vld [vmem:[#allocation5 + $0x778] sm:$0xff]
        %v578 = vld [vmem:[#allocation5 + $0x780] sm:$0xff]
        %v579 = vld [vmem:[#allocation5 + $0x788] sm:$0xff]
        %v580 = vld [vmem:[#allocation5 + $0x790] sm:$0xff]
        %v581 = vld [vmem:[#allocation5 + $0x798] sm:$0xff]
        %v582 = vld [vmem:[#allocation5 + $0x7a0] sm:$0xff]
        %v583 = vld [vmem:[#allocation5 + $0x7a8] sm:$0xff]
        %v584 = vld [vmem:[#allocation5 + $0x7b0] sm:$0xff]
        %v585 = vld [vmem:[#allocation5 + $0x7b8] sm:$0xff]
        %v586 = vld [vmem:[#allocation5 + $0x7c0] sm:$0xff]
        %v587 = vld [vmem:[#allocation5 + $0x7c8] sm:$0xff]
        %v588 = vld [vmem:[#allocation5 + $0x7d0] sm:$0xff]
        %v589 = vld [vmem:[#allocation5 + $0x7d8] sm:$0xff]
        %v590 = vld [vmem:[#allocation5 + $0x7e0] sm:$0xff]
        %v591 = vld [vmem:[#allocation5 + $0x7e8] sm:$0xff]
        %v592 = vld [vmem:[#allocation5 + $0x7f0] sm:$0xff]
        %v593 = vld [vmem:[#allocation5 + $0x7f8] sm:$0xff]
        %v594 = vld [vmem:[#allocation5 + $0x800] sm:$0xff]
        %v595 = vld [vmem:[#allocation5 + $0x808] sm:$0xff]
        %v596 = vld [vmem:[#allocation5 + $0x810] sm:$0xff]
        %v597 = vld [vmem:[#allocation5 + $0x818] sm:$0xff]
        %v598 = vld [vmem:[#allocation5 + $0x820] sm:$0xff]
        %v599 = vld [vmem:[#allocation5 + $0x828] sm:$0xff]
        %v600 = vld [vmem:[#allocation5 + $0x830] sm:$0xff]
        %v601 = vld [vmem:[#allocation5 + $0x838] sm:$0xff]
        %v602 = vld [vmem:[#allocation5 + $0x840] sm:$0xff]
        %v603 = vld [vmem:[#allocation5 + $0x848] sm:$0xff]
        %v604 = vld [vmem:[#allocation5 + $0x850] sm:$0xff]
        %v605 = vld [vmem:[#allocation5 + $0x858] sm:$0xff]
        %v606 = vld [vmem:[#allocation5 + $0x860] sm:$0xff]
        %v607 = vld [vmem:[#allocation5 + $0x868] sm:$0xff]
        %v608 = vld [vmem:[#allocation5 + $0x870] sm:$0xff]
        %v609 = vld [vmem:[#allocation5 + $0x878] sm:$0xff]
        %v610 = vld [vmem:[#allocation5 + $0x880] sm:$0xff]
        %v611 = vld [vmem:[#allocation5 + $0x888] sm:$0xff]
        %v612 = vld [vmem:[#allocation5 + $0x890] sm:$0xff]
        %v613 = vld [vmem:[#allocation5 + $0x898] sm:$0xff]
        %v614 = vld [vmem:[#allocation5 + $0x8a0] sm:$0xff]
        %v615 = vld [vmem:[#allocation5 + $0x8a8] sm:$0xff]
        %v616 = vld [vmem:[#allocation5 + $0x8b0] sm:$0xff]
        %v617 = vld [vmem:[#allocation5 + $0x8b8] sm:$0xff]
        %v618 = vld [vmem:[#allocation5 + $0x8c0] sm:$0xff]
        %v619 = vld [vmem:[#allocation5 + $0x8c8] sm:$0xff]
        %v620 = vld [vmem:[#allocation5 + $0x8d0] sm:$0xff]
        %v621 = vld [vmem:[#allocation5 + $0x8d8] sm:$0xff]
        %v622 = vld [vmem:[#allocation5 + $0x8e0] sm:$0xff]
        %v623 = vld [vmem:[#allocation5 + $0x8e8] sm:$0xff]
        %v624 = vld [vmem:[#allocation5 + $0x8f0] sm:$0xff]
        %v625 = vld [vmem:[#allocation5 + $0x8f8] sm:$0xff]
        %v626 = vld [vmem:[#allocation5 + $0x900] sm:$0xff]
        %v627 = vld [vmem:[#allocation5 + $0x908] sm:$0xff]
        %v628 = vld [vmem:[#allocation5 + $0x910] sm:$0xff]
        %v629 = vld [vmem:[#allocation5 + $0x918] sm:$0xff]
        %v630 = vld [vmem:[#allocation5 + $0x920] sm:$0xff]
        %v631 = vld [vmem:[#allocation5 + $0x928] sm:$0xff]
        %v632 = vld [vmem:[#allocation5 + $0x930] sm:$0xff]
        %v633 = vld [vmem:[#allocation5 + $0x938] sm:$0xff]
        %v634 = vld [vmem:[#allocation5 + $0x940] sm:$0xff]
        %v635 = vld [vmem:[#allocation5 + $0x948] sm:$0xff]
        %v636 = vld [vmem:[#allocation5 + $0x950] sm:$0xff]
        %v637 = vld [vmem:[#allocation5 + $0x958] sm:$0xff]
        %v638 = vld [vmem:[#allocation5 + $0x960] sm:$0xff]
        %v639 = vld [vmem:[#allocation5 + $0x968] sm:$0xff]
        %v640 = vld [vmem:[#allocation5 + $0x970] sm:$0xff]
        %v641 = vld [vmem:[#allocation5 + $0x978] sm:$0xff]
        %v642 = vld [vmem:[#allocation5 + $0x980] sm:$0xff]
        %v643 = vld [vmem:[#allocation5 + $0x988] sm:$0xff]
        %v644 = vld [vmem:[#allocation5 + $0x990] sm:$0xff]
        %v645 = vld [vmem:[#allocation5 + $0x998] sm:$0xff]
        %v646 = vld [vmem:[#allocation5 + $0x9a0] sm:$0xff]
        %v647 = vld [vmem:[#allocation5 + $0x9a8] sm:$0xff]
        %v648 = vld [vmem:[#allocation5 + $0x9b0] sm:$0xff]
        %v649 = vld [vmem:[#allocation5 + $0x9b8] sm:$0xff]
        %v650 = vld [vmem:[#allocation5 + $0x9c0] sm:$0xff]
        %v651 = vld [vmem:[#allocation5 + $0x9c8] sm:$0xff]
        %v652 = vld [vmem:[#allocation5 + $0x9d0] sm:$0xff]
        %v653 = vld [vmem:[#allocation5 + $0x9d8] sm:$0xff]
        %v654 = vld [vmem:[#allocation5 + $0x9e0] sm:$0xff]
        %v655 = vld [vmem:[#allocation5 + $0x9e8] sm:$0xff]
        %v656 = vld [vmem:[#allocation5 + $0x9f0] sm:$0xff]
        %v657 = vld [vmem:[#allocation5 + $0x9f8] sm:$0xff]
        %v658 = vld [vmem:[#allocation5 + $0xa00] sm:$0xff]
        %v659 = vld [vmem:[#allocation5 + $0xa08] sm:$0xff]
        %v660 = vld [vmem:[#allocation5 + $0xa10] sm:$0xff]
        %v661 = vld [vmem:[#allocation5 + $0xa18] sm:$0xff]
        %v662 = vld [vmem:[#allocation5 + $0xa20] sm:$0xff]
        %v663 = vld [vmem:[#allocation5 + $0xa28] sm:$0xff]
        %v664 = vld [vmem:[#allocation5 + $0xa30] sm:$0xff]
        %v665 = vld [vmem:[#allocation5 + $0xa38] sm:$0xff]
        %v666 = vld [vmem:[#allocation5 + $0xa40] sm:$0xff]
        %v667 = vld [vmem:[#allocation5 + $0xa48] sm:$0xff]
        %v668 = vld [vmem:[#allocation5 + $0xa50] sm:$0xff]
        %v669 = vld [vmem:[#allocation5 + $0xa58] sm:$0xff]
        %v670 = vld [vmem:[#allocation5 + $0xa60] sm:$0xff]
        %v671 = vld [vmem:[#allocation5 + $0xa68] sm:$0xff]
        %v672 = vld [vmem:[#allocation5 + $0xa70] sm:$0xff]
        %v673 = vld [vmem:[#allocation5 + $0xa78] sm:$0xff]
        %v674 = vld [vmem:[#allocation5 + $0xa80] sm:$0xff]
        %v675 = vld [vmem:[#allocation5 + $0xa88] sm:$0xff]
        %v676 = vld [vmem:[#allocation5 + $0xa90] sm:$0xff]
        %v677 = vld [vmem:[#allocation5 + $0xa98] sm:$0xff]
        %v678 = vld [vmem:[#allocation5 + $0xaa0] sm:$0xff]
        %v679 = vld [vmem:[#allocation5 + $0xaa8] sm:$0xff]
        %v680 = vld [vmem:[#allocation5 + $0xab0] sm:$0xff]
        %v681 = vld [vmem:[#allocation5 + $0xab8] sm:$0xff]
        %v682 = vld [vmem:[#allocation5 + $0xac0] sm:$0xff]
        %v683 = vld [vmem:[#allocation5 + $0xac8] sm:$0xff]
        %v684 = vld [vmem:[#allocation5 + $0xad0] sm:$0xff]
        %v685 = vld [vmem:[#allocation5 + $0xad8] sm:$0xff]
        %v686 = vld [vmem:[#allocation5 + $0xae0] sm:$0xff]
        %v687 = vld [vmem:[#allocation5 + $0xae8] sm:$0xff]
        %v688 = vld [vmem:[#allocation5 + $0xaf0] sm:$0xff]
        %v689 = vld [vmem:[#allocation5 + $0xaf8] sm:$0xff]
        %v690 = vld [vmem:[#allocation5 + $0xb00] sm:$0xff]
        %v691 = vld [vmem:[#allocation5 + $0xb08] sm:$0xff]
        %v692 = vld [vmem:[#allocation5 + $0xb10] sm:$0xff]
        %v693 = vld [vmem:[#allocation5 + $0xb18] sm:$0xff]
        %v694 = vld [vmem:[#allocation5 + $0xb20] sm:$0xff]
        %v695 = vld [vmem:[#allocation5 + $0xb28] sm:$0xff]
        %v696 = vld [vmem:[#allocation5 + $0xb30] sm:$0xff]
        %v697 = vld [vmem:[#allocation5 + $0xb38] sm:$0xff]
        %v698 = vld [vmem:[#allocation5 + $0xb40] sm:$0xff]
        %v699 = vld [vmem:[#allocation5 + $0xb48] sm:$0xff]
        %v700 = vld [vmem:[#allocation5 + $0xb50] sm:$0xff]
        %v701 = vld [vmem:[#allocation5 + $0xb58] sm:$0xff]
        %v702 = vld [vmem:[#allocation5 + $0xb60] sm:$0xff]
        %v703 = vld [vmem:[#allocation5 + $0xb68] sm:$0xff]
        %v704 = vld [vmem:[#allocation5 + $0xb70] sm:$0xff]
        %v705 = vld [vmem:[#allocation5 + $0xb78] sm:$0xff]
        %v706 = vld [vmem:[#allocation5 + $0xb80] sm:$0xff]
        %v707 = vld [vmem:[#allocation5 + $0xb88] sm:$0xff]
        %v708 = vld [vmem:[#allocation5 + $0xb90] sm:$0xff]
        %v709 = vld [vmem:[#allocation5 + $0xb98] sm:$0xff]
        %v710 = vld [vmem:[#allocation5 + $0xba0] sm:$0xff]
        %v711 = vld [vmem:[#allocation5 + $0xba8] sm:$0xff]
        %v712 = vld [vmem:[#allocation5 + $0xbb0] sm:$0xff]
        %v713 = vld [vmem:[#allocation5 + $0xbb8] sm:$0xff]
        %v714 = vld [vmem:[#allocation5 + $0xbc0] sm:$0xff]
        %v715 = vld [vmem:[#allocation5 + $0xbc8] sm:$0xff]
        %v716 = vld [vmem:[#allocation5 + $0xbd0] sm:$0xff]
        %v717 = vld [vmem:[#allocation5 + $0xbd8] sm:$0xff]
        %v718 = vld [vmem:[#allocation5 + $0xbe0] sm:$0xff]
        %v719 = vld [vmem:[#allocation5 + $0xbe8] sm:$0xff]
        %v720 = vld [vmem:[#allocation5 + $0xbf0] sm:$0xff]
        %v721 = vld [vmem:[#allocation5 + $0xbf8] sm:$0xff]
        %v722 = vld [vmem:[#allocation5 + $0xc00] sm:$0xff]
        %v723 = vld [vmem:[#allocation5 + $0xc08] sm:$0xff]
        %v724 = vld [vmem:[#allocation5 + $0xc10] sm:$0xff]
        %v725 = vld [vmem:[#allocation5 + $0xc18] sm:$0xff]
        %v726 = vld [vmem:[#allocation5 + $0xc20] sm:$0xff]
        %v727 = vld [vmem:[#allocation5 + $0xc28] sm:$0xff]
        %v728 = vld [vmem:[#allocation5 + $0xc30] sm:$0xff]
        %v729 = vld [vmem:[#allocation5 + $0xc38] sm:$0xff]
        %v730 = vld [vmem:[#allocation5 + $0xc40] sm:$0xff]
        %v731 = vld [vmem:[#allocation5 + $0xc48] sm:$0xff]
        %v732 = vld [vmem:[#allocation5 + $0xc50] sm:$0xff]
        %v733 = vld [vmem:[#allocation5 + $0xc58] sm:$0xff]
        %v734 = vld [vmem:[#allocation5 + $0xc60] sm:$0xff]
        %v735 = vld [vmem:[#allocation5 + $0xc68] sm:$0xff]
        %v736 = vld [vmem:[#allocation5 + $0xc70] sm:$0xff]
        %v737 = vld [vmem:[#allocation5 + $0xc78] sm:$0xff]
        %v738 = vld [vmem:[#allocation5 + $0xc80] sm:$0xff]
        %v739 = vld [vmem:[#allocation5 + $0xc88] sm:$0xff]
        %v740 = vld [vmem:[#allocation5 + $0xc90] sm:$0xff]
        %v741 = vld [vmem:[#allocation5 + $0xc98] sm:$0xff]
        %v742 = vld [vmem:[#allocation5 + $0xca0] sm:$0xff]
        %v743 = vld [vmem:[#allocation5 + $0xca8] sm:$0xff]
        %v744 = vld [vmem:[#allocation5 + $0xcb0] sm:$0xff]
        %v745 = vld [vmem:[#allocation5 + $0xcb8] sm:$0xff]
        %v746 = vld [vmem:[#allocation5 + $0xcc0] sm:$0xff]
        %v747 = vld [vmem:[#allocation5 + $0xcc8] sm:$0xff]
        %v748 = vld [vmem:[#allocation5 + $0xcd0] sm:$0xff]
        %v749 = vld [vmem:[#allocation5 + $0xcd8] sm:$0xff]
        %v750 = vld [vmem:[#allocation5 + $0xce0] sm:$0xff]
        %v751 = vld [vmem:[#allocation5 + $0xce8] sm:$0xff]
        %v752 = vld [vmem:[#allocation5 + $0xcf0] sm:$0xff]
        %v753 = vld [vmem:[#allocation5 + $0xcf8] sm:$0xff]
        %v754 = vld [vmem:[#allocation5 + $0xd00] sm:$0xff]
        %v755 = vld [vmem:[#allocation5 + $0xd08] sm:$0xff]
        %v756 = vld [vmem:[#allocation5 + $0xd10] sm:$0xff]
        %v757 = vld [vmem:[#allocation5 + $0xd18] sm:$0xff]
        %v758 = vld [vmem:[#allocation5 + $0xd20] sm:$0xff]
        %v759 = vld [vmem:[#allocation5 + $0xd28] sm:$0xff]
        %v760 = vld [vmem:[#allocation5 + $0xd30] sm:$0xff]
        %v761 = vld [vmem:[#allocation5 + $0xd38] sm:$0xff]
        %v762 = vld [vmem:[#allocation5 + $0xd40] sm:$0xff]
        %v763 = vld [vmem:[#allocation5 + $0xd48] sm:$0xff]
        %v764 = vld [vmem:[#allocation5 + $0xd50] sm:$0xff]
        %v765 = vld [vmem:[#allocation5 + $0xd58] sm:$0xff]
        %v766 = vld [vmem:[#allocation5 + $0xd60] sm:$0xff]
        %v767 = vld [vmem:[#allocation5 + $0xd68] sm:$0xff]
        %v768 = vld [vmem:[#allocation5 + $0xd70] sm:$0xff]
        %v769 = vld [vmem:[#allocation5 + $0xd78] sm:$0xff]
        %v770 = vld [vmem:[#allocation5 + $0xd80] sm:$0xff]
        %v771 = vld [vmem:[#allocation5 + $0xd88] sm:$0xff]
        %v772 = vld [vmem:[#allocation5 + $0xd90] sm:$0xff]
        %v773 = vld [vmem:[#allocation5 + $0xd98] sm:$0xff]
        %v774 = vld [vmem:[#allocation5 + $0xda0] sm:$0xff]
        %v775 = vld [vmem:[#allocation5 + $0xda8] sm:$0xff]
        %v776 = vld [vmem:[#allocation5 + $0xdb0] sm:$0xff]
        %v777 = vld [vmem:[#allocation5 + $0xdb8] sm:$0xff]
        %v778 = vld [vmem:[#allocation5 + $0xdc0] sm:$0xff]
        %v779 = vld [vmem:[#allocation5 + $0xdc8] sm:$0xff]
        %v780 = vld [vmem:[#allocation5 + $0xdd0] sm:$0xff]
        %v781 = vld [vmem:[#allocation5 + $0xdd8] sm:$0xff]
        %v782 = vld [vmem:[#allocation5 + $0xde0] sm:$0xff]
        %v783 = vld [vmem:[#allocation5 + $0xde8] sm:$0xff]
        %v784 = vld [vmem:[#allocation5 + $0xdf0] sm:$0xff]
        %v785 = vld [vmem:[#allocation5 + $0xdf8] sm:$0xff]
        %v786 = vld [vmem:[#allocation5 + $0xe00] sm:$0xff]
        %v787 = vld [vmem:[#allocation5 + $0xe08] sm:$0xff]
        %v788 = vld [vmem:[#allocation5 + $0xe10] sm:$0xff]
        %v789 = vld [vmem:[#allocation5 + $0xe18] sm:$0xff]
        %v790 = vld [vmem:[#allocation5 + $0xe20] sm:$0xff]
        %v791 = vld [vmem:[#allocation5 + $0xe28] sm:$0xff]
        %v792 = vld [vmem:[#allocation5 + $0xe30] sm:$0xff]
        %v793 = vld [vmem:[#allocation5 + $0xe38] sm:$0xff]
        %v794 = vld [vmem:[#allocation5 + $0xe40] sm:$0xff]
        %v795 = vld [vmem:[#allocation5 + $0xe48] sm:$0xff]
        %v796 = vld [vmem:[#allocation5 + $0xe50] sm:$0xff]
        %v797 = vld [vmem:[#allocation5 + $0xe58] sm:$0xff]
        %v798 = vld [vmem:[#allocation5 + $0xe60] sm:$0xff]
        %v799 = vld [vmem:[#allocation5 + $0xe68] sm:$0xff]
        %v800 = vld [vmem:[#allocation5 + $0xe70] sm:$0xff]
        %v801 = vld [vmem:[#allocation5 + $0xe78] sm:$0xff]
        %v802 = vld [vmem:[#allocation5 + $0xe80] sm:$0xff]
        %v803 = vld [vmem:[#allocation5 + $0xe88] sm:$0xff]
        %v804 = vld [vmem:[#allocation5 + $0xe90] sm:$0xff]
        %v805 = vld [vmem:[#allocation5 + $0xe98] sm:$0xff]
        %v806 = vld [vmem:[#allocation5 + $0xea0] sm:$0xff]
        %v807 = vld [vmem:[#allocation5 + $0xea8] sm:$0xff]
        %v808 = vld [vmem:[#allocation5 + $0xeb0] sm:$0xff]
        %v809 = vld [vmem:[#allocation5 + $0xeb8] sm:$0xff]
        %v810 = vld [vmem:[#allocation5 + $0xec0] sm:$0xff]
        %v811 = vld [vmem:[#allocation5 + $0xec8] sm:$0xff]
        %v812 = vld [vmem:[#allocation5 + $0xed0] sm:$0xff]
        %v813 = vld [vmem:[#allocation5 + $0xed8] sm:$0xff]
        %v814 = vld [vmem:[#allocation5 + $0xee0] sm:$0xff]
        %v815 = vld [vmem:[#allocation5 + $0xee8] sm:$0xff]
        %v816 = vld [vmem:[#allocation5 + $0xef0] sm:$0xff]
        %v817 = vld [vmem:[#allocation5 + $0xef8] sm:$0xff]
        %v818 = vld [vmem:[#allocation5 + $0xf00] sm:$0xff]
        %v819 = vld [vmem:[#allocation5 + $0xf08] sm:$0xff]
        %v820 = vld [vmem:[#allocation5 + $0xf10] sm:$0xff]
        %v821 = vld [vmem:[#allocation5 + $0xf18] sm:$0xff]
        %v822 = vld [vmem:[#allocation5 + $0xf20] sm:$0xff]
        %v823 = vld [vmem:[#allocation5 + $0xf28] sm:$0xff]
        %v824 = vld [vmem:[#allocation5 + $0xf30] sm:$0xff]
        %v825 = vld [vmem:[#allocation5 + $0xf38] sm:$0xff]
        %v826 = vld [vmem:[#allocation5 + $0xf40] sm:$0xff]
        %v827 = vld [vmem:[#allocation5 + $0xf48] sm:$0xff]
        %v828 = vld [vmem:[#allocation5 + $0xf50] sm:$0xff]
        %v829 = vld [vmem:[#allocation5 + $0xf58] sm:$0xff]
        %v830 = vld [vmem:[#allocation5 + $0xf60] sm:$0xff]
        %v831 = vld [vmem:[#allocation5 + $0xf68] sm:$0xff]
        %v832 = vld [vmem:[#allocation5 + $0xf70] sm:$0xff]
        %v833 = vld [vmem:[#allocation5 + $0xf78] sm:$0xff]
        %v834 = vld [vmem:[#allocation5 + $0xf80] sm:$0xff]
        %v835 = vld [vmem:[#allocation5 + $0xf88] sm:$0xff]
        %v836 = vld [vmem:[#allocation5 + $0xf90] sm:$0xff]
        %v837 = vld [vmem:[#allocation5 + $0xf98] sm:$0xff]
        %v838 = vld [vmem:[#allocation5 + $0xfa0] sm:$0xff]
        %v839 = vld [vmem:[#allocation5 + $0xfa8] sm:$0xff]
        %v840 = vld [vmem:[#allocation5 + $0xfb0] sm:$0xff]
        %v841 = vld [vmem:[#allocation5 + $0xfb8] sm:$0xff]
        %v842 = vld [vmem:[#allocation5 + $0xfc0] sm:$0xff]
        %v843 = vld [vmem:[#allocation5 + $0xfc8] sm:$0xff]
        %v844 = vld [vmem:[#allocation5 + $0xfd0] sm:$0xff]
        %v845 = vld [vmem:[#allocation5 + $0xfd8] sm:$0xff]
        %v846 = vld [vmem:[#allocation5 + $0xfe0] sm:$0xff]
        %v847 = vld [vmem:[#allocation5 + $0xfe8] sm:$0xff]
        %v848 = vld [vmem:[#allocation5 + $0xff0] sm:$0xff]
        %v849 = vld [vmem:[#allocation5 + $0xff8] sm:$0xff]
        %v850 = vld [vmem:[#allocation5 + $0x1000] sm:$0xff]
        %v851 = vld [vmem:[#allocation5 + $0x1008] sm:$0xff]
        %v852 = vld [vmem:[#allocation5 + $0x1010] sm:$0xff]
        %v853 = vld [vmem:[#allocation5 + $0x1018] sm:$0xff]
        %v854 = vld [vmem:[#allocation5 + $0x1020] sm:$0xff]
        %v855 = vld [vmem:[#allocation5 + $0x1028] sm:$0xff]
        %v856 = vld [vmem:[#allocation5 + $0x1030] sm:$0xff]
        %v857 = vld [vmem:[#allocation5 + $0x1038] sm:$0xff]
        %v858 = vld [vmem:[#allocation5 + $0x1040] sm:$0xff]
        %v859 = vld [vmem:[#allocation5 + $0x1048] sm:$0xff]
        %v860 = vld [vmem:[#allocation5 + $0x1050] sm:$0xff]
        %v861 = vld [vmem:[#allocation5 + $0x1058] sm:$0xff]
        %v862 = vld [vmem:[#allocation5 + $0x1060] sm:$0xff]
        %v863 = vld [vmem:[#allocation5 + $0x1068] sm:$0xff]
        %v864 = vld [vmem:[#allocation5 + $0x1070] sm:$0xff]
        %v865 = vld [vmem:[#allocation5 + $0x1078] sm:$0xff]
        %v866 = vld [vmem:[#allocation5 + $0x1080] sm:$0xff]
        %v867 = vld [vmem:[#allocation5 + $0x1088] sm:$0xff]
        %v868 = vld [vmem:[#allocation5 + $0x1090] sm:$0xff]
        %v869 = vld [vmem:[#allocation5 + $0x1098] sm:$0xff]
        %v870 = vld [vmem:[#allocation5 + $0x10a0] sm:$0xff]
        %v871 = vld [vmem:[#allocation5 + $0x10a8] sm:$0xff]
        %v872 = vld [vmem:[#allocation5 + $0x10b0] sm:$0xff]
        %v873 = vld [vmem:[#allocation5 + $0x10b8] sm:$0xff]
        %v874 = vld [vmem:[#allocation5 + $0x10c0] sm:$0xff]
        %v875 = vld [vmem:[#allocation5 + $0x10c8] sm:$0xff]
        %v876 = vld [vmem:[#allocation5 + $0x10d0] sm:$0xff]
        %v877 = vld [vmem:[#allocation5 + $0x10d8] sm:$0xff]
        %v878 = vld [vmem:[#allocation5 + $0x10e0] sm:$0xff]
        %v879 = vld [vmem:[#allocation5 + $0x10e8] sm:$0xff]
        %v880 = vld [vmem:[#allocation5 + $0x10f0] sm:$0xff]
        %v881 = vld [vmem:[#allocation5 + $0x10f8] sm:$0xff]
        %v882 = vld [vmem:[#allocation5 + $0x1100] sm:$0xff]
        %v883 = vld [vmem:[#allocation5 + $0x1108] sm:$0xff]
        %v884 = vld [vmem:[#allocation5 + $0x1110] sm:$0xff]
        %v885 = vld [vmem:[#allocation5 + $0x1118] sm:$0xff]
        %v886 = vld [vmem:[#allocation5 + $0x1120] sm:$0xff]
        %v887 = vld [vmem:[#allocation5 + $0x1128] sm:$0xff]
        %v888 = vld [vmem:[#allocation5 + $0x1130] sm:$0xff]
        %v889 = vld [vmem:[#allocation5 + $0x1138] sm:$0xff]
        %v890 = vld [vmem:[#allocation5 + $0x1140] sm:$0xff]
        %v891 = vld [vmem:[#allocation5 + $0x1148] sm:$0xff]
        %v892 = vld [vmem:[#allocation5 + $0x1150] sm:$0xff]
        %v893 = vld [vmem:[#allocation5 + $0x1158] sm:$0xff]
        %v894 = vld [vmem:[#allocation5 + $0x1160] sm:$0xff]
        %v895 = vld [vmem:[#allocation5 + $0x1168] sm:$0xff]
        %v896 = vld [vmem:[#allocation5 + $0x1170] sm:$0xff]
        %v897 = vld [vmem:[#allocation5 + $0x1178] sm:$0xff]
        %v898 = vld [vmem:[#allocation5 + $0x1180] sm:$0xff]
        %v899 = vld [vmem:[#allocation5 + $0x1188] sm:$0xff]
        %v900 = vld [vmem:[#allocation5 + $0x1190] sm:$0xff]
        %v901 = vld [vmem:[#allocation5 + $0x1198] sm:$0xff]
        %v902 = vld [vmem:[#allocation5 + $0x11a0] sm:$0xff]
        %v903 = vld [vmem:[#allocation5 + $0x11a8] sm:$0xff]
        %v904 = vld [vmem:[#allocation5 + $0x11b0] sm:$0xff]
        %v905 = vld [vmem:[#allocation5 + $0x11b8] sm:$0xff]
        %v906 = vld [vmem:[#allocation5 + $0x11c0] sm:$0xff]
        %v907 = vld [vmem:[#allocation5 + $0x11c8] sm:$0xff]
        %v908 = vld [vmem:[#allocation5 + $0x11d0] sm:$0xff]
        %v909 = vld [vmem:[#allocation5 + $0x11d8] sm:$0xff]
        %v910 = vld [vmem:[#allocation5 + $0x11e0] sm:$0xff]
        %v911 = vld [vmem:[#allocation5 + $0x11e8] sm:$0xff]
        %v912 = vld [vmem:[#allocation5 + $0x11f0] sm:$0xff]
        %v913 = vld [vmem:[#allocation5 + $0x11f8] sm:$0xff]
        %v914 = vld [vmem:[#allocation5 + $0x1200] sm:$0xff]
        %v915 = vld [vmem:[#allocation5 + $0x1208] sm:$0xff]
        %v916 = vld [vmem:[#allocation5 + $0x1210] sm:$0xff]
        %v917 = vld [vmem:[#allocation5 + $0x1218] sm:$0xff]
        %v918 = vld [vmem:[#allocation5 + $0x1220] sm:$0xff]
        %v919 = vld [vmem:[#allocation5 + $0x1228] sm:$0xff]
        %v920 = vld [vmem:[#allocation5 + $0x1230] sm:$0xff]
        %v921 = vld [vmem:[#allocation5 + $0x1238] sm:$0xff]
        %v922 = vld [vmem:[#allocation5 + $0x1240] sm:$0xff]
        %v923 = vld [vmem:[#allocation5 + $0x1248] sm:$0xff]
        %v924 = vld [vmem:[#allocation5 + $0x1250] sm:$0xff]
        %v925 = vld [vmem:[#allocation5 + $0x1258] sm:$0xff]
        %v926 = vld [vmem:[#allocation5 + $0x1260] sm:$0xff]
        %v927 = vld [vmem:[#allocation5 + $0x1268] sm:$0xff]
        %v928 = vld [vmem:[#allocation5 + $0x1270] sm:$0xff]
        %v929 = vld [vmem:[#allocation5 + $0x1278] sm:$0xff]
        %v930 = vld [vmem:[#allocation5 + $0x1280] sm:$0xff]
        %v931 = vld [vmem:[#allocation5 + $0x1288] sm:$0xff]
        %v932 = vld [vmem:[#allocation5 + $0x1290] sm:$0xff]
        %v933 = vld [vmem:[#allocation5 + $0x1298] sm:$0xff]
        %v934 = vld [vmem:[#allocation5 + $0x12a0] sm:$0xff]
        %v935 = vld [vmem:[#allocation5 + $0x12a8] sm:$0xff]
        %v936 = vld [vmem:[#allocation5 + $0x12b0] sm:$0xff]
        %v937 = vld [vmem:[#allocation5 + $0x12b8] sm:$0xff]
        %v938 = vld [vmem:[#allocation5 + $0x12c0] sm:$0xff]
        %v939 = vld [vmem:[#allocation5 + $0x12c8] sm:$0xff]
        %v940 = vld [vmem:[#allocation5 + $0x12d0] sm:$0xff]
        %v941 = vld [vmem:[#allocation5 + $0x12d8] sm:$0xff]
        %v942 = vld [vmem:[#allocation5 + $0x12e0] sm:$0xff]
        %v943 = vld [vmem:[#allocation5 + $0x12e8] sm:$0xff]
        %v944 = vld [vmem:[#allocation5 + $0x12f0] sm:$0xff]
        %v945 = vld [vmem:[#allocation5 + $0x12f8] sm:$0xff]
        %v946 = vld [vmem:[#allocation5 + $0x1300] sm:$0xff]
        %v947 = vld [vmem:[#allocation5 + $0x1308] sm:$0xff]
        %v948 = vld [vmem:[#allocation5 + $0x1310] sm:$0xff]
        %v949 = vld [vmem:[#allocation5 + $0x1318] sm:$0xff]
        %v950 = vld [vmem:[#allocation5 + $0x1320] sm:$0xff]
        %v951 = vld [vmem:[#allocation5 + $0x1328] sm:$0xff]
        %v952 = vld [vmem:[#allocation5 + $0x1330] sm:$0xff]
        %v953 = vld [vmem:[#allocation5 + $0x1338] sm:$0xff]
        %v954 = vld [vmem:[#allocation5 + $0x1340] sm:$0xff]
        %v955 = vld [vmem:[#allocation5 + $0x1348] sm:$0xff]
        %v956 = vld [vmem:[#allocation5 + $0x1350] sm:$0xff]
        %v957 = vld [vmem:[#allocation5 + $0x1358] sm:$0xff]
        %v958 = vld [vmem:[#allocation5 + $0x1360] sm:$0xff]
        %v959 = vld [vmem:[#allocation5 + $0x1368] sm:$0xff]
        %v960 = vld [vmem:[#allocation5 + $0x1370] sm:$0xff]
        %v961 = vld [vmem:[#allocation5 + $0x1378] sm:$0xff]
        %v962 = vld [vmem:[#allocation5 + $0x1380] sm:$0xff]
        %v963 = vld [vmem:[#allocation5 + $0x1388] sm:$0xff]
        %v964 = vld [vmem:[#allocation5 + $0x1390] sm:$0xff]
        %v965 = vld [vmem:[#allocation5 + $0x1398] sm:$0xff]
        %v966 = vld [vmem:[#allocation5 + $0x13a0] sm:$0xff]
        %v967 = vld [vmem:[#allocation5 + $0x13a8] sm:$0xff]
        %v968 = vld [vmem:[#allocation5 + $0x13b0] sm:$0xff]
        %v969 = vld [vmem:[#allocation5 + $0x13b8] sm:$0xff]
        %v970 = vld [vmem:[#allocation5 + $0x13c0] sm:$0xff]
        %v971 = vld [vmem:[#allocation5 + $0x13c8] sm:$0xff]
        %v972 = vld [vmem:[#allocation5 + $0x13d0] sm:$0xff]
        %v973 = vld [vmem:[#allocation5 + $0x13d8] sm:$0xff]
        %v974 = vld [vmem:[#allocation5 + $0x13e0] sm:$0xff]
        %v975 = vld [vmem:[#allocation5 + $0x13e8] sm:$0xff]
        %v976 = vld [vmem:[#allocation5 + $0x13f0] sm:$0xff]
        %v977 = vld [vmem:[#allocation5 + $0x13f8] sm:$0xff]
        %v978 = vld [vmem:[#allocation5 + $0x1400] sm:$0xff]
        %v979 = vld [vmem:[#allocation5 + $0x1408] sm:$0xff]
        %v980 = vld [vmem:[#allocation5 + $0x1410] sm:$0xff]
        %v981 = vld [vmem:[#allocation5 + $0x1418] sm:$0xff]
        %v982 = vld [vmem:[#allocation5 + $0x1420] sm:$0xff]
        %v983 = vld [vmem:[#allocation5 + $0x1428] sm:$0xff]
        %v984 = vld [vmem:[#allocation5 + $0x1430] sm:$0xff]
        %v985 = vld [vmem:[#allocation5 + $0x1438] sm:$0xff]
        %v986 = vld [vmem:[#allocation5 + $0x1440] sm:$0xff]
        %v987 = vld [vmem:[#allocation5 + $0x1448] sm:$0xff]
        %v988 = vld [vmem:[#allocation5 + $0x1450] sm:$0xff]
        %v989 = vld [vmem:[#allocation5 + $0x1458] sm:$0xff]
        %v990 = vld [vmem:[#allocation5 + $0x1460] sm:$0xff]
        %v991 = vld [vmem:[#allocation5 + $0x1468] sm:$0xff]
        %v992 = vld [vmem:[#allocation5 + $0x1470] sm:$0xff]
        %v993 = vld [vmem:[#allocation5 + $0x1478] sm:$0xff]
        %v994 = vld [vmem:[#allocation5 + $0x1480] sm:$0xff]
        %v995 = vld [vmem:[#allocation5 + $0x1488] sm:$0xff]
        %v996 = vld [vmem:[#allocation5 + $0x1490] sm:$0xff]
        %v997 = vld [vmem:[#allocation5 + $0x1498] sm:$0xff]
        %v998 = vld [vmem:[#allocation5 + $0x14a0] sm:$0xff]
        %v999 = vld [vmem:[#allocation5 + $0x14a8] sm:$0xff]
        %v1000 = vld [vmem:[#allocation5 + $0x14b0] sm:$0xff]
        %v1001 = vld [vmem:[#allocation5 + $0x14b8] sm:$0xff]
        %v1002 = vld [vmem:[#allocation5 + $0x14c0] sm:$0xff]
        %v1003 = vld [vmem:[#allocation5 + $0x14c8] sm:$0xff]
        %v1004 = vld [vmem:[#allocation5 + $0x14d0] sm:$0xff]
        %v1005 = vld [vmem:[#allocation5 + $0x14d8] sm:$0xff]
        %v1006 = vld [vmem:[#allocation5 + $0x14e0] sm:$0xff]
        %v1007 = vld [vmem:[#allocation5 + $0x14e8] sm:$0xff]
        %v1008 = vld [vmem:[#allocation5 + $0x14f0] sm:$0xff]
        %v1009 = vld [vmem:[#allocation5 + $0x14f8] sm:$0xff]
        %v1010 = vld [vmem:[#allocation5 + $0x1500] sm:$0xff]
        %v1011 = vld [vmem:[#allocation5 + $0x1508] sm:$0xff]
        %v1012 = vld [vmem:[#allocation5 + $0x1510] sm:$0xff]
        %v1013 = vld [vmem:[#allocation5 + $0x1518] sm:$0xff]
        %v1014 = vld [vmem:[#allocation5 + $0x1520] sm:$0xff]
        %v1015 = vld [vmem:[#allocation5 + $0x1528] sm:$0xff]
        %v1016 = vld [vmem:[#allocation5 + $0x1530] sm:$0xff]
        %v1017 = vld [vmem:[#allocation5 + $0x1538] sm:$0xff]
        %v1018 = vld [vmem:[#allocation5 + $0x1540] sm:$0xff]
        %v1019 = vld [vmem:[#allocation5 + $0x1548] sm:$0xff]
        %v1020 = vld [vmem:[#allocation5 + $0x1550] sm:$0xff]
        %v1021 = vld [vmem:[#allocation5 + $0x1558] sm:$0xff]
        %v1022 = vld [vmem:[#allocation5 + $0x1560] sm:$0xff]
        %v1023 = vld [vmem:[#allocation5 + $0x1568] sm:$0xff]
        %v1024 = vld [vmem:[#allocation5 + $0x1570] sm:$0xff]
        %v1025 = vld [vmem:[#allocation5 + $0x1578] sm:$0xff]
        %v1026 = vld [vmem:[#allocation5 + $0x1580] sm:$0xff]
        %v1027 = vld [vmem:[#allocation5 + $0x1588] sm:$0xff]
        %v1028 = vld [vmem:[#allocation5 + $0x1590] sm:$0xff]
        %v1029 = vld [vmem:[#allocation5 + $0x1598] sm:$0xff]
        %v1030 = vld [vmem:[#allocation5 + $0x15a0] sm:$0xff]
        %v1031 = vld [vmem:[#allocation5 + $0x15a8] sm:$0xff]
        %v1032 = vld [vmem:[#allocation5 + $0x15b0] sm:$0xff]
        %v1033 = vld [vmem:[#allocation5 + $0x15b8] sm:$0xff]
        %v1034 = vld [vmem:[#allocation5 + $0x15c0] sm:$0xff]
        %v1035 = vld [vmem:[#allocation5 + $0x15c8] sm:$0xff]
        %v1036 = vld [vmem:[#allocation5 + $0x15d0] sm:$0xff]
        %v1037 = vld [vmem:[#allocation5 + $0x15d8] sm:$0xff]
        %v1038 = vld [vmem:[#allocation5 + $0x15e0] sm:$0xff]
        %v1039 = vld [vmem:[#allocation5 + $0x15e8] sm:$0xff]
        %v1040 = vld [vmem:[#allocation5 + $0x15f0] sm:$0xff]
        %v1041 = vld [vmem:[#allocation5 + $0x15f8] sm:$0xff]
        %v1042 = vld [vmem:[#allocation5 + $0x1600] sm:$0xff]
        %v1043 = vld [vmem:[#allocation5 + $0x1608] sm:$0xff]
        %v1044 = vld [vmem:[#allocation5 + $0x1610] sm:$0xff]
        %v1045 = vld [vmem:[#allocation5 + $0x1618] sm:$0xff]
        %v1046 = vld [vmem:[#allocation5 + $0x1620] sm:$0xff]
        %v1047 = vld [vmem:[#allocation5 + $0x1628] sm:$0xff]
        %v1048 = vld [vmem:[#allocation5 + $0x1630] sm:$0xff]
        %v1049 = vld [vmem:[#allocation5 + $0x1638] sm:$0xff]
        %v1050 = vld [vmem:[#allocation5 + $0x1640] sm:$0xff]
        %v1051 = vld [vmem:[#allocation5 + $0x1648] sm:$0xff]
        %v1052 = vld [vmem:[#allocation5 + $0x1650] sm:$0xff]
        %v1053 = vld [vmem:[#allocation5 + $0x1658] sm:$0xff]
        %v1054 = vld [vmem:[#allocation5 + $0x1660] sm:$0xff]
        %v1055 = vld [vmem:[#allocation5 + $0x1668] sm:$0xff]
        %v1056 = vld [vmem:[#allocation5 + $0x1670] sm:$0xff]
        %v1057 = vld [vmem:[#allocation5 + $0x1678] sm:$0xff]
        %v1058 = vld [vmem:[#allocation5 + $0x1680] sm:$0xff]
        %v1059 = vld [vmem:[#allocation5 + $0x1688] sm:$0xff]
        %v1060 = vld [vmem:[#allocation5 + $0x1690] sm:$0xff]
        %v1061 = vld [vmem:[#allocation5 + $0x1698] sm:$0xff]
        %v1062 = vld [vmem:[#allocation5 + $0x16a0] sm:$0xff]
        %v1063 = vld [vmem:[#allocation5 + $0x16a8] sm:$0xff]
        %v1064 = vld [vmem:[#allocation5 + $0x16b0] sm:$0xff]
        %v1065 = vld [vmem:[#allocation5 + $0x16b8] sm:$0xff]
        %v1066 = vld [vmem:[#allocation5 + $0x16c0] sm:$0xff]
        %v1067 = vld [vmem:[#allocation5 + $0x16c8] sm:$0xff]
        %v1068 = vld [vmem:[#allocation5 + $0x16d0] sm:$0xff]
        %v1069 = vld [vmem:[#allocation5 + $0x16d8] sm:$0xff]
        %v1070 = vld [vmem:[#allocation5 + $0x16e0] sm:$0xff]
        %v1071 = vld [vmem:[#allocation5 + $0x16e8] sm:$0xff]
        %v1072 = vld [vmem:[#allocation5 + $0x16f0] sm:$0xff]
        %v1073 = vld [vmem:[#allocation5 + $0x16f8] sm:$0xff]
        %v1074 = vld [vmem:[#allocation5 + $0x1700] sm:$0xff]
        %v1075 = vld [vmem:[#allocation5 + $0x1708] sm:$0xff]
        %v1076 = vld [vmem:[#allocation5 + $0x1710] sm:$0xff]
        %v1077 = vld [vmem:[#allocation5 + $0x1718] sm:$0xff]
        %v1078 = vld [vmem:[#allocation5 + $0x1720] sm:$0xff]
        %v1079 = vld [vmem:[#allocation5 + $0x1728] sm:$0xff]
        %v1080 = vld [vmem:[#allocation5 + $0x1730] sm:$0xff]
        %v1081 = vld [vmem:[#allocation5 + $0x1738] sm:$0xff]
        %v1082 = vld [vmem:[#allocation5 + $0x1740] sm:$0xff]
        %v1083 = vld [vmem:[#allocation5 + $0x1748] sm:$0xff]
        %v1084 = vld [vmem:[#allocation5 + $0x1750] sm:$0xff]
        %v1085 = vld [vmem:[#allocation5 + $0x1758] sm:$0xff]
        %v1086 = vld [vmem:[#allocation5 + $0x1760] sm:$0xff]
        %v1087 = vld [vmem:[#allocation5 + $0x1768] sm:$0xff]
        %v1088 = vld [vmem:[#allocation5 + $0x1770] sm:$0xff]
        %v1089 = vld [vmem:[#allocation5 + $0x1778] sm:$0xff]
        %v1090 = vld [vmem:[#allocation5 + $0x1780] sm:$0xff]
        %v1091 = vld [vmem:[#allocation5 + $0x1788] sm:$0xff]
        %v1092 = vld [vmem:[#allocation5 + $0x1790] sm:$0xff]
        %v1093 = vld [vmem:[#allocation5 + $0x1798] sm:$0xff]
        %v1094 = vld [vmem:[#allocation5 + $0x17a0] sm:$0xff]
        %v1095 = vld [vmem:[#allocation5 + $0x17a8] sm:$0xff]
        %v1096 = vld [vmem:[#allocation5 + $0x17b0] sm:$0xff]
        %v1097 = vld [vmem:[#allocation5 + $0x17b8] sm:$0xff]
        %v1098 = vld [vmem:[#allocation5 + $0x17c0] sm:$0xff]
        %v1099 = vld [vmem:[#allocation5 + $0x17c8] sm:$0xff]
        %v1100 = vld [vmem:[#allocation5 + $0x17d0] sm:$0xff]
        %v1101 = vld [vmem:[#allocation5 + $0x17d8] sm:$0xff]
        %v1102 = vld [vmem:[#allocation5 + $0x17e0] sm:$0xff]
        %v1103 = vld [vmem:[#allocation5 + $0x17e8] sm:$0xff]
        %v1104 = vld [vmem:[#allocation5 + $0x17f0] sm:$0xff]
        %v1105 = vld [vmem:[#allocation5 + $0x17f8] sm:$0xff]
        %v1106 = vld [vmem:[#allocation5 + $0x1800] sm:$0xff]
        %v1107 = vld [vmem:[#allocation5 + $0x1808] sm:$0xff]
        %v1108 = vld [vmem:[#allocation5 + $0x1810] sm:$0xff]
        %v1109 = vld [vmem:[#allocation5 + $0x1818] sm:$0xff]
        %v1110 = vld [vmem:[#allocation5 + $0x1820] sm:$0xff]
        %v1111 = vld [vmem:[#allocation5 + $0x1828] sm:$0xff]
        %v1112 = vld [vmem:[#allocation5 + $0x1830] sm:$0xff]
        %v1113 = vld [vmem:[#allocation5 + $0x1838] sm:$0xff]
        %v1114 = vld [vmem:[#allocation5 + $0x1840] sm:$0xff]
        %v1115 = vld [vmem:[#allocation5 + $0x1848] sm:$0xff]
        %v1116 = vld [vmem:[#allocation5 + $0x1850] sm:$0xff]
        %v1117 = vld [vmem:[#allocation5 + $0x1858] sm:$0xff]
        %v1118 = vld [vmem:[#allocation5 + $0x1860] sm:$0xff]
        %v1119 = vld [vmem:[#allocation5 + $0x1868] sm:$0xff]
        %v1120 = vld [vmem:[#allocation5 + $0x1870] sm:$0xff]
        %v1121 = vld [vmem:[#allocation5 + $0x1878] sm:$0xff]
        %v1122 = vld [vmem:[#allocation5 + $0x1880] sm:$0xff]
        %v1123 = vld [vmem:[#allocation5 + $0x1888] sm:$0xff]
        %v1124 = vld [vmem:[#allocation5 + $0x1890] sm:$0xff]
        %v1125 = vld [vmem:[#allocation5 + $0x1898] sm:$0xff]
        %v1126 = vld [vmem:[#allocation5 + $0x18a0] sm:$0xff]
        %v1127 = vld [vmem:[#allocation5 + $0x18a8] sm:$0xff]
        %v1128 = vld [vmem:[#allocation5 + $0x18b0] sm:$0xff]
        %v1129 = vld [vmem:[#allocation5 + $0x18b8] sm:$0xff]
        %v1130 = vld [vmem:[#allocation5 + $0x18c0] sm:$0xff]
        %v1131 = vld [vmem:[#allocation5 + $0x18c8] sm:$0xff]
        %v1132 = vld [vmem:[#allocation5 + $0x18d0] sm:$0xff]
        %v1133 = vld [vmem:[#allocation5 + $0x18d8] sm:$0xff]
        %v1134 = vld [vmem:[#allocation5 + $0x18e0] sm:$0xff]
        %v1135 = vld [vmem:[#allocation5 + $0x18e8] sm:$0xff]
        %v1136 = vld [vmem:[#allocation5 + $0x18f0] sm:$0xff]
        %v1137 = vld [vmem:[#allocation5 + $0x18f8] sm:$0xff]
        %v1138 = vld [vmem:[#allocation5 + $0x1900] sm:$0xff]
        %v1139 = vld [vmem:[#allocation5 + $0x1908] sm:$0xff]
        %v1140 = vld [vmem:[#allocation5 + $0x1910] sm:$0xff]
        %v1141 = vld [vmem:[#allocation5 + $0x1918] sm:$0xff]
        %v1142 = vld [vmem:[#allocation5 + $0x1920] sm:$0xff]
        %v1143 = vld [vmem:[#allocation5 + $0x1928] sm:$0xff]
        %v1144 = vld [vmem:[#allocation5 + $0x1930] sm:$0xff]
        %v1145 = vld [vmem:[#allocation5 + $0x1938] sm:$0xff]
        %v1146 = vld [vmem:[#allocation5 + $0x1940] sm:$0xff]
        %v1147 = vld [vmem:[#allocation5 + $0x1948] sm:$0xff]
        %v1148 = vld [vmem:[#allocation5 + $0x1950] sm:$0xff]
        %v1149 = vld [vmem:[#allocation5 + $0x1958] sm:$0xff]
        %v1150 = vld [vmem:[#allocation5 + $0x1960] sm:$0xff]
        %v1151 = vld [vmem:[#allocation5 + $0x1968] sm:$0xff]
        %v1152 = vld [vmem:[#allocation5 + $0x1970] sm:$0xff]
        %v1153 = vld [vmem:[#allocation5 + $0x1978] sm:$0xff]
        %v1154 = vld [vmem:[#allocation5 + $0x1980] sm:$0xff]
        %v1155 = vld [vmem:[#allocation5 + $0x1988] sm:$0xff]
        %v1156 = vld [vmem:[#allocation5 + $0x1990] sm:$0xff]
        %v1157 = vld [vmem:[#allocation5 + $0x1998] sm:$0xff]
        %v1158 = vld [vmem:[#allocation5 + $0x19a0] sm:$0xff]
        %v1159 = vld [vmem:[#allocation5 + $0x19a8] sm:$0xff]
        %v1160 = vld [vmem:[#allocation5 + $0x19b0] sm:$0xff]
        %v1161 = vld [vmem:[#allocation5 + $0x19b8] sm:$0xff]
        %v1162 = vld [vmem:[#allocation5 + $0x19c0] sm:$0xff]
        %v1163 = vld [vmem:[#allocation5 + $0x19c8] sm:$0xff]
        %v1164 = vld [vmem:[#allocation5 + $0x19d0] sm:$0xff]
        %v1165 = vld [vmem:[#allocation5 + $0x19d8] sm:$0xff]
        %v1166 = vld [vmem:[#allocation5 + $0x19e0] sm:$0xff]
        %v1167 = vld [vmem:[#allocation5 + $0x19e8] sm:$0xff]
        %v1168 = vld [vmem:[#allocation5 + $0x19f0] sm:$0xff]
        %v1169 = vld [vmem:[#allocation5 + $0x19f8] sm:$0xff]
        %v1170 = vld [vmem:[#allocation5 + $0x1a00] sm:$0xff]
        %v1171 = vld [vmem:[#allocation5 + $0x1a08] sm:$0xff]
        %v1172 = vld [vmem:[#allocation5 + $0x1a10] sm:$0xff]
        %v1173 = vld [vmem:[#allocation5 + $0x1a18] sm:$0xff]
        %v1174 = vld [vmem:[#allocation5 + $0x1a20] sm:$0xff]
        %v1175 = vld [vmem:[#allocation5 + $0x1a28] sm:$0xff]
        %v1176 = vld [vmem:[#allocation5 + $0x1a30] sm:$0xff]
        %v1177 = vld [vmem:[#allocation5 + $0x1a38] sm:$0xff]
        %v1178 = vld [vmem:[#allocation5 + $0x1a40] sm:$0xff]
        %v1179 = vld [vmem:[#allocation5 + $0x1a48] sm:$0xff]
        %v1180 = vld [vmem:[#allocation5 + $0x1a50] sm:$0xff]
        %v1181 = vld [vmem:[#allocation5 + $0x1a58] sm:$0xff]
        %v1182 = vld [vmem:[#allocation5 + $0x1a60] sm:$0xff]
        %v1183 = vld [vmem:[#allocation5 + $0x1a68] sm:$0xff]
        %v1184 = vld [vmem:[#allocation5 + $0x1a70] sm:$0xff]
        %v1185 = vld [vmem:[#allocation5 + $0x1a78] sm:$0xff]
        %v1186 = vld [vmem:[#allocation5 + $0x1a80] sm:$0xff]
        %v1187 = vld [vmem:[#allocation5 + $0x1a88] sm:$0xff]
        %v1188 = vld [vmem:[#allocation5 + $0x1a90] sm:$0xff]
        %v1189 = vld [vmem:[#allocation5 + $0x1a98] sm:$0xff]
        %v1190 = vld [vmem:[#allocation5 + $0x1aa0] sm:$0xff]
        %v1191 = vld [vmem:[#allocation5 + $0x1aa8] sm:$0xff]
        %v1192 = vld [vmem:[#allocation5 + $0x1ab0] sm:$0xff]
        %v1193 = vld [vmem:[#allocation5 + $0x1ab8] sm:$0xff]
        %v1194 = vld [vmem:[#allocation5 + $0x1ac0] sm:$0xff]
        %v1195 = vld [vmem:[#allocation5 + $0x1ac8] sm:$0xff]
        %v1196 = vld [vmem:[#allocation5 + $0x1ad0] sm:$0xff]
        %v1197 = vld [vmem:[#allocation5 + $0x1ad8] sm:$0xff]
        %v1198 = vld [vmem:[#allocation5 + $0x1ae0] sm:$0xff]
        %v1199 = vld [vmem:[#allocation5 + $0x1ae8] sm:$0xff]
        %v1200 = vld [vmem:[#allocation5 + $0x1af0] sm:$0xff]
        %v1201 = vld [vmem:[#allocation5 + $0x1af8] sm:$0xff]
        %v1202 = vld [vmem:[#allocation5 + $0x1b00] sm:$0xff]
        %v1203 = vld [vmem:[#allocation5 + $0x1b08] sm:$0xff]
        %v1204 = vld [vmem:[#allocation5 + $0x1b10] sm:$0xff]
        %v1205 = vld [vmem:[#allocation5 + $0x1b18] sm:$0xff]
        %v1206 = vld [vmem:[#allocation5 + $0x1b20] sm:$0xff]
        %v1207 = vld [vmem:[#allocation5 + $0x1b28] sm:$0xff]
        %v1208 = vld [vmem:[#allocation5 + $0x1b30] sm:$0xff]
        %v1209 = vld [vmem:[#allocation5 + $0x1b38] sm:$0xff]
        %v1210 = vld [vmem:[#allocation5 + $0x1b40] sm:$0xff]
        %v1211 = vld [vmem:[#allocation5 + $0x1b48] sm:$0xff]
        %v1212 = vld [vmem:[#allocation5 + $0x1b50] sm:$0xff]
        %v1213 = vld [vmem:[#allocation5 + $0x1b58] sm:$0xff]
        %v1214 = vld [vmem:[#allocation5 + $0x1b60] sm:$0xff]
        %v1215 = vld [vmem:[#allocation5 + $0x1b68] sm:$0xff]
        %v1216 = vld [vmem:[#allocation5 + $0x1b70] sm:$0xff]
        %v1217 = vld [vmem:[#allocation5 + $0x1b78] sm:$0xff]
        %v1218 = vld [vmem:[#allocation5 + $0x1b80] sm:$0xff]
        %v1219 = vld [vmem:[#allocation5 + $0x1b88] sm:$0xff]
        %v1220 = vld [vmem:[#allocation5 + $0x1b90] sm:$0xff]
        %v1221 = vld [vmem:[#allocation5 + $0x1b98] sm:$0xff]
        %v1222 = vld [vmem:[#allocation5 + $0x1ba0] sm:$0xff]
        %v1223 = vld [vmem:[#allocation5 + $0x1ba8] sm:$0xff]
        %v1224 = vld [vmem:[#allocation5 + $0x1bb0] sm:$0xff]
        %v1225 = vld [vmem:[#allocation5 + $0x1bb8] sm:$0xff]
        %v1226 = vld [vmem:[#allocation5 + $0x1bc0] sm:$0xff]
        %v1227 = vld [vmem:[#allocation5 + $0x1bc8] sm:$0xff]
        %v1228 = vld [vmem:[#allocation5 + $0x1bd0] sm:$0xff]
        %v1229 = vld [vmem:[#allocation5 + $0x1bd8] sm:$0xff]
        %v1230 = vld [vmem:[#allocation5 + $0x1be0] sm:$0xff]
        %v1231 = vld [vmem:[#allocation5 + $0x1be8] sm:$0xff]
        %v1232 = vld [vmem:[#allocation5 + $0x1bf0] sm:$0xff]
        %v1233 = vld [vmem:[#allocation5 + $0x1bf8] sm:$0xff]
        %v1234 = vld [vmem:[#allocation5 + $0x1c00] sm:$0xff]
        %v1235 = vld [vmem:[#allocation5 + $0x1c08] sm:$0xff]
        %v1236 = vld [vmem:[#allocation5 + $0x1c10] sm:$0xff]
        %v1237 = vld [vmem:[#allocation5 + $0x1c18] sm:$0xff]
        %v1238 = vld [vmem:[#allocation5 + $0x1c20] sm:$0xff]
        %v1239 = vld [vmem:[#allocation5 + $0x1c28] sm:$0xff]
        %v1240 = vld [vmem:[#allocation5 + $0x1c30] sm:$0xff]
        %v1241 = vld [vmem:[#allocation5 + $0x1c38] sm:$0xff]
        %v1242 = vld [vmem:[#allocation5 + $0x1c40] sm:$0xff]
        %v1243 = vld [vmem:[#allocation5 + $0x1c48] sm:$0xff]
        %v1244 = vld [vmem:[#allocation5 + $0x1c50] sm:$0xff]
        %v1245 = vld [vmem:[#allocation5 + $0x1c58] sm:$0xff]
        %v1246 = vld [vmem:[#allocation5 + $0x1c60] sm:$0xff]
        %v1247 = vld [vmem:[#allocation5 + $0x1c68] sm:$0xff]
        %v1248 = vld [vmem:[#allocation5 + $0x1c70] sm:$0xff]
        %v1249 = vld [vmem:[#allocation5 + $0x1c78] sm:$0xff]
        %v1250 = vld [vmem:[#allocation5 + $0x1c80] sm:$0xff]
        %v1251 = vld [vmem:[#allocation5 + $0x1c88] sm:$0xff]
        %v1252 = vld [vmem:[#allocation5 + $0x1c90] sm:$0xff]
        %v1253 = vld [vmem:[#allocation5 + $0x1c98] sm:$0xff]
        %v1254 = vld [vmem:[#allocation5 + $0x1ca0] sm:$0xff]
        %v1255 = vld [vmem:[#allocation5 + $0x1ca8] sm:$0xff]
        %v1256 = vld [vmem:[#allocation5 + $0x1cb0] sm:$0xff]
        %v1257 = vld [vmem:[#allocation5 + $0x1cb8] sm:$0xff]
        %v1258 = vld [vmem:[#allocation5 + $0x1cc0] sm:$0xff]
        %v1259 = vld [vmem:[#allocation5 + $0x1cc8] sm:$0xff]
        %v1260 = vld [vmem:[#allocation5 + $0x1cd0] sm:$0xff]
        %v1261 = vld [vmem:[#allocation5 + $0x1cd8] sm:$0xff]
        %v1262 = vld [vmem:[#allocation5 + $0x1ce0] sm:$0xff]
        %v1263 = vld [vmem:[#allocation5 + $0x1ce8] sm:$0xff]
        %v1264 = vld [vmem:[#allocation5 + $0x1cf0] sm:$0xff]
        %v1265 = vld [vmem:[#allocation5 + $0x1cf8] sm:$0xff]
        %v1266 = vld [vmem:[#allocation5 + $0x1d00] sm:$0xff]
        %v1267 = vld [vmem:[#allocation5 + $0x1d08] sm:$0xff]
        %v1268 = vld [vmem:[#allocation5 + $0x1d10] sm:$0xff]
        %v1269 = vld [vmem:[#allocation5 + $0x1d18] sm:$0xff]
        %v1270 = vld [vmem:[#allocation5 + $0x1d20] sm:$0xff]
        %v1271 = vld [vmem:[#allocation5 + $0x1d28] sm:$0xff]
        %v1272 = vld [vmem:[#allocation5 + $0x1d30] sm:$0xff]
        %v1273 = vld [vmem:[#allocation5 + $0x1d38] sm:$0xff]
        %v1274 = vld [vmem:[#allocation5 + $0x1d40] sm:$0xff]
        %v1275 = vld [vmem:[#allocation5 + $0x1d48] sm:$0xff]
        %v1276 = vld [vmem:[#allocation5 + $0x1d50] sm:$0xff]
        %v1277 = vld [vmem:[#allocation5 + $0x1d58] sm:$0xff]
        %v1278 = vld [vmem:[#allocation5 + $0x1d60] sm:$0xff]
        %v1279 = vld [vmem:[#allocation5 + $0x1d68] sm:$0xff]
        %v1280 = vld [vmem:[#allocation5 + $0x1d70] sm:$0xff]
        %v1281 = vld [vmem:[#allocation5 + $0x1d78] sm:$0xff]
        %v1282 = vld [vmem:[#allocation5 + $0x1d80] sm:$0xff]
        %v1283 = vld [vmem:[#allocation5 + $0x1d88] sm:$0xff]
        %v1284 = vld [vmem:[#allocation5 + $0x1d90] sm:$0xff]
        %v1285 = vld [vmem:[#allocation5 + $0x1d98] sm:$0xff]
        %v1286 = vld [vmem:[#allocation5 + $0x1da0] sm:$0xff]
        %v1287 = vld [vmem:[#allocation5 + $0x1da8] sm:$0xff]
        %v1288 = vld [vmem:[#allocation5 + $0x1db0] sm:$0xff]
        %v1289 = vld [vmem:[#allocation5 + $0x1db8] sm:$0xff]
        %v1290 = vld [vmem:[#allocation5 + $0x1dc0] sm:$0xff]
        %v1291 = vld [vmem:[#allocation5 + $0x1dc8] sm:$0xff]
        %v1292 = vld [vmem:[#allocation5 + $0x1dd0] sm:$0xff]
        %v1293 = vld [vmem:[#allocation5 + $0x1dd8] sm:$0xff]
        %v1294 = vld [vmem:[#allocation5 + $0x1de0] sm:$0xff]
        %v1295 = vld [vmem:[#allocation5 + $0x1de8] sm:$0xff]
        %v1296 = vld [vmem:[#allocation5 + $0x1df0] sm:$0xff]
        %v1297 = vld [vmem:[#allocation5 + $0x1df8] sm:$0xff]
        %v1298 = vld [vmem:[#allocation5 + $0x1e00] sm:$0xff]
        %v1299 = vld [vmem:[#allocation5 + $0x1e08] sm:$0xff]
        %v1300 = vld [vmem:[#allocation5 + $0x1e10] sm:$0xff]
        %v1301 = vld [vmem:[#allocation5 + $0x1e18] sm:$0xff]
        %v1302 = vld [vmem:[#allocation5 + $0x1e20] sm:$0xff]
        %v1303 = vld [vmem:[#allocation5 + $0x1e28] sm:$0xff]
        %v1304 = vld [vmem:[#allocation5 + $0x1e30] sm:$0xff]
        %v1305 = vld [vmem:[#allocation5 + $0x1e38] sm:$0xff]
        %v1306 = vld [vmem:[#allocation5 + $0x1e40] sm:$0xff]
        %v1307 = vld [vmem:[#allocation5 + $0x1e48] sm:$0xff]
        %v1308 = vld [vmem:[#allocation5 + $0x1e50] sm:$0xff]
        %v1309 = vld [vmem:[#allocation5 + $0x1e58] sm:$0xff]
        %v1310 = vld [vmem:[#allocation5 + $0x1e60] sm:$0xff]
        %v1311 = vld [vmem:[#allocation5 + $0x1e68] sm:$0xff]
        %v1312 = vld [vmem:[#allocation5 + $0x1e70] sm:$0xff]
        %v1313 = vld [vmem:[#allocation5 + $0x1e78] sm:$0xff]
        %v1314 = vld [vmem:[#allocation5 + $0x1e80] sm:$0xff]
        %v1315 = vld [vmem:[#allocation5 + $0x1e88] sm:$0xff]
        %v1316 = vld [vmem:[#allocation5 + $0x1e90] sm:$0xff]
        %v1317 = vld [vmem:[#allocation5 + $0x1e98] sm:$0xff]
        %v1318 = vld [vmem:[#allocation5 + $0x1ea0] sm:$0xff]
        %v1319 = vld [vmem:[#allocation5 + $0x1ea8] sm:$0xff]
        %v1320 = vld [vmem:[#allocation5 + $0x1eb0] sm:$0xff]
        %v1321 = vld [vmem:[#allocation5 + $0x1eb8] sm:$0xff]
        %v1322 = vld [vmem:[#allocation5 + $0x1ec0] sm:$0xff]
        %v1323 = vld [vmem:[#allocation5 + $0x1ec8] sm:$0xff]
        %v1324 = vld [vmem:[#allocation5 + $0x1ed0] sm:$0xff]
        %v1325 = vld [vmem:[#allocation5 + $0x1ed8] sm:$0xff]
        %v1326 = vld [vmem:[#allocation5 + $0x1ee0] sm:$0xff]
        %v1327 = vld [vmem:[#allocation5 + $0x1ee8] sm:$0xff]
        %v1328 = vld [vmem:[#allocation5 + $0x1ef0] sm:$0xff]
        %v1329 = vld [vmem:[#allocation5 + $0x1ef8] sm:$0xff]
        %v1330 = vld [vmem:[#allocation7] sm:$0x3]
        %v1332 = vlaneseq
        %v1333 = vshrl.u32 %v1332, 7
        %v1334 = vsub.s32 0, %v1333
        %v1335 = vrot.slane %v1330, %v1334
        %v1336 = vlaneseq
        %v1337 = vshrl.u32 %v1336, 7
        %v1338 = vsub.s32 1, %v1337
        %v1339 = vrot.slane %v1330, %v1338
        %v2334 = vunpack.c.l.b16 %v338
        %v2335 = vunpack.c.h.b16 %v338
        %v2336 = vunpack.c.l.b16 %v339
        %v2337 = vunpack.c.h.b16 %v339
        %v2338 = vunpack.c.l.b16 %v340
        %v2339 = vunpack.c.h.b16 %v340
        %v2340 = vunpack.c.l.b16 %v341
        %v2341 = vunpack.c.h.b16 %v341
        %v2342 = vunpack.c.l.b16 %v342
        %v2343 = vunpack.c.h.b16 %v342
        %v2344 = vunpack.c.l.b16 %v343
        %v2345 = vunpack.c.h.b16 %v343
        %v2346 = vunpack.c.l.b16 %v344
        %v2347 = vunpack.c.h.b16 %v344
        %v2348 = vunpack.c.l.b16 %v345
        %v2349 = vunpack.c.h.b16 %v345
        %v2350 = vunpack.c.l.b16 %v346
        %v2351 = vunpack.c.h.b16 %v346
        %v2352 = vunpack.c.l.b16 %v347
        %v2353 = vunpack.c.h.b16 %v347
        %v2354 = vunpack.c.l.b16 %v348
        %v2355 = vunpack.c.h.b16 %v348
        %v2356 = vunpack.c.l.b16 %v349
        %v2357 = vunpack.c.h.b16 %v349
        %v2358 = vunpack.c.l.b16 %v350
        %v2359 = vunpack.c.h.b16 %v350
        %v2360 = vunpack.c.l.b16 %v351
        %v2361 = vunpack.c.h.b16 %v351
        %v2362 = vunpack.c.l.b16 %v352
        %v2363 = vunpack.c.h.b16 %v352
        %v2364 = vunpack.c.l.b16 %v353
        %v2365 = vunpack.c.h.b16 %v353
        %v2366 = vunpack.c.l.b16 %v354
        %v2367 = vunpack.c.h.b16 %v354
        %v2368 = vunpack.c.l.b16 %v355
        %v2369 = vunpack.c.h.b16 %v355
        %v2370 = vunpack.c.l.b16 %v356
        %v2371 = vunpack.c.h.b16 %v356
        %v2372 = vunpack.c.l.b16 %v357
        %v2373 = vunpack.c.h.b16 %v357
        %v2374 = vunpack.c.l.b16 %v358
        %v2375 = vunpack.c.h.b16 %v358
        %v2376 = vunpack.c.l.b16 %v359
        %v2377 = vunpack.c.h.b16 %v359
        %v2378 = vunpack.c.l.b16 %v360
        %v2379 = vunpack.c.h.b16 %v360
        %v2380 = vunpack.c.l.b16 %v361
        %v2381 = vunpack.c.h.b16 %v361
        %v2382 = vunpack.c.l.b16 %v362
        %v2383 = vunpack.c.h.b16 %v362
        %v2384 = vunpack.c.l.b16 %v363
        %v2385 = vunpack.c.h.b16 %v363
        %v2386 = vunpack.c.l.b16 %v364
        %v2387 = vunpack.c.h.b16 %v364
        %v2388 = vunpack.c.l.b16 %v365
        %v2389 = vunpack.c.h.b16 %v365
        %v2390 = vunpack.c.l.b16 %v366
        %v2391 = vunpack.c.h.b16 %v366
        %v2392 = vunpack.c.l.b16 %v367
        %v2393 = vunpack.c.h.b16 %v367
        %v2394 = vunpack.c.l.b16 %v368
        %v2395 = vunpack.c.h.b16 %v368
        %v2396 = vunpack.c.l.b16 %v369
        %v2397 = vunpack.c.h.b16 %v369
        %v2398 = vunpack.c.l.b16 %v370
        %v2399 = vunpack.c.h.b16 %v370
        %v2400 = vunpack.c.l.b16 %v371
        %v2401 = vunpack.c.h.b16 %v371
        %v2402 = vunpack.c.l.b16 %v372
        %v2403 = vunpack.c.h.b16 %v372
        %v2404 = vunpack.c.l.b16 %v373
        %v2405 = vunpack.c.h.b16 %v373
        %v2406 = vunpack.c.l.b16 %v374
        %v2407 = vunpack.c.h.b16 %v374
        %v2408 = vunpack.c.l.b16 %v375
        %v2409 = vunpack.c.h.b16 %v375
        %v2410 = vunpack.c.l.b16 %v376
        %v2411 = vunpack.c.h.b16 %v376
        %v2412 = vunpack.c.l.b16 %v377
        %v2413 = vunpack.c.h.b16 %v377
        %v2414 = vunpack.c.l.b16 %v378
        %v2415 = vunpack.c.h.b16 %v378
        %v2416 = vunpack.c.l.b16 %v379
        %v2417 = vunpack.c.h.b16 %v379
        %v2418 = vunpack.c.l.b16 %v380
        %v2419 = vunpack.c.h.b16 %v380
        %v2420 = vunpack.c.l.b16 %v381
        %v2421 = vunpack.c.h.b16 %v381
        %v2422 = vunpack.c.l.b16 %v382
        %v2423 = vunpack.c.h.b16 %v382
        %v2424 = vunpack.c.l.b16 %v383
        %v2425 = vunpack.c.h.b16 %v383
        %v2426 = vunpack.c.l.b16 %v384
        %v2427 = vunpack.c.h.b16 %v384
        %v2428 = vunpack.c.l.b16 %v385
        %v2429 = vunpack.c.h.b16 %v385
        %v2430 = vunpack.c.l.b16 %v386
        %v2431 = vunpack.c.h.b16 %v386
        %v2432 = vunpack.c.l.b16 %v387
        %v2433 = vunpack.c.h.b16 %v387
        %v2434 = vunpack.c.l.b16 %v388
        %v2435 = vunpack.c.h.b16 %v388
        %v2436 = vunpack.c.l.b16 %v389
        %v2437 = vunpack.c.h.b16 %v389
        %v2438 = vunpack.c.l.b16 %v390
        %v2439 = vunpack.c.h.b16 %v390
        %v2440 = vunpack.c.l.b16 %v391
        %v2441 = vunpack.c.h.b16 %v391
        %v2442 = vunpack.c.l.b16 %v392
        %v2443 = vunpack.c.h.b16 %v392
        %v2444 = vunpack.c.l.b16 %v393
        %v2445 = vunpack.c.h.b16 %v393
        %v2446 = vunpack.c.l.b16 %v394
        %v2447 = vunpack.c.h.b16 %v394
        %v2448 = vunpack.c.l.b16 %v395
        %v2449 = vunpack.c.h.b16 %v395
        %v2450 = vunpack.c.l.b16 %v396
        %v2451 = vunpack.c.h.b16 %v396
        %v2452 = vunpack.c.l.b16 %v397
        %v2453 = vunpack.c.h.b16 %v397
        %v2454 = vunpack.c.l.b16 %v398
        %v2455 = vunpack.c.h.b16 %v398
        %v2456 = vunpack.c.l.b16 %v399
        %v2457 = vunpack.c.h.b16 %v399
        %v2458 = vunpack.c.l.b16 %v400
        %v2459 = vunpack.c.h.b16 %v400
        %v2460 = vunpack.c.l.b16 %v401
        %v2461 = vunpack.c.h.b16 %v401
        %v2462 = vunpack.c.l.b16 %v402
        %v2463 = vunpack.c.h.b16 %v402
        %v2464 = vunpack.c.l.b16 %v403
        %v2465 = vunpack.c.h.b16 %v403
        %v2466 = vunpack.c.l.b16 %v404
        %v2467 = vunpack.c.h.b16 %v404
        %v2468 = vunpack.c.l.b16 %v405
        %v2469 = vunpack.c.h.b16 %v405
        %v2470 = vunpack.c.l.b16 %v406
        %v2471 = vunpack.c.h.b16 %v406
        %v2472 = vunpack.c.l.b16 %v407
        %v2473 = vunpack.c.h.b16 %v407
        %v2474 = vunpack.c.l.b16 %v408
        %v2475 = vunpack.c.h.b16 %v408
        %v2476 = vunpack.c.l.b16 %v409
        %v2477 = vunpack.c.h.b16 %v409
        %v2478 = vunpack.c.l.b16 %v410
        %v2479 = vunpack.c.h.b16 %v410
        %v2480 = vunpack.c.l.b16 %v411
        %v2481 = vunpack.c.h.b16 %v411
        %v2482 = vunpack.c.l.b16 %v412
        %v2483 = vunpack.c.h.b16 %v412
        %v2484 = vunpack.c.l.b16 %v413
        %v2485 = vunpack.c.h.b16 %v413
        %v2486 = vunpack.c.l.b16 %v414
        %v2487 = vunpack.c.h.b16 %v414
        %v2488 = vunpack.c.l.b16 %v415
        %v2489 = vunpack.c.h.b16 %v415
        %v2490 = vunpack.c.l.b16 %v416
        %v2491 = vunpack.c.h.b16 %v416
        %v2492 = vunpack.c.l.b16 %v417
        %v2493 = vunpack.c.h.b16 %v417
        %v2494 = vunpack.c.l.b16 %v418
        %v2495 = vunpack.c.h.b16 %v418
        %v2496 = vunpack.c.l.b16 %v419
        %v2497 = vunpack.c.h.b16 %v419
        %v2498 = vunpack.c.l.b16 %v420
        %v2499 = vunpack.c.h.b16 %v420
        %v2500 = vunpack.c.l.b16 %v421
        %v2501 = vunpack.c.h.b16 %v421
        %v2502 = vunpack.c.l.b16 %v422
        %v2503 = vunpack.c.h.b16 %v422
        %v2504 = vunpack.c.l.b16 %v423
        %v2505 = vunpack.c.h.b16 %v423
        %v2506 = vunpack.c.l.b16 %v424
        %v2507 = vunpack.c.h.b16 %v424
        %v2508 = vunpack.c.l.b16 %v425
        %v2509 = vunpack.c.h.b16 %v425
        %v2510 = vunpack.c.l.b16 %v426
        %v2511 = vunpack.c.h.b16 %v426
        %v2512 = vunpack.c.l.b16 %v427
        %v2513 = vunpack.c.h.b16 %v427
        %v2514 = vunpack.c.l.b16 %v428
        %v2515 = vunpack.c.h.b16 %v428
        %v2516 = vunpack.c.l.b16 %v429
        %v2517 = vunpack.c.h.b16 %v429
        %v2518 = vunpack.c.l.b16 %v430
        %v2519 = vunpack.c.h.b16 %v430
        %v2520 = vunpack.c.l.b16 %v431
        %v2521 = vunpack.c.h.b16 %v431
        %v2522 = vunpack.c.l.b16 %v432
        %v2523 = vunpack.c.h.b16 %v432
        %v2524 = vunpack.c.l.b16 %v433
        %v2525 = vunpack.c.h.b16 %v433
        %v2526 = vunpack.c.l.b16 %v434
        %v2527 = vunpack.c.h.b16 %v434
        %v2528 = vunpack.c.l.b16 %v435
        %v2529 = vunpack.c.h.b16 %v435
        %v2530 = vunpack.c.l.b16 %v436
        %v2531 = vunpack.c.h.b16 %v436
        %v2532 = vunpack.c.l.b16 %v437
        %v2533 = vunpack.c.h.b16 %v437
        %v2534 = vunpack.c.l.b16 %v438
        %v2535 = vunpack.c.h.b16 %v438
        %v2536 = vunpack.c.l.b16 %v439
        %v2537 = vunpack.c.h.b16 %v439
        %v2538 = vunpack.c.l.b16 %v440
        %v2539 = vunpack.c.h.b16 %v440
        %v2540 = vunpack.c.l.b16 %v441
        %v2541 = vunpack.c.h.b16 %v441
        %v2542 = vunpack.c.l.b16 %v442
        %v2543 = vunpack.c.h.b16 %v442
        %v2544 = vunpack.c.l.b16 %v443
        %v2545 = vunpack.c.h.b16 %v443
        %v2546 = vunpack.c.l.b16 %v444
        %v2547 = vunpack.c.h.b16 %v444
        %v2548 = vunpack.c.l.b16 %v445
        %v2549 = vunpack.c.h.b16 %v445
        %v2550 = vunpack.c.l.b16 %v446
        %v2551 = vunpack.c.h.b16 %v446
        %v2552 = vunpack.c.l.b16 %v447
        %v2553 = vunpack.c.h.b16 %v447
        %v2554 = vunpack.c.l.b16 %v448
        %v2555 = vunpack.c.h.b16 %v448
        %v2556 = vunpack.c.l.b16 %v449
        %v2557 = vunpack.c.h.b16 %v449
        %v2558 = vunpack.c.l.b16 %v450
        %v2559 = vunpack.c.h.b16 %v450
        %v2560 = vunpack.c.l.b16 %v451
        %v2561 = vunpack.c.h.b16 %v451
        %v2562 = vunpack.c.l.b16 %v452
        %v2563 = vunpack.c.h.b16 %v452
        %v2564 = vunpack.c.l.b16 %v453
        %v2565 = vunpack.c.h.b16 %v453
        %v2566 = vunpack.c.l.b16 %v454
        %v2567 = vunpack.c.h.b16 %v454
        %v2568 = vunpack.c.l.b16 %v455
        %v2569 = vunpack.c.h.b16 %v455
        %v2570 = vunpack.c.l.b16 %v456
        %v2571 = vunpack.c.h.b16 %v456
        %v2572 = vunpack.c.l.b16 %v457
        %v2573 = vunpack.c.h.b16 %v457
        %v2574 = vunpack.c.l.b16 %v458
        %v2575 = vunpack.c.h.b16 %v458
        %v2576 = vunpack.c.l.b16 %v459
        %v2577 = vunpack.c.h.b16 %v459
        %v2578 = vunpack.c.l.b16 %v460
        %v2579 = vunpack.c.h.b16 %v460
        %v2580 = vunpack.c.l.b16 %v461
        %v2581 = vunpack.c.h.b16 %v461
        %v2582 = vunpack.c.l.b16 %v462
        %v2583 = vunpack.c.h.b16 %v462
        %v2584 = vunpack.c.l.b16 %v463
        %v2585 = vunpack.c.h.b16 %v463
        %v2586 = vunpack.c.l.b16 %v464
        %v2587 = vunpack.c.h.b16 %v464
        %v2588 = vunpack.c.l.b16 %v465
        %v2589 = vunpack.c.h.b16 %v465
        %v2590 = vunpack.c.l.b16 %v466
        %v2591 = vunpack.c.h.b16 %v466
        %v2592 = vunpack.c.l.b16 %v467
        %v2593 = vunpack.c.h.b16 %v467
        %v2594 = vunpack.c.l.b16 %v468
        %v2595 = vunpack.c.h.b16 %v468
        %v2596 = vunpack.c.l.b16 %v469
        %v2597 = vunpack.c.h.b16 %v469
        %v2598 = vunpack.c.l.b16 %v470
        %v2599 = vunpack.c.h.b16 %v470
        %v2600 = vunpack.c.l.b16 %v471
        %v2601 = vunpack.c.h.b16 %v471
        %v2602 = vunpack.c.l.b16 %v472
        %v2603 = vunpack.c.h.b16 %v472
        %v2604 = vunpack.c.l.b16 %v473
        %v2605 = vunpack.c.h.b16 %v473
        %v2606 = vunpack.c.l.b16 %v474
        %v2607 = vunpack.c.h.b16 %v474
        %v2608 = vunpack.c.l.b16 %v475
        %v2609 = vunpack.c.h.b16 %v475
        %v2610 = vunpack.c.l.b16 %v476
        %v2611 = vunpack.c.h.b16 %v476
        %v2612 = vunpack.c.l.b16 %v477
        %v2613 = vunpack.c.h.b16 %v477
        %v2614 = vunpack.c.l.b16 %v478
        %v2615 = vunpack.c.h.b16 %v478
        %v2616 = vunpack.c.l.b16 %v479
        %v2617 = vunpack.c.h.b16 %v479
        %v2618 = vunpack.c.l.b16 %v480
        %v2619 = vunpack.c.h.b16 %v480
        %v2620 = vunpack.c.l.b16 %v481
        %v2621 = vunpack.c.h.b16 %v481
        %v2622 = vunpack.c.l.b16 %v482
        %v2623 = vunpack.c.h.b16 %v482
        %v2624 = vunpack.c.l.b16 %v483
        %v2625 = vunpack.c.h.b16 %v483
        %v2626 = vunpack.c.l.b16 %v484
        %v2627 = vunpack.c.h.b16 %v484
        %v2628 = vunpack.c.l.b16 %v485
        %v2629 = vunpack.c.h.b16 %v485
        %v2630 = vunpack.c.l.b16 %v486
        %v2631 = vunpack.c.h.b16 %v486
        %v2632 = vunpack.c.l.b16 %v487
        %v2633 = vunpack.c.h.b16 %v487
        %v2634 = vunpack.c.l.b16 %v488
        %v2635 = vunpack.c.h.b16 %v488
        %v2636 = vunpack.c.l.b16 %v489
        %v2637 = vunpack.c.h.b16 %v489
        %v2638 = vunpack.c.l.b16 %v490
        %v2639 = vunpack.c.h.b16 %v490
        %v2640 = vunpack.c.l.b16 %v491
        %v2641 = vunpack.c.h.b16 %v491
        %v2642 = vunpack.c.l.b16 %v492
        %v2643 = vunpack.c.h.b16 %v492
        %v2644 = vunpack.c.l.b16 %v493
        %v2645 = vunpack.c.h.b16 %v493
        %v2646 = vunpack.c.l.b16 %v494
        %v2647 = vunpack.c.h.b16 %v494
        %v2648 = vunpack.c.l.b16 %v495
        %v2649 = vunpack.c.h.b16 %v495
        %v2650 = vunpack.c.l.b16 %v496
        %v2651 = vunpack.c.h.b16 %v496
        %v2652 = vunpack.c.l.b16 %v497
        %v2653 = vunpack.c.h.b16 %v497
        %v2654 = vunpack.c.l.b16 %v498
        %v2655 = vunpack.c.h.b16 %v498
        %v2656 = vunpack.c.l.b16 %v499
        %v2657 = vunpack.c.h.b16 %v499
        %v2658 = vunpack.c.l.b16 %v500
        %v2659 = vunpack.c.h.b16 %v500
        %v2660 = vunpack.c.l.b16 %v501
        %v2661 = vunpack.c.h.b16 %v501
        %v2662 = vunpack.c.l.b16 %v502
        %v2663 = vunpack.c.h.b16 %v502
        %v2664 = vunpack.c.l.b16 %v503
        %v2665 = vunpack.c.h.b16 %v503
        %v2666 = vunpack.c.l.b16 %v504
        %v2667 = vunpack.c.h.b16 %v504
        %v2668 = vunpack.c.l.b16 %v505
        %v2669 = vunpack.c.h.b16 %v505
        %v2670 = vunpack.c.l.b16 %v506
        %v2671 = vunpack.c.h.b16 %v506
        %v2672 = vunpack.c.l.b16 %v507
        %v2673 = vunpack.c.h.b16 %v507
        %v2674 = vunpack.c.l.b16 %v508
        %v2675 = vunpack.c.h.b16 %v508
        %v2676 = vunpack.c.l.b16 %v509
        %v2677 = vunpack.c.h.b16 %v509
        %v2678 = vunpack.c.l.b16 %v510
        %v2679 = vunpack.c.h.b16 %v510
        %v2680 = vunpack.c.l.b16 %v511
        %v2681 = vunpack.c.h.b16 %v511
        %v2682 = vunpack.c.l.b16 %v512
        %v2683 = vunpack.c.h.b16 %v512
        %v2684 = vunpack.c.l.b16 %v513
        %v2685 = vunpack.c.h.b16 %v513
        %v2686 = vunpack.c.l.b16 %v514
        %v2687 = vunpack.c.h.b16 %v514
        %v2688 = vunpack.c.l.b16 %v515
        %v2689 = vunpack.c.h.b16 %v515
        %v2690 = vunpack.c.l.b16 %v516
        %v2691 = vunpack.c.h.b16 %v516
        %v2692 = vunpack.c.l.b16 %v517
        %v2693 = vunpack.c.h.b16 %v517
        %v2694 = vunpack.c.l.b16 %v518
        %v2695 = vunpack.c.h.b16 %v518
        %v2696 = vunpack.c.l.b16 %v519
        %v2697 = vunpack.c.h.b16 %v519
        %v2698 = vunpack.c.l.b16 %v520
        %v2699 = vunpack.c.h.b16 %v520
        %v2700 = vunpack.c.l.b16 %v521
        %v2701 = vunpack.c.h.b16 %v521
        %v2702 = vunpack.c.l.b16 %v522
        %v2703 = vunpack.c.h.b16 %v522
        %v2704 = vunpack.c.l.b16 %v523
        %v2705 = vunpack.c.h.b16 %v523
        %v2706 = vunpack.c.l.b16 %v524
        %v2707 = vunpack.c.h.b16 %v524
        %v2708 = vunpack.c.l.b16 %v525
        %v2709 = vunpack.c.h.b16 %v525
        %v2710 = vunpack.c.l.b16 %v526
        %v2711 = vunpack.c.h.b16 %v526
        %v2712 = vunpack.c.l.b16 %v527
        %v2713 = vunpack.c.h.b16 %v527
        %v2714 = vunpack.c.l.b16 %v528
        %v2715 = vunpack.c.h.b16 %v528
        %v2716 = vunpack.c.l.b16 %v529
        %v2717 = vunpack.c.h.b16 %v529
        %v2718 = vunpack.c.l.b16 %v530
        %v2719 = vunpack.c.h.b16 %v530
        %v2720 = vunpack.c.l.b16 %v531
        %v2721 = vunpack.c.h.b16 %v531
        %v2722 = vunpack.c.l.b16 %v532
        %v2723 = vunpack.c.h.b16 %v532
        %v2724 = vunpack.c.l.b16 %v533
        %v2725 = vunpack.c.h.b16 %v533
        %v2726 = vunpack.c.l.b16 %v534
        %v2727 = vunpack.c.h.b16 %v534
        %v2728 = vunpack.c.l.b16 %v535
        %v2729 = vunpack.c.h.b16 %v535
        %v2730 = vunpack.c.l.b16 %v536
        %v2731 = vunpack.c.h.b16 %v536
        %v2732 = vunpack.c.l.b16 %v537
        %v2733 = vunpack.c.h.b16 %v537
        %v2734 = vunpack.c.l.b16 %v538
        %v2735 = vunpack.c.h.b16 %v538
        %v2736 = vunpack.c.l.b16 %v539
        %v2737 = vunpack.c.h.b16 %v539
        %v2738 = vunpack.c.l.b16 %v540
        %v2739 = vunpack.c.h.b16 %v540
        %v2740 = vunpack.c.l.b16 %v541
        %v2741 = vunpack.c.h.b16 %v541
        %v2742 = vunpack.c.l.b16 %v542
        %v2743 = vunpack.c.h.b16 %v542
        %v2744 = vunpack.c.l.b16 %v543
        %v2745 = vunpack.c.h.b16 %v543
        %v2746 = vunpack.c.l.b16 %v544
        %v2747 = vunpack.c.h.b16 %v544
        %v2748 = vunpack.c.l.b16 %v545
        %v2749 = vunpack.c.h.b16 %v545
        %v2750 = vunpack.c.l.b16 %v546
        %v2751 = vunpack.c.h.b16 %v546
        %v2752 = vunpack.c.l.b16 %v547
        %v2753 = vunpack.c.h.b16 %v547
        %v2754 = vunpack.c.l.b16 %v548
        %v2755 = vunpack.c.h.b16 %v548
        %v2756 = vunpack.c.l.b16 %v549
        %v2757 = vunpack.c.h.b16 %v549
        %v2758 = vunpack.c.l.b16 %v550
        %v2759 = vunpack.c.h.b16 %v550
        %v2760 = vunpack.c.l.b16 %v551
        %v2761 = vunpack.c.h.b16 %v551
        %v2762 = vunpack.c.l.b16 %v552
        %v2763 = vunpack.c.h.b16 %v552
        %v2764 = vunpack.c.l.b16 %v553
        %v2765 = vunpack.c.h.b16 %v553
        %v2766 = vunpack.c.l.b16 %v554
        %v2767 = vunpack.c.h.b16 %v554
        %v2768 = vunpack.c.l.b16 %v555
        %v2769 = vunpack.c.h.b16 %v555
        %v2770 = vunpack.c.l.b16 %v556
        %v2771 = vunpack.c.h.b16 %v556
        %v2772 = vunpack.c.l.b16 %v557
        %v2773 = vunpack.c.h.b16 %v557
        %v2774 = vunpack.c.l.b16 %v558
        %v2775 = vunpack.c.h.b16 %v558
        %v2776 = vunpack.c.l.b16 %v559
        %v2777 = vunpack.c.h.b16 %v559
        %v2778 = vunpack.c.l.b16 %v560
        %v2779 = vunpack.c.h.b16 %v560
        %v2780 = vunpack.c.l.b16 %v561
        %v2781 = vunpack.c.h.b16 %v561
        %v2782 = vunpack.c.l.b16 %v562
        %v2783 = vunpack.c.h.b16 %v562
        %v2784 = vunpack.c.l.b16 %v563
        %v2785 = vunpack.c.h.b16 %v563
        %v2786 = vunpack.c.l.b16 %v564
        %v2787 = vunpack.c.h.b16 %v564
        %v2788 = vunpack.c.l.b16 %v565
        %v2789 = vunpack.c.h.b16 %v565
        %v2790 = vunpack.c.l.b16 %v566
        %v2791 = vunpack.c.h.b16 %v566
        %v2792 = vunpack.c.l.b16 %v567
        %v2793 = vunpack.c.h.b16 %v567
        %v2794 = vunpack.c.l.b16 %v568
        %v2795 = vunpack.c.h.b16 %v568
        %v2796 = vunpack.c.l.b16 %v569
        %v2797 = vunpack.c.h.b16 %v569
        %v2798 = vunpack.c.l.b16 %v570
        %v2799 = vunpack.c.h.b16 %v570
        %v2800 = vunpack.c.l.b16 %v571
        %v2801 = vunpack.c.h.b16 %v571
        %v2802 = vunpack.c.l.b16 %v572
        %v2803 = vunpack.c.h.b16 %v572
        %v2804 = vunpack.c.l.b16 %v573
        %v2805 = vunpack.c.h.b16 %v573
        %v2806 = vunpack.c.l.b16 %v574
        %v2807 = vunpack.c.h.b16 %v574
        %v2808 = vunpack.c.l.b16 %v575
        %v2809 = vunpack.c.h.b16 %v575
        %v2810 = vunpack.c.l.b16 %v576
        %v2811 = vunpack.c.h.b16 %v576
        %v2812 = vunpack.c.l.b16 %v577
        %v2813 = vunpack.c.h.b16 %v577
        %v2814 = vunpack.c.l.b16 %v578
        %v2815 = vunpack.c.h.b16 %v578
        %v2816 = vunpack.c.l.b16 %v579
        %v2817 = vunpack.c.h.b16 %v579
        %v2818 = vunpack.c.l.b16 %v580
        %v2819 = vunpack.c.h.b16 %v580
        %v2820 = vunpack.c.l.b16 %v581
        %v2821 = vunpack.c.h.b16 %v581
        %v2822 = vunpack.c.l.b16 %v582
        %v2823 = vunpack.c.h.b16 %v582
        %v2824 = vunpack.c.l.b16 %v583
        %v2825 = vunpack.c.h.b16 %v583
        %v2826 = vunpack.c.l.b16 %v584
        %v2827 = vunpack.c.h.b16 %v584
        %v2828 = vunpack.c.l.b16 %v585
        %v2829 = vunpack.c.h.b16 %v585
        %v2830 = vunpack.c.l.b16 %v586
        %v2831 = vunpack.c.h.b16 %v586
        %v2832 = vunpack.c.l.b16 %v587
        %v2833 = vunpack.c.h.b16 %v587
        %v2834 = vunpack.c.l.b16 %v588
        %v2835 = vunpack.c.h.b16 %v588
        %v2836 = vunpack.c.l.b16 %v589
        %v2837 = vunpack.c.h.b16 %v589
        %v2838 = vunpack.c.l.b16 %v590
        %v2839 = vunpack.c.h.b16 %v590
        %v2840 = vunpack.c.l.b16 %v591
        %v2841 = vunpack.c.h.b16 %v591
        %v2842 = vunpack.c.l.b16 %v592
        %v2843 = vunpack.c.h.b16 %v592
        %v2844 = vunpack.c.l.b16 %v593
        %v2845 = vunpack.c.h.b16 %v593
        %v2846 = vunpack.c.l.b16 %v594
        %v2847 = vunpack.c.h.b16 %v594
        %v2848 = vunpack.c.l.b16 %v595
        %v2849 = vunpack.c.h.b16 %v595
        %v2850 = vunpack.c.l.b16 %v596
        %v2851 = vunpack.c.h.b16 %v596
        %v2852 = vunpack.c.l.b16 %v597
        %v2853 = vunpack.c.h.b16 %v597
        %v2854 = vunpack.c.l.b16 %v598
        %v2855 = vunpack.c.h.b16 %v598
        %v2856 = vunpack.c.l.b16 %v599
        %v2857 = vunpack.c.h.b16 %v599
        %v2858 = vunpack.c.l.b16 %v600
        %v2859 = vunpack.c.h.b16 %v600
        %v2860 = vunpack.c.l.b16 %v601
        %v2861 = vunpack.c.h.b16 %v601
        %v2862 = vunpack.c.l.b16 %v602
        %v2863 = vunpack.c.h.b16 %v602
        %v2864 = vunpack.c.l.b16 %v603
        %v2865 = vunpack.c.h.b16 %v603
        %v2866 = vunpack.c.l.b16 %v604
        %v2867 = vunpack.c.h.b16 %v604
        %v2868 = vunpack.c.l.b16 %v605
        %v2869 = vunpack.c.h.b16 %v605
        %v2870 = vunpack.c.l.b16 %v606
        %v2871 = vunpack.c.h.b16 %v606
        %v2872 = vunpack.c.l.b16 %v607
        %v2873 = vunpack.c.h.b16 %v607
        %v2874 = vunpack.c.l.b16 %v608
        %v2875 = vunpack.c.h.b16 %v608
        %v2876 = vunpack.c.l.b16 %v609
        %v2877 = vunpack.c.h.b16 %v609
        %v2878 = vunpack.c.l.b16 %v610
        %v2879 = vunpack.c.h.b16 %v610
        %v2880 = vunpack.c.l.b16 %v611
        %v2881 = vunpack.c.h.b16 %v611
        %v2882 = vunpack.c.l.b16 %v612
        %v2883 = vunpack.c.h.b16 %v612
        %v2884 = vunpack.c.l.b16 %v613
        %v2885 = vunpack.c.h.b16 %v613
        %v2886 = vunpack.c.l.b16 %v614
        %v2887 = vunpack.c.h.b16 %v614
        %v2888 = vunpack.c.l.b16 %v615
        %v2889 = vunpack.c.h.b16 %v615
        %v2890 = vunpack.c.l.b16 %v616
        %v2891 = vunpack.c.h.b16 %v616
        %v2892 = vunpack.c.l.b16 %v617
        %v2893 = vunpack.c.h.b16 %v617
        %v2894 = vunpack.c.l.b16 %v618
        %v2895 = vunpack.c.h.b16 %v618
        %v2896 = vunpack.c.l.b16 %v619
        %v2897 = vunpack.c.h.b16 %v619
        %v2898 = vunpack.c.l.b16 %v620
        %v2899 = vunpack.c.h.b16 %v620
        %v2900 = vunpack.c.l.b16 %v621
        %v2901 = vunpack.c.h.b16 %v621
        %v2902 = vunpack.c.l.b16 %v622
        %v2903 = vunpack.c.h.b16 %v622
        %v2904 = vunpack.c.l.b16 %v623
        %v2905 = vunpack.c.h.b16 %v623
        %v2906 = vunpack.c.l.b16 %v624
        %v2907 = vunpack.c.h.b16 %v624
        %v2908 = vunpack.c.l.b16 %v625
        %v2909 = vunpack.c.h.b16 %v625
        %v2910 = vunpack.c.l.b16 %v626
        %v2911 = vunpack.c.h.b16 %v626
        %v2912 = vunpack.c.l.b16 %v627
        %v2913 = vunpack.c.h.b16 %v627
        %v2914 = vunpack.c.l.b16 %v628
        %v2915 = vunpack.c.h.b16 %v628
        %v2916 = vunpack.c.l.b16 %v629
        %v2917 = vunpack.c.h.b16 %v629
        %v2918 = vunpack.c.l.b16 %v630
        %v2919 = vunpack.c.h.b16 %v630
        %v2920 = vunpack.c.l.b16 %v631
        %v2921 = vunpack.c.h.b16 %v631
        %v2922 = vunpack.c.l.b16 %v632
        %v2923 = vunpack.c.h.b16 %v632
        %v2924 = vunpack.c.l.b16 %v633
        %v2925 = vunpack.c.h.b16 %v633
        %v2926 = vunpack.c.l.b16 %v634
        %v2927 = vunpack.c.h.b16 %v634
        %v2928 = vunpack.c.l.b16 %v635
        %v2929 = vunpack.c.h.b16 %v635
        %v2930 = vunpack.c.l.b16 %v636
        %v2931 = vunpack.c.h.b16 %v636
        %v2932 = vunpack.c.l.b16 %v637
        %v2933 = vunpack.c.h.b16 %v637
        %v2934 = vunpack.c.l.b16 %v638
        %v2935 = vunpack.c.h.b16 %v638
        %v2936 = vunpack.c.l.b16 %v639
        %v2937 = vunpack.c.h.b16 %v639
        %v2938 = vunpack.c.l.b16 %v640
        %v2939 = vunpack.c.h.b16 %v640
        %v2940 = vunpack.c.l.b16 %v641
        %v2941 = vunpack.c.h.b16 %v641
        %v2942 = vunpack.c.l.b16 %v642
        %v2943 = vunpack.c.h.b16 %v642
        %v2944 = vunpack.c.l.b16 %v643
        %v2945 = vunpack.c.h.b16 %v643
        %v2946 = vunpack.c.l.b16 %v644
        %v2947 = vunpack.c.h.b16 %v644
        %v2948 = vunpack.c.l.b16 %v645
        %v2949 = vunpack.c.h.b16 %v645
        %v2950 = vunpack.c.l.b16 %v646
        %v2951 = vunpack.c.h.b16 %v646
        %v2952 = vunpack.c.l.b16 %v647
        %v2953 = vunpack.c.h.b16 %v647
        %v2954 = vunpack.c.l.b16 %v648
        %v2955 = vunpack.c.h.b16 %v648
        %v2956 = vunpack.c.l.b16 %v649
        %v2957 = vunpack.c.h.b16 %v649
        %v2958 = vunpack.c.l.b16 %v650
        %v2959 = vunpack.c.h.b16 %v650
        %v2960 = vunpack.c.l.b16 %v651
        %v2961 = vunpack.c.h.b16 %v651
        %v2962 = vunpack.c.l.b16 %v652
        %v2963 = vunpack.c.h.b16 %v652
        %v2964 = vunpack.c.l.b16 %v653
        %v2965 = vunpack.c.h.b16 %v653
        %v2966 = vunpack.c.l.b16 %v654
        %v2967 = vunpack.c.h.b16 %v654
        %v2968 = vunpack.c.l.b16 %v655
        %v2969 = vunpack.c.h.b16 %v655
        %v2970 = vunpack.c.l.b16 %v656
        %v2971 = vunpack.c.h.b16 %v656
        %v2972 = vunpack.c.l.b16 %v657
        %v2973 = vunpack.c.h.b16 %v657
        %v2974 = vunpack.c.l.b16 %v658
        %v2975 = vunpack.c.h.b16 %v658
        %v2976 = vunpack.c.l.b16 %v659
        %v2977 = vunpack.c.h.b16 %v659
        %v2978 = vunpack.c.l.b16 %v660
        %v2979 = vunpack.c.h.b16 %v660
        %v2980 = vunpack.c.l.b16 %v661
        %v2981 = vunpack.c.h.b16 %v661
        %v2982 = vunpack.c.l.b16 %v662
        %v2983 = vunpack.c.h.b16 %v662
        %v2984 = vunpack.c.l.b16 %v663
        %v2985 = vunpack.c.h.b16 %v663
        %v2986 = vunpack.c.l.b16 %v664
        %v2987 = vunpack.c.h.b16 %v664
        %v2988 = vunpack.c.l.b16 %v665
        %v2989 = vunpack.c.h.b16 %v665
        %v2990 = vunpack.c.l.b16 %v666
        %v2991 = vunpack.c.h.b16 %v666
        %v2992 = vunpack.c.l.b16 %v667
        %v2993 = vunpack.c.h.b16 %v667
        %v2994 = vunpack.c.l.b16 %v668
        %v2995 = vunpack.c.h.b16 %v668
        %v2996 = vunpack.c.l.b16 %v669
        %v2997 = vunpack.c.h.b16 %v669
        %v2998 = vunpack.c.l.b16 %v670
        %v2999 = vunpack.c.h.b16 %v670
        %v3000 = vunpack.c.l.b16 %v671
        %v3001 = vunpack.c.h.b16 %v671
        %v3002 = vunpack.c.l.b16 %v672
        %v3003 = vunpack.c.h.b16 %v672
        %v3004 = vunpack.c.l.b16 %v673
        %v3005 = vunpack.c.h.b16 %v673
        %v3006 = vunpack.c.l.b16 %v674
        %v3007 = vunpack.c.h.b16 %v674
        %v3008 = vunpack.c.l.b16 %v675
        %v3009 = vunpack.c.h.b16 %v675
        %v3010 = vunpack.c.l.b16 %v676
        %v3011 = vunpack.c.h.b16 %v676
        %v3012 = vunpack.c.l.b16 %v677
        %v3013 = vunpack.c.h.b16 %v677
        %v3014 = vunpack.c.l.b16 %v678
        %v3015 = vunpack.c.h.b16 %v678
        %v3016 = vunpack.c.l.b16 %v679
        %v3017 = vunpack.c.h.b16 %v679
        %v3018 = vunpack.c.l.b16 %v680
        %v3019 = vunpack.c.h.b16 %v680
        %v3020 = vunpack.c.l.b16 %v681
        %v3021 = vunpack.c.h.b16 %v681
        %v3022 = vunpack.c.l.b16 %v682
        %v3023 = vunpack.c.h.b16 %v682
        %v3024 = vunpack.c.l.b16 %v683
        %v3025 = vunpack.c.h.b16 %v683
        %v3026 = vunpack.c.l.b16 %v684
        %v3027 = vunpack.c.h.b16 %v684
        %v3028 = vunpack.c.l.b16 %v685
        %v3029 = vunpack.c.h.b16 %v685
        %v3030 = vunpack.c.l.b16 %v686
        %v3031 = vunpack.c.h.b16 %v686
        %v3032 = vunpack.c.l.b16 %v687
        %v3033 = vunpack.c.h.b16 %v687
        %v3034 = vunpack.c.l.b16 %v688
        %v3035 = vunpack.c.h.b16 %v688
        %v3036 = vunpack.c.l.b16 %v689
        %v3037 = vunpack.c.h.b16 %v689
        %v3038 = vunpack.c.l.b16 %v690
        %v3039 = vunpack.c.h.b16 %v690
        %v3040 = vunpack.c.l.b16 %v691
        %v3041 = vunpack.c.h.b16 %v691
        %v3042 = vunpack.c.l.b16 %v692
        %v3043 = vunpack.c.h.b16 %v692
        %v3044 = vunpack.c.l.b16 %v693
        %v3045 = vunpack.c.h.b16 %v693
        %v3046 = vunpack.c.l.b16 %v694
        %v3047 = vunpack.c.h.b16 %v694
        %v3048 = vunpack.c.l.b16 %v695
        %v3049 = vunpack.c.h.b16 %v695
        %v3050 = vunpack.c.l.b16 %v696
        %v3051 = vunpack.c.h.b16 %v696
        %v3052 = vunpack.c.l.b16 %v697
        %v3053 = vunpack.c.h.b16 %v697
        %v3054 = vunpack.c.l.b16 %v698
        %v3055 = vunpack.c.h.b16 %v698
        %v3056 = vunpack.c.l.b16 %v699
        %v3057 = vunpack.c.h.b16 %v699
        %v3058 = vunpack.c.l.b16 %v700
        %v3059 = vunpack.c.h.b16 %v700
        %v3060 = vunpack.c.l.b16 %v701
        %v3061 = vunpack.c.h.b16 %v701
        %v3062 = vunpack.c.l.b16 %v702
        %v3063 = vunpack.c.h.b16 %v702
        %v3064 = vunpack.c.l.b16 %v703
        %v3065 = vunpack.c.h.b16 %v703
        %v3066 = vunpack.c.l.b16 %v704
        %v3067 = vunpack.c.h.b16 %v704
        %v3068 = vunpack.c.l.b16 %v705
        %v3069 = vunpack.c.h.b16 %v705
        %v3070 = vunpack.c.l.b16 %v706
        %v3071 = vunpack.c.h.b16 %v706
        %v3072 = vunpack.c.l.b16 %v707
        %v3073 = vunpack.c.h.b16 %v707
        %v3074 = vunpack.c.l.b16 %v708
        %v3075 = vunpack.c.h.b16 %v708
        %v3076 = vunpack.c.l.b16 %v709
        %v3077 = vunpack.c.h.b16 %v709
        %v3078 = vunpack.c.l.b16 %v710
        %v3079 = vunpack.c.h.b16 %v710
        %v3080 = vunpack.c.l.b16 %v711
        %v3081 = vunpack.c.h.b16 %v711
        %v3082 = vunpack.c.l.b16 %v712
        %v3083 = vunpack.c.h.b16 %v712
        %v3084 = vunpack.c.l.b16 %v713
        %v3085 = vunpack.c.h.b16 %v713
        %v3086 = vunpack.c.l.b16 %v714
        %v3087 = vunpack.c.h.b16 %v714
        %v3088 = vunpack.c.l.b16 %v715
        %v3089 = vunpack.c.h.b16 %v715
        %v3090 = vunpack.c.l.b16 %v716
        %v3091 = vunpack.c.h.b16 %v716
        %v3092 = vunpack.c.l.b16 %v717
        %v3093 = vunpack.c.h.b16 %v717
        %v3094 = vunpack.c.l.b16 %v718
        %v3095 = vunpack.c.h.b16 %v718
        %v3096 = vunpack.c.l.b16 %v719
        %v3097 = vunpack.c.h.b16 %v719
        %v3098 = vunpack.c.l.b16 %v720
        %v3099 = vunpack.c.h.b16 %v720
        %v3100 = vunpack.c.l.b16 %v721
        %v3101 = vunpack.c.h.b16 %v721
        %v3102 = vunpack.c.l.b16 %v722
        %v3103 = vunpack.c.h.b16 %v722
        %v3104 = vunpack.c.l.b16 %v723
        %v3105 = vunpack.c.h.b16 %v723
        %v3106 = vunpack.c.l.b16 %v724
        %v3107 = vunpack.c.h.b16 %v724
        %v3108 = vunpack.c.l.b16 %v725
        %v3109 = vunpack.c.h.b16 %v725
        %v3110 = vunpack.c.l.b16 %v726
        %v3111 = vunpack.c.h.b16 %v726
        %v3112 = vunpack.c.l.b16 %v727
        %v3113 = vunpack.c.h.b16 %v727
        %v3114 = vunpack.c.l.b16 %v728
        %v3115 = vunpack.c.h.b16 %v728
        %v3116 = vunpack.c.l.b16 %v729
        %v3117 = vunpack.c.h.b16 %v729
        %v3118 = vunpack.c.l.b16 %v730
        %v3119 = vunpack.c.h.b16 %v730
        %v3120 = vunpack.c.l.b16 %v731
        %v3121 = vunpack.c.h.b16 %v731
        %v3122 = vunpack.c.l.b16 %v732
        %v3123 = vunpack.c.h.b16 %v732
        %v3124 = vunpack.c.l.b16 %v733
        %v3125 = vunpack.c.h.b16 %v733
        %v3126 = vunpack.c.l.b16 %v734
        %v3127 = vunpack.c.h.b16 %v734
        %v3128 = vunpack.c.l.b16 %v735
        %v3129 = vunpack.c.h.b16 %v735
        %v3130 = vunpack.c.l.b16 %v736
        %v3131 = vunpack.c.h.b16 %v736
        %v3132 = vunpack.c.l.b16 %v737
        %v3133 = vunpack.c.h.b16 %v737
        %v3134 = vunpack.c.l.b16 %v738
        %v3135 = vunpack.c.h.b16 %v738
        %v3136 = vunpack.c.l.b16 %v739
        %v3137 = vunpack.c.h.b16 %v739
        %v3138 = vunpack.c.l.b16 %v740
        %v3139 = vunpack.c.h.b16 %v740
        %v3140 = vunpack.c.l.b16 %v741
        %v3141 = vunpack.c.h.b16 %v741
        %v3142 = vunpack.c.l.b16 %v742
        %v3143 = vunpack.c.h.b16 %v742
        %v3144 = vunpack.c.l.b16 %v743
        %v3145 = vunpack.c.h.b16 %v743
        %v3146 = vunpack.c.l.b16 %v744
        %v3147 = vunpack.c.h.b16 %v744
        %v3148 = vunpack.c.l.b16 %v745
        %v3149 = vunpack.c.h.b16 %v745
        %v3150 = vunpack.c.l.b16 %v746
        %v3151 = vunpack.c.h.b16 %v746
        %v3152 = vunpack.c.l.b16 %v747
        %v3153 = vunpack.c.h.b16 %v747
        %v3154 = vunpack.c.l.b16 %v748
        %v3155 = vunpack.c.h.b16 %v748
        %v3156 = vunpack.c.l.b16 %v749
        %v3157 = vunpack.c.h.b16 %v749
        %v3158 = vunpack.c.l.b16 %v750
        %v3159 = vunpack.c.h.b16 %v750
        %v3160 = vunpack.c.l.b16 %v751
        %v3161 = vunpack.c.h.b16 %v751
        %v3162 = vunpack.c.l.b16 %v752
        %v3163 = vunpack.c.h.b16 %v752
        %v3164 = vunpack.c.l.b16 %v753
        %v3165 = vunpack.c.h.b16 %v753
        %v3166 = vunpack.c.l.b16 %v754
        %v3167 = vunpack.c.h.b16 %v754
        %v3168 = vunpack.c.l.b16 %v755
        %v3169 = vunpack.c.h.b16 %v755
        %v3170 = vunpack.c.l.b16 %v756
        %v3171 = vunpack.c.h.b16 %v756
        %v3172 = vunpack.c.l.b16 %v757
        %v3173 = vunpack.c.h.b16 %v757
        %v3174 = vunpack.c.l.b16 %v758
        %v3175 = vunpack.c.h.b16 %v758
        %v3176 = vunpack.c.l.b16 %v759
        %v3177 = vunpack.c.h.b16 %v759
        %v3178 = vunpack.c.l.b16 %v760
        %v3179 = vunpack.c.h.b16 %v760
        %v3180 = vunpack.c.l.b16 %v761
        %v3181 = vunpack.c.h.b16 %v761
        %v3182 = vunpack.c.l.b16 %v762
        %v3183 = vunpack.c.h.b16 %v762
        %v3184 = vunpack.c.l.b16 %v763
        %v3185 = vunpack.c.h.b16 %v763
        %v3186 = vunpack.c.l.b16 %v764
        %v3187 = vunpack.c.h.b16 %v764
        %v3188 = vunpack.c.l.b16 %v765
        %v3189 = vunpack.c.h.b16 %v765
        %v3190 = vunpack.c.l.b16 %v766
        %v3191 = vunpack.c.h.b16 %v766
        %v3192 = vunpack.c.l.b16 %v767
        %v3193 = vunpack.c.h.b16 %v767
        %v3194 = vunpack.c.l.b16 %v768
        %v3195 = vunpack.c.h.b16 %v768
        %v3196 = vunpack.c.l.b16 %v769
        %v3197 = vunpack.c.h.b16 %v769
        %v3198 = vunpack.c.l.b16 %v770
        %v3199 = vunpack.c.h.b16 %v770
        %v3200 = vunpack.c.l.b16 %v771
        %v3201 = vunpack.c.h.b16 %v771
        %v3202 = vunpack.c.l.b16 %v772
        %v3203 = vunpack.c.h.b16 %v772
        %v3204 = vunpack.c.l.b16 %v773
        %v3205 = vunpack.c.h.b16 %v773
        %v3206 = vunpack.c.l.b16 %v774
        %v3207 = vunpack.c.h.b16 %v774
        %v3208 = vunpack.c.l.b16 %v775
        %v3209 = vunpack.c.h.b16 %v775
        %v3210 = vunpack.c.l.b16 %v776
        %v3211 = vunpack.c.h.b16 %v776
        %v3212 = vunpack.c.l.b16 %v777
        %v3213 = vunpack.c.h.b16 %v777
        %v3214 = vunpack.c.l.b16 %v778
        %v3215 = vunpack.c.h.b16 %v778
        %v3216 = vunpack.c.l.b16 %v779
        %v3217 = vunpack.c.h.b16 %v779
        %v3218 = vunpack.c.l.b16 %v780
        %v3219 = vunpack.c.h.b16 %v780
        %v3220 = vunpack.c.l.b16 %v781
        %v3221 = vunpack.c.h.b16 %v781
        %v3222 = vunpack.c.l.b16 %v782
        %v3223 = vunpack.c.h.b16 %v782
        %v3224 = vunpack.c.l.b16 %v783
        %v3225 = vunpack.c.h.b16 %v783
        %v3226 = vunpack.c.l.b16 %v784
        %v3227 = vunpack.c.h.b16 %v784
        %v3228 = vunpack.c.l.b16 %v785
        %v3229 = vunpack.c.h.b16 %v785
        %v3230 = vunpack.c.l.b16 %v786
        %v3231 = vunpack.c.h.b16 %v786
        %v3232 = vunpack.c.l.b16 %v787
        %v3233 = vunpack.c.h.b16 %v787
        %v3234 = vunpack.c.l.b16 %v788
        %v3235 = vunpack.c.h.b16 %v788
        %v3236 = vunpack.c.l.b16 %v789
        %v3237 = vunpack.c.h.b16 %v789
        %v3238 = vunpack.c.l.b16 %v790
        %v3239 = vunpack.c.h.b16 %v790
        %v3240 = vunpack.c.l.b16 %v791
        %v3241 = vunpack.c.h.b16 %v791
        %v3242 = vunpack.c.l.b16 %v792
        %v3243 = vunpack.c.h.b16 %v792
        %v3244 = vunpack.c.l.b16 %v793
        %v3245 = vunpack.c.h.b16 %v793
        %v3246 = vunpack.c.l.b16 %v794
        %v3247 = vunpack.c.h.b16 %v794
        %v3248 = vunpack.c.l.b16 %v795
        %v3249 = vunpack.c.h.b16 %v795
        %v3250 = vunpack.c.l.b16 %v796
        %v3251 = vunpack.c.h.b16 %v796
        %v3252 = vunpack.c.l.b16 %v797
        %v3253 = vunpack.c.h.b16 %v797
        %v3254 = vunpack.c.l.b16 %v798
        %v3255 = vunpack.c.h.b16 %v798
        %v3256 = vunpack.c.l.b16 %v799
        %v3257 = vunpack.c.h.b16 %v799
        %v3258 = vunpack.c.l.b16 %v800
        %v3259 = vunpack.c.h.b16 %v800
        %v3260 = vunpack.c.l.b16 %v801
        %v3261 = vunpack.c.h.b16 %v801
        %v3262 = vunpack.c.l.b16 %v802
        %v3263 = vunpack.c.h.b16 %v802
        %v3264 = vunpack.c.l.b16 %v803
        %v3265 = vunpack.c.h.b16 %v803
        %v3266 = vunpack.c.l.b16 %v804
        %v3267 = vunpack.c.h.b16 %v804
        %v3268 = vunpack.c.l.b16 %v805
        %v3269 = vunpack.c.h.b16 %v805
        %v3270 = vunpack.c.l.b16 %v806
        %v3271 = vunpack.c.h.b16 %v806
        %v3272 = vunpack.c.l.b16 %v807
        %v3273 = vunpack.c.h.b16 %v807
        %v3274 = vunpack.c.l.b16 %v808
        %v3275 = vunpack.c.h.b16 %v808
        %v3276 = vunpack.c.l.b16 %v809
        %v3277 = vunpack.c.h.b16 %v809
        %v3278 = vunpack.c.l.b16 %v810
        %v3279 = vunpack.c.h.b16 %v810
        %v3280 = vunpack.c.l.b16 %v811
        %v3281 = vunpack.c.h.b16 %v811
        %v3282 = vunpack.c.l.b16 %v812
        %v3283 = vunpack.c.h.b16 %v812
        %v3284 = vunpack.c.l.b16 %v813
        %v3285 = vunpack.c.h.b16 %v813
        %v3286 = vunpack.c.l.b16 %v814
        %v3287 = vunpack.c.h.b16 %v814
        %v3288 = vunpack.c.l.b16 %v815
        %v3289 = vunpack.c.h.b16 %v815
        %v3290 = vunpack.c.l.b16 %v816
        %v3291 = vunpack.c.h.b16 %v816
        %v3292 = vunpack.c.l.b16 %v817
        %v3293 = vunpack.c.h.b16 %v817
        %v3294 = vunpack.c.l.b16 %v818
        %v3295 = vunpack.c.h.b16 %v818
        %v3296 = vunpack.c.l.b16 %v819
        %v3297 = vunpack.c.h.b16 %v819
        %v3298 = vunpack.c.l.b16 %v820
        %v3299 = vunpack.c.h.b16 %v820
        %v3300 = vunpack.c.l.b16 %v821
        %v3301 = vunpack.c.h.b16 %v821
        %v3302 = vunpack.c.l.b16 %v822
        %v3303 = vunpack.c.h.b16 %v822
        %v3304 = vunpack.c.l.b16 %v823
        %v3305 = vunpack.c.h.b16 %v823
        %v3306 = vunpack.c.l.b16 %v824
        %v3307 = vunpack.c.h.b16 %v824
        %v3308 = vunpack.c.l.b16 %v825
        %v3309 = vunpack.c.h.b16 %v825
        %v3310 = vunpack.c.l.b16 %v826
        %v3311 = vunpack.c.h.b16 %v826
        %v3312 = vunpack.c.l.b16 %v827
        %v3313 = vunpack.c.h.b16 %v827
        %v3314 = vunpack.c.l.b16 %v828
        %v3315 = vunpack.c.h.b16 %v828
        %v3316 = vunpack.c.l.b16 %v829
        %v3317 = vunpack.c.h.b16 %v829
        %v3318 = vunpack.c.l.b16 %v830
        %v3319 = vunpack.c.h.b16 %v830
        %v3320 = vunpack.c.l.b16 %v831
        %v3321 = vunpack.c.h.b16 %v831
        %v3322 = vunpack.c.l.b16 %v832
        %v3323 = vunpack.c.h.b16 %v832
        %v3324 = vunpack.c.l.b16 %v833
        %v3325 = vunpack.c.h.b16 %v833
        %v3326 = vunpack.c.l.b16 %v834
        %v3327 = vunpack.c.h.b16 %v834
        %v3328 = vunpack.c.l.b16 %v835
        %v3329 = vunpack.c.h.b16 %v835
        %v3330 = vunpack.c.l.b16 %v836
        %v3331 = vunpack.c.h.b16 %v836
        %v3332 = vunpack.c.l.b16 %v837
        %v3333 = vunpack.c.h.b16 %v837
        %v3334 = vunpack.c.l.b16 %v838
        %v3335 = vunpack.c.h.b16 %v838
        %v3336 = vunpack.c.l.b16 %v839
        %v3337 = vunpack.c.h.b16 %v839
        %v3338 = vunpack.c.l.b16 %v840
        %v3339 = vunpack.c.h.b16 %v840
        %v3340 = vunpack.c.l.b16 %v841
        %v3341 = vunpack.c.h.b16 %v841
        %v3342 = vunpack.c.l.b16 %v842
        %v3343 = vunpack.c.h.b16 %v842
        %v3344 = vunpack.c.l.b16 %v843
        %v3345 = vunpack.c.h.b16 %v843
        %v3346 = vunpack.c.l.b16 %v844
        %v3347 = vunpack.c.h.b16 %v844
        %v3348 = vunpack.c.l.b16 %v845
        %v3349 = vunpack.c.h.b16 %v845
        %v3350 = vunpack.c.l.b16 %v846
        %v3351 = vunpack.c.h.b16 %v846
        %v3352 = vunpack.c.l.b16 %v847
        %v3353 = vunpack.c.h.b16 %v847
        %v3354 = vunpack.c.l.b16 %v848
        %v3355 = vunpack.c.h.b16 %v848
        %v3356 = vunpack.c.l.b16 %v849
        %v3357 = vunpack.c.h.b16 %v849
        %v3358 = vunpack.c.l.b16 %v850
        %v3359 = vunpack.c.h.b16 %v850
        %v3360 = vunpack.c.l.b16 %v851
        %v3361 = vunpack.c.h.b16 %v851
        %v3362 = vunpack.c.l.b16 %v852
        %v3363 = vunpack.c.h.b16 %v852
        %v3364 = vunpack.c.l.b16 %v853
        %v3365 = vunpack.c.h.b16 %v853
        %v3366 = vunpack.c.l.b16 %v854
        %v3367 = vunpack.c.h.b16 %v854
        %v3368 = vunpack.c.l.b16 %v855
        %v3369 = vunpack.c.h.b16 %v855
        %v3370 = vunpack.c.l.b16 %v856
        %v3371 = vunpack.c.h.b16 %v856
        %v3372 = vunpack.c.l.b16 %v857
        %v3373 = vunpack.c.h.b16 %v857
        %v3374 = vunpack.c.l.b16 %v858
        %v3375 = vunpack.c.h.b16 %v858
        %v3376 = vunpack.c.l.b16 %v859
        %v3377 = vunpack.c.h.b16 %v859
        %v3378 = vunpack.c.l.b16 %v860
        %v3379 = vunpack.c.h.b16 %v860
        %v3380 = vunpack.c.l.b16 %v861
        %v3381 = vunpack.c.h.b16 %v861
        %v3382 = vunpack.c.l.b16 %v862
        %v3383 = vunpack.c.h.b16 %v862
        %v3384 = vunpack.c.l.b16 %v863
        %v3385 = vunpack.c.h.b16 %v863
        %v3386 = vunpack.c.l.b16 %v864
        %v3387 = vunpack.c.h.b16 %v864
        %v3388 = vunpack.c.l.b16 %v865
        %v3389 = vunpack.c.h.b16 %v865
        %v3390 = vunpack.c.l.b16 %v866
        %v3391 = vunpack.c.h.b16 %v866
        %v3392 = vunpack.c.l.b16 %v867
        %v3393 = vunpack.c.h.b16 %v867
        %v3394 = vunpack.c.l.b16 %v868
        %v3395 = vunpack.c.h.b16 %v868
        %v3396 = vunpack.c.l.b16 %v869
        %v3397 = vunpack.c.h.b16 %v869
        %v3398 = vunpack.c.l.b16 %v870
        %v3399 = vunpack.c.h.b16 %v870
        %v3400 = vunpack.c.l.b16 %v871
        %v3401 = vunpack.c.h.b16 %v871
        %v3402 = vunpack.c.l.b16 %v872
        %v3403 = vunpack.c.h.b16 %v872
        %v3404 = vunpack.c.l.b16 %v873
        %v3405 = vunpack.c.h.b16 %v873
        %v3406 = vunpack.c.l.b16 %v874
        %v3407 = vunpack.c.h.b16 %v874
        %v3408 = vunpack.c.l.b16 %v875
        %v3409 = vunpack.c.h.b16 %v875
        %v3410 = vunpack.c.l.b16 %v876
        %v3411 = vunpack.c.h.b16 %v876
        %v3412 = vunpack.c.l.b16 %v877
        %v3413 = vunpack.c.h.b16 %v877
        %v3414 = vunpack.c.l.b16 %v878
        %v3415 = vunpack.c.h.b16 %v878
        %v3416 = vunpack.c.l.b16 %v879
        %v3417 = vunpack.c.h.b16 %v879
        %v3418 = vunpack.c.l.b16 %v880
        %v3419 = vunpack.c.h.b16 %v880
        %v3420 = vunpack.c.l.b16 %v881
        %v3421 = vunpack.c.h.b16 %v881
        %v3422 = vunpack.c.l.b16 %v882
        %v3423 = vunpack.c.h.b16 %v882
        %v3424 = vunpack.c.l.b16 %v883
        %v3425 = vunpack.c.h.b16 %v883
        %v3426 = vunpack.c.l.b16 %v884
        %v3427 = vunpack.c.h.b16 %v884
        %v3428 = vunpack.c.l.b16 %v885
        %v3429 = vunpack.c.h.b16 %v885
        %v3430 = vunpack.c.l.b16 %v886
        %v3431 = vunpack.c.h.b16 %v886
        %v3432 = vunpack.c.l.b16 %v887
        %v3433 = vunpack.c.h.b16 %v887
        %v3434 = vunpack.c.l.b16 %v888
        %v3435 = vunpack.c.h.b16 %v888
        %v3436 = vunpack.c.l.b16 %v889
        %v3437 = vunpack.c.h.b16 %v889
        %v3438 = vunpack.c.l.b16 %v890
        %v3439 = vunpack.c.h.b16 %v890
        %v3440 = vunpack.c.l.b16 %v891
        %v3441 = vunpack.c.h.b16 %v891
        %v3442 = vunpack.c.l.b16 %v892
        %v3443 = vunpack.c.h.b16 %v892
        %v3444 = vunpack.c.l.b16 %v893
        %v3445 = vunpack.c.h.b16 %v893
        %v3446 = vunpack.c.l.b16 %v894
        %v3447 = vunpack.c.h.b16 %v894
        %v3448 = vunpack.c.l.b16 %v895
        %v3449 = vunpack.c.h.b16 %v895
        %v3450 = vunpack.c.l.b16 %v896
        %v3451 = vunpack.c.h.b16 %v896
        %v3452 = vunpack.c.l.b16 %v897
        %v3453 = vunpack.c.h.b16 %v897
        %v3454 = vunpack.c.l.b16 %v898
        %v3455 = vunpack.c.h.b16 %v898
        %v3456 = vunpack.c.l.b16 %v899
        %v3457 = vunpack.c.h.b16 %v899
        %v3458 = vunpack.c.l.b16 %v900
        %v3459 = vunpack.c.h.b16 %v900
        %v3460 = vunpack.c.l.b16 %v901
        %v3461 = vunpack.c.h.b16 %v901
        %v3462 = vunpack.c.l.b16 %v902
        %v3463 = vunpack.c.h.b16 %v902
        %v3464 = vunpack.c.l.b16 %v903
        %v3465 = vunpack.c.h.b16 %v903
        %v3466 = vunpack.c.l.b16 %v904
        %v3467 = vunpack.c.h.b16 %v904
        %v3468 = vunpack.c.l.b16 %v905
        %v3469 = vunpack.c.h.b16 %v905
        %v3470 = vunpack.c.l.b16 %v906
        %v3471 = vunpack.c.h.b16 %v906
        %v3472 = vunpack.c.l.b16 %v907
        %v3473 = vunpack.c.h.b16 %v907
        %v3474 = vunpack.c.l.b16 %v908
        %v3475 = vunpack.c.h.b16 %v908
        %v3476 = vunpack.c.l.b16 %v909
        %v3477 = vunpack.c.h.b16 %v909
        %v3478 = vunpack.c.l.b16 %v910
        %v3479 = vunpack.c.h.b16 %v910
        %v3480 = vunpack.c.l.b16 %v911
        %v3481 = vunpack.c.h.b16 %v911
        %v3482 = vunpack.c.l.b16 %v912
        %v3483 = vunpack.c.h.b16 %v912
        %v3484 = vunpack.c.l.b16 %v913
        %v3485 = vunpack.c.h.b16 %v913
        %v3486 = vunpack.c.l.b16 %v914
        %v3487 = vunpack.c.h.b16 %v914
        %v3488 = vunpack.c.l.b16 %v915
        %v3489 = vunpack.c.h.b16 %v915
        %v3490 = vunpack.c.l.b16 %v916
        %v3491 = vunpack.c.h.b16 %v916
        %v3492 = vunpack.c.l.b16 %v917
        %v3493 = vunpack.c.h.b16 %v917
        %v3494 = vunpack.c.l.b16 %v918
        %v3495 = vunpack.c.h.b16 %v918
        %v3496 = vunpack.c.l.b16 %v919
        %v3497 = vunpack.c.h.b16 %v919
        %v3498 = vunpack.c.l.b16 %v920
        %v3499 = vunpack.c.h.b16 %v920
        %v3500 = vunpack.c.l.b16 %v921
        %v3501 = vunpack.c.h.b16 %v921
        %v3502 = vunpack.c.l.b16 %v922
        %v3503 = vunpack.c.h.b16 %v922
        %v3504 = vunpack.c.l.b16 %v923
        %v3505 = vunpack.c.h.b16 %v923
        %v3506 = vunpack.c.l.b16 %v924
        %v3507 = vunpack.c.h.b16 %v924
        %v3508 = vunpack.c.l.b16 %v925
        %v3509 = vunpack.c.h.b16 %v925
        %v3510 = vunpack.c.l.b16 %v926
        %v3511 = vunpack.c.h.b16 %v926
        %v3512 = vunpack.c.l.b16 %v927
        %v3513 = vunpack.c.h.b16 %v927
        %v3514 = vunpack.c.l.b16 %v928
        %v3515 = vunpack.c.h.b16 %v928
        %v3516 = vunpack.c.l.b16 %v929
        %v3517 = vunpack.c.h.b16 %v929
        %v3518 = vunpack.c.l.b16 %v930
        %v3519 = vunpack.c.h.b16 %v930
        %v3520 = vunpack.c.l.b16 %v931
        %v3521 = vunpack.c.h.b16 %v931
        %v3522 = vunpack.c.l.b16 %v932
        %v3523 = vunpack.c.h.b16 %v932
        %v3524 = vunpack.c.l.b16 %v933
        %v3525 = vunpack.c.h.b16 %v933
        %v3526 = vunpack.c.l.b16 %v934
        %v3527 = vunpack.c.h.b16 %v934
        %v3528 = vunpack.c.l.b16 %v935
        %v3529 = vunpack.c.h.b16 %v935
        %v3530 = vunpack.c.l.b16 %v936
        %v3531 = vunpack.c.h.b16 %v936
        %v3532 = vunpack.c.l.b16 %v937
        %v3533 = vunpack.c.h.b16 %v937
        %v3534 = vunpack.c.l.b16 %v938
        %v3535 = vunpack.c.h.b16 %v938
        %v3536 = vunpack.c.l.b16 %v939
        %v3537 = vunpack.c.h.b16 %v939
        %v3538 = vunpack.c.l.b16 %v940
        %v3539 = vunpack.c.h.b16 %v940
        %v3540 = vunpack.c.l.b16 %v941
        %v3541 = vunpack.c.h.b16 %v941
        %v3542 = vunpack.c.l.b16 %v942
        %v3543 = vunpack.c.h.b16 %v942
        %v3544 = vunpack.c.l.b16 %v943
        %v3545 = vunpack.c.h.b16 %v943
        %v3546 = vunpack.c.l.b16 %v944
        %v3547 = vunpack.c.h.b16 %v944
        %v3548 = vunpack.c.l.b16 %v945
        %v3549 = vunpack.c.h.b16 %v945
        %v3550 = vunpack.c.l.b16 %v946
        %v3551 = vunpack.c.h.b16 %v946
        %v3552 = vunpack.c.l.b16 %v947
        %v3553 = vunpack.c.h.b16 %v947
        %v3554 = vunpack.c.l.b16 %v948
        %v3555 = vunpack.c.h.b16 %v948
        %v3556 = vunpack.c.l.b16 %v949
        %v3557 = vunpack.c.h.b16 %v949
        %v3558 = vunpack.c.l.b16 %v950
        %v3559 = vunpack.c.h.b16 %v950
        %v3560 = vunpack.c.l.b16 %v951
        %v3561 = vunpack.c.h.b16 %v951
        %v3562 = vunpack.c.l.b16 %v952
        %v3563 = vunpack.c.h.b16 %v952
        %v3564 = vunpack.c.l.b16 %v953
        %v3565 = vunpack.c.h.b16 %v953
        %v3566 = vunpack.c.l.b16 %v954
        %v3567 = vunpack.c.h.b16 %v954
        %v3568 = vunpack.c.l.b16 %v955
        %v3569 = vunpack.c.h.b16 %v955
        %v3570 = vunpack.c.l.b16 %v956
        %v3571 = vunpack.c.h.b16 %v956
        %v3572 = vunpack.c.l.b16 %v957
        %v3573 = vunpack.c.h.b16 %v957
        %v3574 = vunpack.c.l.b16 %v958
        %v3575 = vunpack.c.h.b16 %v958
        %v3576 = vunpack.c.l.b16 %v959
        %v3577 = vunpack.c.h.b16 %v959
        %v3578 = vunpack.c.l.b16 %v960
        %v3579 = vunpack.c.h.b16 %v960
        %v3580 = vunpack.c.l.b16 %v961
        %v3581 = vunpack.c.h.b16 %v961
        %v3582 = vunpack.c.l.b16 %v962
        %v3583 = vunpack.c.h.b16 %v962
        %v3584 = vunpack.c.l.b16 %v963
        %v3585 = vunpack.c.h.b16 %v963
        %v3586 = vunpack.c.l.b16 %v964
        %v3587 = vunpack.c.h.b16 %v964
        %v3588 = vunpack.c.l.b16 %v965
        %v3589 = vunpack.c.h.b16 %v965
        %v3590 = vunpack.c.l.b16 %v966
        %v3591 = vunpack.c.h.b16 %v966
        %v3592 = vunpack.c.l.b16 %v967
        %v3593 = vunpack.c.h.b16 %v967
        %v3594 = vunpack.c.l.b16 %v968
        %v3595 = vunpack.c.h.b16 %v968
        %v3596 = vunpack.c.l.b16 %v969
        %v3597 = vunpack.c.h.b16 %v969
        %v3598 = vunpack.c.l.b16 %v970
        %v3599 = vunpack.c.h.b16 %v970
        %v3600 = vunpack.c.l.b16 %v971
        %v3601 = vunpack.c.h.b16 %v971
        %v3602 = vunpack.c.l.b16 %v972
        %v3603 = vunpack.c.h.b16 %v972
        %v3604 = vunpack.c.l.b16 %v973
        %v3605 = vunpack.c.h.b16 %v973
        %v3606 = vunpack.c.l.b16 %v974
        %v3607 = vunpack.c.h.b16 %v974
        %v3608 = vunpack.c.l.b16 %v975
        %v3609 = vunpack.c.h.b16 %v975
        %v3610 = vunpack.c.l.b16 %v976
        %v3611 = vunpack.c.h.b16 %v976
        %v3612 = vunpack.c.l.b16 %v977
        %v3613 = vunpack.c.h.b16 %v977
        %v3614 = vunpack.c.l.b16 %v978
        %v3615 = vunpack.c.h.b16 %v978
        %v3616 = vunpack.c.l.b16 %v979
        %v3617 = vunpack.c.h.b16 %v979
        %v3618 = vunpack.c.l.b16 %v980
        %v3619 = vunpack.c.h.b16 %v980
        %v3620 = vunpack.c.l.b16 %v981
        %v3621 = vunpack.c.h.b16 %v981
        %v3622 = vunpack.c.l.b16 %v982
        %v3623 = vunpack.c.h.b16 %v982
        %v3624 = vunpack.c.l.b16 %v983
        %v3625 = vunpack.c.h.b16 %v983
        %v3626 = vunpack.c.l.b16 %v984
        %v3627 = vunpack.c.h.b16 %v984
        %v3628 = vunpack.c.l.b16 %v985
        %v3629 = vunpack.c.h.b16 %v985
        %v3630 = vunpack.c.l.b16 %v986
        %v3631 = vunpack.c.h.b16 %v986
        %v3632 = vunpack.c.l.b16 %v987
        %v3633 = vunpack.c.h.b16 %v987
        %v3634 = vunpack.c.l.b16 %v988
        %v3635 = vunpack.c.h.b16 %v988
        %v3636 = vunpack.c.l.b16 %v989
        %v3637 = vunpack.c.h.b16 %v989
        %v3638 = vunpack.c.l.b16 %v990
        %v3639 = vunpack.c.h.b16 %v990
        %v3640 = vunpack.c.l.b16 %v991
        %v3641 = vunpack.c.h.b16 %v991
        %v3642 = vunpack.c.l.b16 %v992
        %v3643 = vunpack.c.h.b16 %v992
        %v3644 = vunpack.c.l.b16 %v993
        %v3645 = vunpack.c.h.b16 %v993
        %v3646 = vunpack.c.l.b16 %v994
        %v3647 = vunpack.c.h.b16 %v994
        %v3648 = vunpack.c.l.b16 %v995
        %v3649 = vunpack.c.h.b16 %v995
        %v3650 = vunpack.c.l.b16 %v996
        %v3651 = vunpack.c.h.b16 %v996
        %v3652 = vunpack.c.l.b16 %v997
        %v3653 = vunpack.c.h.b16 %v997
        %v3654 = vunpack.c.l.b16 %v998
        %v3655 = vunpack.c.h.b16 %v998
        %v3656 = vunpack.c.l.b16 %v999
        %v3657 = vunpack.c.h.b16 %v999
        %v3658 = vunpack.c.l.b16 %v1000
        %v3659 = vunpack.c.h.b16 %v1000
        %v3660 = vunpack.c.l.b16 %v1001
        %v3661 = vunpack.c.h.b16 %v1001
        %v3662 = vunpack.c.l.b16 %v1002
        %v3663 = vunpack.c.h.b16 %v1002
        %v3664 = vunpack.c.l.b16 %v1003
        %v3665 = vunpack.c.h.b16 %v1003
        %v3666 = vunpack.c.l.b16 %v1004
        %v3667 = vunpack.c.h.b16 %v1004
        %v3668 = vunpack.c.l.b16 %v1005
        %v3669 = vunpack.c.h.b16 %v1005
        %v3670 = vunpack.c.l.b16 %v1006
        %v3671 = vunpack.c.h.b16 %v1006
        %v3672 = vunpack.c.l.b16 %v1007
        %v3673 = vunpack.c.h.b16 %v1007
        %v3674 = vunpack.c.l.b16 %v1008
        %v3675 = vunpack.c.h.b16 %v1008
        %v3676 = vunpack.c.l.b16 %v1009
        %v3677 = vunpack.c.h.b16 %v1009
        %v3678 = vunpack.c.l.b16 %v1010
        %v3679 = vunpack.c.h.b16 %v1010
        %v3680 = vunpack.c.l.b16 %v1011
        %v3681 = vunpack.c.h.b16 %v1011
        %v3682 = vunpack.c.l.b16 %v1012
        %v3683 = vunpack.c.h.b16 %v1012
        %v3684 = vunpack.c.l.b16 %v1013
        %v3685 = vunpack.c.h.b16 %v1013
        %v3686 = vunpack.c.l.b16 %v1014
        %v3687 = vunpack.c.h.b16 %v1014
        %v3688 = vunpack.c.l.b16 %v1015
        %v3689 = vunpack.c.h.b16 %v1015
        %v3690 = vunpack.c.l.b16 %v1016
        %v3691 = vunpack.c.h.b16 %v1016
        %v3692 = vunpack.c.l.b16 %v1017
        %v3693 = vunpack.c.h.b16 %v1017
        %v3694 = vunpack.c.l.b16 %v1018
        %v3695 = vunpack.c.h.b16 %v1018
        %v3696 = vunpack.c.l.b16 %v1019
        %v3697 = vunpack.c.h.b16 %v1019
        %v3698 = vunpack.c.l.b16 %v1020
        %v3699 = vunpack.c.h.b16 %v1020
        %v3700 = vunpack.c.l.b16 %v1021
        %v3701 = vunpack.c.h.b16 %v1021
        %v3702 = vunpack.c.l.b16 %v1022
        %v3703 = vunpack.c.h.b16 %v1022
        %v3704 = vunpack.c.l.b16 %v1023
        %v3705 = vunpack.c.h.b16 %v1023
        %v3706 = vunpack.c.l.b16 %v1024
        %v3707 = vunpack.c.h.b16 %v1024
        %v3708 = vunpack.c.l.b16 %v1025
        %v3709 = vunpack.c.h.b16 %v1025
        %v3710 = vunpack.c.l.b16 %v1026
        %v3711 = vunpack.c.h.b16 %v1026
        %v3712 = vunpack.c.l.b16 %v1027
        %v3713 = vunpack.c.h.b16 %v1027
        %v3714 = vunpack.c.l.b16 %v1028
        %v3715 = vunpack.c.h.b16 %v1028
        %v3716 = vunpack.c.l.b16 %v1029
        %v3717 = vunpack.c.h.b16 %v1029
        %v3718 = vunpack.c.l.b16 %v1030
        %v3719 = vunpack.c.h.b16 %v1030
        %v3720 = vunpack.c.l.b16 %v1031
        %v3721 = vunpack.c.h.b16 %v1031
        %v3722 = vunpack.c.l.b16 %v1032
        %v3723 = vunpack.c.h.b16 %v1032
        %v3724 = vunpack.c.l.b16 %v1033
        %v3725 = vunpack.c.h.b16 %v1033
        %v3726 = vunpack.c.l.b16 %v1034
        %v3727 = vunpack.c.h.b16 %v1034
        %v3728 = vunpack.c.l.b16 %v1035
        %v3729 = vunpack.c.h.b16 %v1035
        %v3730 = vunpack.c.l.b16 %v1036
        %v3731 = vunpack.c.h.b16 %v1036
        %v3732 = vunpack.c.l.b16 %v1037
        %v3733 = vunpack.c.h.b16 %v1037
        %v3734 = vunpack.c.l.b16 %v1038
        %v3735 = vunpack.c.h.b16 %v1038
        %v3736 = vunpack.c.l.b16 %v1039
        %v3737 = vunpack.c.h.b16 %v1039
        %v3738 = vunpack.c.l.b16 %v1040
        %v3739 = vunpack.c.h.b16 %v1040
        %v3740 = vunpack.c.l.b16 %v1041
        %v3741 = vunpack.c.h.b16 %v1041
        %v3742 = vunpack.c.l.b16 %v1042
        %v3743 = vunpack.c.h.b16 %v1042
        %v3744 = vunpack.c.l.b16 %v1043
        %v3745 = vunpack.c.h.b16 %v1043
        %v3746 = vunpack.c.l.b16 %v1044
        %v3747 = vunpack.c.h.b16 %v1044
        %v3748 = vunpack.c.l.b16 %v1045
        %v3749 = vunpack.c.h.b16 %v1045
        %v3750 = vunpack.c.l.b16 %v1046
        %v3751 = vunpack.c.h.b16 %v1046
        %v3752 = vunpack.c.l.b16 %v1047
        %v3753 = vunpack.c.h.b16 %v1047
        %v3754 = vunpack.c.l.b16 %v1048
        %v3755 = vunpack.c.h.b16 %v1048
        %v3756 = vunpack.c.l.b16 %v1049
        %v3757 = vunpack.c.h.b16 %v1049
        %v3758 = vunpack.c.l.b16 %v1050
        %v3759 = vunpack.c.h.b16 %v1050
        %v3760 = vunpack.c.l.b16 %v1051
        %v3761 = vunpack.c.h.b16 %v1051
        %v3762 = vunpack.c.l.b16 %v1052
        %v3763 = vunpack.c.h.b16 %v1052
        %v3764 = vunpack.c.l.b16 %v1053
        %v3765 = vunpack.c.h.b16 %v1053
        %v3766 = vunpack.c.l.b16 %v1054
        %v3767 = vunpack.c.h.b16 %v1054
        %v3768 = vunpack.c.l.b16 %v1055
        %v3769 = vunpack.c.h.b16 %v1055
        %v3770 = vunpack.c.l.b16 %v1056
        %v3771 = vunpack.c.h.b16 %v1056
        %v3772 = vunpack.c.l.b16 %v1057
        %v3773 = vunpack.c.h.b16 %v1057
        %v3774 = vunpack.c.l.b16 %v1058
        %v3775 = vunpack.c.h.b16 %v1058
        %v3776 = vunpack.c.l.b16 %v1059
        %v3777 = vunpack.c.h.b16 %v1059
        %v3778 = vunpack.c.l.b16 %v1060
        %v3779 = vunpack.c.h.b16 %v1060
        %v3780 = vunpack.c.l.b16 %v1061
        %v3781 = vunpack.c.h.b16 %v1061
        %v3782 = vunpack.c.l.b16 %v1062
        %v3783 = vunpack.c.h.b16 %v1062
        %v3784 = vunpack.c.l.b16 %v1063
        %v3785 = vunpack.c.h.b16 %v1063
        %v3786 = vunpack.c.l.b16 %v1064
        %v3787 = vunpack.c.h.b16 %v1064
        %v3788 = vunpack.c.l.b16 %v1065
        %v3789 = vunpack.c.h.b16 %v1065
        %v3790 = vunpack.c.l.b16 %v1066
        %v3791 = vunpack.c.h.b16 %v1066
        %v3792 = vunpack.c.l.b16 %v1067
        %v3793 = vunpack.c.h.b16 %v1067
        %v3794 = vunpack.c.l.b16 %v1068
        %v3795 = vunpack.c.h.b16 %v1068
        %v3796 = vunpack.c.l.b16 %v1069
        %v3797 = vunpack.c.h.b16 %v1069
        %v3798 = vunpack.c.l.b16 %v1070
        %v3799 = vunpack.c.h.b16 %v1070
        %v3800 = vunpack.c.l.b16 %v1071
        %v3801 = vunpack.c.h.b16 %v1071
        %v3802 = vunpack.c.l.b16 %v1072
        %v3803 = vunpack.c.h.b16 %v1072
        %v3804 = vunpack.c.l.b16 %v1073
        %v3805 = vunpack.c.h.b16 %v1073
        %v3806 = vunpack.c.l.b16 %v1074
        %v3807 = vunpack.c.h.b16 %v1074
        %v3808 = vunpack.c.l.b16 %v1075
        %v3809 = vunpack.c.h.b16 %v1075
        %v3810 = vunpack.c.l.b16 %v1076
        %v3811 = vunpack.c.h.b16 %v1076
        %v3812 = vunpack.c.l.b16 %v1077
        %v3813 = vunpack.c.h.b16 %v1077
        %v3814 = vunpack.c.l.b16 %v1078
        %v3815 = vunpack.c.h.b16 %v1078
        %v3816 = vunpack.c.l.b16 %v1079
        %v3817 = vunpack.c.h.b16 %v1079
        %v3818 = vunpack.c.l.b16 %v1080
        %v3819 = vunpack.c.h.b16 %v1080
        %v3820 = vunpack.c.l.b16 %v1081
        %v3821 = vunpack.c.h.b16 %v1081
        %v3822 = vunpack.c.l.b16 %v1082
        %v3823 = vunpack.c.h.b16 %v1082
        %v3824 = vunpack.c.l.b16 %v1083
        %v3825 = vunpack.c.h.b16 %v1083
        %v3826 = vunpack.c.l.b16 %v1084
        %v3827 = vunpack.c.h.b16 %v1084
        %v3828 = vunpack.c.l.b16 %v1085
        %v3829 = vunpack.c.h.b16 %v1085
        %v3830 = vunpack.c.l.b16 %v1086
        %v3831 = vunpack.c.h.b16 %v1086
        %v3832 = vunpack.c.l.b16 %v1087
        %v3833 = vunpack.c.h.b16 %v1087
        %v3834 = vunpack.c.l.b16 %v1088
        %v3835 = vunpack.c.h.b16 %v1088
        %v3836 = vunpack.c.l.b16 %v1089
        %v3837 = vunpack.c.h.b16 %v1089
        %v3838 = vunpack.c.l.b16 %v1090
        %v3839 = vunpack.c.h.b16 %v1090
        %v3840 = vunpack.c.l.b16 %v1091
        %v3841 = vunpack.c.h.b16 %v1091
        %v3842 = vunpack.c.l.b16 %v1092
        %v3843 = vunpack.c.h.b16 %v1092
        %v3844 = vunpack.c.l.b16 %v1093
        %v3845 = vunpack.c.h.b16 %v1093
        %v3846 = vunpack.c.l.b16 %v1094
        %v3847 = vunpack.c.h.b16 %v1094
        %v3848 = vunpack.c.l.b16 %v1095
        %v3849 = vunpack.c.h.b16 %v1095
        %v3850 = vunpack.c.l.b16 %v1096
        %v3851 = vunpack.c.h.b16 %v1096
        %v3852 = vunpack.c.l.b16 %v1097
        %v3853 = vunpack.c.h.b16 %v1097
        %v3854 = vunpack.c.l.b16 %v1098
        %v3855 = vunpack.c.h.b16 %v1098
        %v3856 = vunpack.c.l.b16 %v1099
        %v3857 = vunpack.c.h.b16 %v1099
        %v3858 = vunpack.c.l.b16 %v1100
        %v3859 = vunpack.c.h.b16 %v1100
        %v3860 = vunpack.c.l.b16 %v1101
        %v3861 = vunpack.c.h.b16 %v1101
        %v3862 = vunpack.c.l.b16 %v1102
        %v3863 = vunpack.c.h.b16 %v1102
        %v3864 = vunpack.c.l.b16 %v1103
        %v3865 = vunpack.c.h.b16 %v1103
        %v3866 = vunpack.c.l.b16 %v1104
        %v3867 = vunpack.c.h.b16 %v1104
        %v3868 = vunpack.c.l.b16 %v1105
        %v3869 = vunpack.c.h.b16 %v1105
        %v3870 = vunpack.c.l.b16 %v1106
        %v3871 = vunpack.c.h.b16 %v1106
        %v3872 = vunpack.c.l.b16 %v1107
        %v3873 = vunpack.c.h.b16 %v1107
        %v3874 = vunpack.c.l.b16 %v1108
        %v3875 = vunpack.c.h.b16 %v1108
        %v3876 = vunpack.c.l.b16 %v1109
        %v3877 = vunpack.c.h.b16 %v1109
        %v3878 = vunpack.c.l.b16 %v1110
        %v3879 = vunpack.c.h.b16 %v1110
        %v3880 = vunpack.c.l.b16 %v1111
        %v3881 = vunpack.c.h.b16 %v1111
        %v3882 = vunpack.c.l.b16 %v1112
        %v3883 = vunpack.c.h.b16 %v1112
        %v3884 = vunpack.c.l.b16 %v1113
        %v3885 = vunpack.c.h.b16 %v1113
        %v3886 = vunpack.c.l.b16 %v1114
        %v3887 = vunpack.c.h.b16 %v1114
        %v3888 = vunpack.c.l.b16 %v1115
        %v3889 = vunpack.c.h.b16 %v1115
        %v3890 = vunpack.c.l.b16 %v1116
        %v3891 = vunpack.c.h.b16 %v1116
        %v3892 = vunpack.c.l.b16 %v1117
        %v3893 = vunpack.c.h.b16 %v1117
        %v3894 = vunpack.c.l.b16 %v1118
        %v3895 = vunpack.c.h.b16 %v1118
        %v3896 = vunpack.c.l.b16 %v1119
        %v3897 = vunpack.c.h.b16 %v1119
        %v3898 = vunpack.c.l.b16 %v1120
        %v3899 = vunpack.c.h.b16 %v1120
        %v3900 = vunpack.c.l.b16 %v1121
        %v3901 = vunpack.c.h.b16 %v1121
        %v3902 = vunpack.c.l.b16 %v1122
        %v3903 = vunpack.c.h.b16 %v1122
        %v3904 = vunpack.c.l.b16 %v1123
        %v3905 = vunpack.c.h.b16 %v1123
        %v3906 = vunpack.c.l.b16 %v1124
        %v3907 = vunpack.c.h.b16 %v1124
        %v3908 = vunpack.c.l.b16 %v1125
        %v3909 = vunpack.c.h.b16 %v1125
        %v3910 = vunpack.c.l.b16 %v1126
        %v3911 = vunpack.c.h.b16 %v1126
        %v3912 = vunpack.c.l.b16 %v1127
        %v3913 = vunpack.c.h.b16 %v1127
        %v3914 = vunpack.c.l.b16 %v1128
        %v3915 = vunpack.c.h.b16 %v1128
        %v3916 = vunpack.c.l.b16 %v1129
        %v3917 = vunpack.c.h.b16 %v1129
        %v3918 = vunpack.c.l.b16 %v1130
        %v3919 = vunpack.c.h.b16 %v1130
        %v3920 = vunpack.c.l.b16 %v1131
        %v3921 = vunpack.c.h.b16 %v1131
        %v3922 = vunpack.c.l.b16 %v1132
        %v3923 = vunpack.c.h.b16 %v1132
        %v3924 = vunpack.c.l.b16 %v1133
        %v3925 = vunpack.c.h.b16 %v1133
        %v3926 = vunpack.c.l.b16 %v1134
        %v3927 = vunpack.c.h.b16 %v1134
        %v3928 = vunpack.c.l.b16 %v1135
        %v3929 = vunpack.c.h.b16 %v1135
        %v3930 = vunpack.c.l.b16 %v1136
        %v3931 = vunpack.c.h.b16 %v1136
        %v3932 = vunpack.c.l.b16 %v1137
        %v3933 = vunpack.c.h.b16 %v1137
        %v3934 = vunpack.c.l.b16 %v1138
        %v3935 = vunpack.c.h.b16 %v1138
        %v3936 = vunpack.c.l.b16 %v1139
        %v3937 = vunpack.c.h.b16 %v1139
        %v3938 = vunpack.c.l.b16 %v1140
        %v3939 = vunpack.c.h.b16 %v1140
        %v3940 = vunpack.c.l.b16 %v1141
        %v3941 = vunpack.c.h.b16 %v1141
        %v3942 = vunpack.c.l.b16 %v1142
        %v3943 = vunpack.c.h.b16 %v1142
        %v3944 = vunpack.c.l.b16 %v1143
        %v3945 = vunpack.c.h.b16 %v1143
        %v3946 = vunpack.c.l.b16 %v1144
        %v3947 = vunpack.c.h.b16 %v1144
        %v3948 = vunpack.c.l.b16 %v1145
        %v3949 = vunpack.c.h.b16 %v1145
        %v3950 = vunpack.c.l.b16 %v1146
        %v3951 = vunpack.c.h.b16 %v1146
        %v3952 = vunpack.c.l.b16 %v1147
        %v3953 = vunpack.c.h.b16 %v1147
        %v3954 = vunpack.c.l.b16 %v1148
        %v3955 = vunpack.c.h.b16 %v1148
        %v3956 = vunpack.c.l.b16 %v1149
        %v3957 = vunpack.c.h.b16 %v1149
        %v3958 = vunpack.c.l.b16 %v1150
        %v3959 = vunpack.c.h.b16 %v1150
        %v3960 = vunpack.c.l.b16 %v1151
        %v3961 = vunpack.c.h.b16 %v1151
        %v3962 = vunpack.c.l.b16 %v1152
        %v3963 = vunpack.c.h.b16 %v1152
        %v3964 = vunpack.c.l.b16 %v1153
        %v3965 = vunpack.c.h.b16 %v1153
        %v3966 = vunpack.c.l.b16 %v1154
        %v3967 = vunpack.c.h.b16 %v1154
        %v3968 = vunpack.c.l.b16 %v1155
        %v3969 = vunpack.c.h.b16 %v1155
        %v3970 = vunpack.c.l.b16 %v1156
        %v3971 = vunpack.c.h.b16 %v1156
        %v3972 = vunpack.c.l.b16 %v1157
        %v3973 = vunpack.c.h.b16 %v1157
        %v3974 = vunpack.c.l.b16 %v1158
        %v3975 = vunpack.c.h.b16 %v1158
        %v3976 = vunpack.c.l.b16 %v1159
        %v3977 = vunpack.c.h.b16 %v1159
        %v3978 = vunpack.c.l.b16 %v1160
        %v3979 = vunpack.c.h.b16 %v1160
        %v3980 = vunpack.c.l.b16 %v1161
        %v3981 = vunpack.c.h.b16 %v1161
        %v3982 = vunpack.c.l.b16 %v1162
        %v3983 = vunpack.c.h.b16 %v1162
        %v3984 = vunpack.c.l.b16 %v1163
        %v3985 = vunpack.c.h.b16 %v1163
        %v3986 = vunpack.c.l.b16 %v1164
        %v3987 = vunpack.c.h.b16 %v1164
        %v3988 = vunpack.c.l.b16 %v1165
        %v3989 = vunpack.c.h.b16 %v1165
        %v3990 = vunpack.c.l.b16 %v1166
        %v3991 = vunpack.c.h.b16 %v1166
        %v3992 = vunpack.c.l.b16 %v1167
        %v3993 = vunpack.c.h.b16 %v1167
        %v3994 = vunpack.c.l.b16 %v1168
        %v3995 = vunpack.c.h.b16 %v1168
        %v3996 = vunpack.c.l.b16 %v1169
        %v3997 = vunpack.c.h.b16 %v1169
        %v3998 = vunpack.c.l.b16 %v1170
        %v3999 = vunpack.c.h.b16 %v1170
        %v4000 = vunpack.c.l.b16 %v1171
        %v4001 = vunpack.c.h.b16 %v1171
        %v4002 = vunpack.c.l.b16 %v1172
        %v4003 = vunpack.c.h.b16 %v1172
        %v4004 = vunpack.c.l.b16 %v1173
        %v4005 = vunpack.c.h.b16 %v1173
        %v4006 = vunpack.c.l.b16 %v1174
        %v4007 = vunpack.c.h.b16 %v1174
        %v4008 = vunpack.c.l.b16 %v1175
        %v4009 = vunpack.c.h.b16 %v1175
        %v4010 = vunpack.c.l.b16 %v1176
        %v4011 = vunpack.c.h.b16 %v1176
        %v4012 = vunpack.c.l.b16 %v1177
        %v4013 = vunpack.c.h.b16 %v1177
        %v4014 = vunpack.c.l.b16 %v1178
        %v4015 = vunpack.c.h.b16 %v1178
        %v4016 = vunpack.c.l.b16 %v1179
        %v4017 = vunpack.c.h.b16 %v1179
        %v4018 = vunpack.c.l.b16 %v1180
        %v4019 = vunpack.c.h.b16 %v1180
        %v4020 = vunpack.c.l.b16 %v1181
        %v4021 = vunpack.c.h.b16 %v1181
        %v4022 = vunpack.c.l.b16 %v1182
        %v4023 = vunpack.c.h.b16 %v1182
        %v4024 = vunpack.c.l.b16 %v1183
        %v4025 = vunpack.c.h.b16 %v1183
        %v4026 = vunpack.c.l.b16 %v1184
        %v4027 = vunpack.c.h.b16 %v1184
        %v4028 = vunpack.c.l.b16 %v1185
        %v4029 = vunpack.c.h.b16 %v1185
        %v4030 = vunpack.c.l.b16 %v1186
        %v4031 = vunpack.c.h.b16 %v1186
        %v4032 = vunpack.c.l.b16 %v1187
        %v4033 = vunpack.c.h.b16 %v1187
        %v4034 = vunpack.c.l.b16 %v1188
        %v4035 = vunpack.c.h.b16 %v1188
        %v4036 = vunpack.c.l.b16 %v1189
        %v4037 = vunpack.c.h.b16 %v1189
        %v4038 = vunpack.c.l.b16 %v1190
        %v4039 = vunpack.c.h.b16 %v1190
        %v4040 = vunpack.c.l.b16 %v1191
        %v4041 = vunpack.c.h.b16 %v1191
        %v4042 = vunpack.c.l.b16 %v1192
        %v4043 = vunpack.c.h.b16 %v1192
        %v4044 = vunpack.c.l.b16 %v1193
        %v4045 = vunpack.c.h.b16 %v1193
        %v4046 = vunpack.c.l.b16 %v1194
        %v4047 = vunpack.c.h.b16 %v1194
        %v4048 = vunpack.c.l.b16 %v1195
        %v4049 = vunpack.c.h.b16 %v1195
        %v4050 = vunpack.c.l.b16 %v1196
        %v4051 = vunpack.c.h.b16 %v1196
        %v4052 = vunpack.c.l.b16 %v1197
        %v4053 = vunpack.c.h.b16 %v1197
        %v4054 = vunpack.c.l.b16 %v1198
        %v4055 = vunpack.c.h.b16 %v1198
        %v4056 = vunpack.c.l.b16 %v1199
        %v4057 = vunpack.c.h.b16 %v1199
        %v4058 = vunpack.c.l.b16 %v1200
        %v4059 = vunpack.c.h.b16 %v1200
        %v4060 = vunpack.c.l.b16 %v1201
        %v4061 = vunpack.c.h.b16 %v1201
        %v4062 = vunpack.c.l.b16 %v1202
        %v4063 = vunpack.c.h.b16 %v1202
        %v4064 = vunpack.c.l.b16 %v1203
        %v4065 = vunpack.c.h.b16 %v1203
        %v4066 = vunpack.c.l.b16 %v1204
        %v4067 = vunpack.c.h.b16 %v1204
        %v4068 = vunpack.c.l.b16 %v1205
        %v4069 = vunpack.c.h.b16 %v1205
        %v4070 = vunpack.c.l.b16 %v1206
        %v4071 = vunpack.c.h.b16 %v1206
        %v4072 = vunpack.c.l.b16 %v1207
        %v4073 = vunpack.c.h.b16 %v1207
        %v4074 = vunpack.c.l.b16 %v1208
        %v4075 = vunpack.c.h.b16 %v1208
        %v4076 = vunpack.c.l.b16 %v1209
        %v4077 = vunpack.c.h.b16 %v1209
        %v4078 = vunpack.c.l.b16 %v1210
        %v4079 = vunpack.c.h.b16 %v1210
        %v4080 = vunpack.c.l.b16 %v1211
        %v4081 = vunpack.c.h.b16 %v1211
        %v4082 = vunpack.c.l.b16 %v1212
        %v4083 = vunpack.c.h.b16 %v1212
        %v4084 = vunpack.c.l.b16 %v1213
        %v4085 = vunpack.c.h.b16 %v1213
        %v4086 = vunpack.c.l.b16 %v1214
        %v4087 = vunpack.c.h.b16 %v1214
        %v4088 = vunpack.c.l.b16 %v1215
        %v4089 = vunpack.c.h.b16 %v1215
        %v4090 = vunpack.c.l.b16 %v1216
        %v4091 = vunpack.c.h.b16 %v1216
        %v4092 = vunpack.c.l.b16 %v1217
        %v4093 = vunpack.c.h.b16 %v1217
        %v4094 = vunpack.c.l.b16 %v1218
        %v4095 = vunpack.c.h.b16 %v1218
        %v4096 = vunpack.c.l.b16 %v1219
        %v4097 = vunpack.c.h.b16 %v1219
        %v4098 = vunpack.c.l.b16 %v1220
        %v4099 = vunpack.c.h.b16 %v1220
        %v4100 = vunpack.c.l.b16 %v1221
        %v4101 = vunpack.c.h.b16 %v1221
        %v4102 = vunpack.c.l.b16 %v1222
        %v4103 = vunpack.c.h.b16 %v1222
        %v4104 = vunpack.c.l.b16 %v1223
        %v4105 = vunpack.c.h.b16 %v1223
        %v4106 = vunpack.c.l.b16 %v1224
        %v4107 = vunpack.c.h.b16 %v1224
        %v4108 = vunpack.c.l.b16 %v1225
        %v4109 = vunpack.c.h.b16 %v1225
        %v4110 = vunpack.c.l.b16 %v1226
        %v4111 = vunpack.c.h.b16 %v1226
        %v4112 = vunpack.c.l.b16 %v1227
        %v4113 = vunpack.c.h.b16 %v1227
        %v4114 = vunpack.c.l.b16 %v1228
        %v4115 = vunpack.c.h.b16 %v1228
        %v4116 = vunpack.c.l.b16 %v1229
        %v4117 = vunpack.c.h.b16 %v1229
        %v4118 = vunpack.c.l.b16 %v1230
        %v4119 = vunpack.c.h.b16 %v1230
        %v4120 = vunpack.c.l.b16 %v1231
        %v4121 = vunpack.c.h.b16 %v1231
        %v4122 = vunpack.c.l.b16 %v1232
        %v4123 = vunpack.c.h.b16 %v1232
        %v4124 = vunpack.c.l.b16 %v1233
        %v4125 = vunpack.c.h.b16 %v1233
        %v4126 = vunpack.c.l.b16 %v1234
        %v4127 = vunpack.c.h.b16 %v1234
        %v4128 = vunpack.c.l.b16 %v1235
        %v4129 = vunpack.c.h.b16 %v1235
        %v4130 = vunpack.c.l.b16 %v1236
        %v4131 = vunpack.c.h.b16 %v1236
        %v4132 = vunpack.c.l.b16 %v1237
        %v4133 = vunpack.c.h.b16 %v1237
        %v4134 = vunpack.c.l.b16 %v1238
        %v4135 = vunpack.c.h.b16 %v1238
        %v4136 = vunpack.c.l.b16 %v1239
        %v4137 = vunpack.c.h.b16 %v1239
        %v4138 = vunpack.c.l.b16 %v1240
        %v4139 = vunpack.c.h.b16 %v1240
        %v4140 = vunpack.c.l.b16 %v1241
        %v4141 = vunpack.c.h.b16 %v1241
        %v4142 = vunpack.c.l.b16 %v1242
        %v4143 = vunpack.c.h.b16 %v1242
        %v4144 = vunpack.c.l.b16 %v1243
        %v4145 = vunpack.c.h.b16 %v1243
        %v4146 = vunpack.c.l.b16 %v1244
        %v4147 = vunpack.c.h.b16 %v1244
        %v4148 = vunpack.c.l.b16 %v1245
        %v4149 = vunpack.c.h.b16 %v1245
        %v4150 = vunpack.c.l.b16 %v1246
        %v4151 = vunpack.c.h.b16 %v1246
        %v4152 = vunpack.c.l.b16 %v1247
        %v4153 = vunpack.c.h.b16 %v1247
        %v4154 = vunpack.c.l.b16 %v1248
        %v4155 = vunpack.c.h.b16 %v1248
        %v4156 = vunpack.c.l.b16 %v1249
        %v4157 = vunpack.c.h.b16 %v1249
        %v4158 = vunpack.c.l.b16 %v1250
        %v4159 = vunpack.c.h.b16 %v1250
        %v4160 = vunpack.c.l.b16 %v1251
        %v4161 = vunpack.c.h.b16 %v1251
        %v4162 = vunpack.c.l.b16 %v1252
        %v4163 = vunpack.c.h.b16 %v1252
        %v4164 = vunpack.c.l.b16 %v1253
        %v4165 = vunpack.c.h.b16 %v1253
        %v4166 = vunpack.c.l.b16 %v1254
        %v4167 = vunpack.c.h.b16 %v1254
        %v4168 = vunpack.c.l.b16 %v1255
        %v4169 = vunpack.c.h.b16 %v1255
        %v4170 = vunpack.c.l.b16 %v1256
        %v4171 = vunpack.c.h.b16 %v1256
        %v4172 = vunpack.c.l.b16 %v1257
        %v4173 = vunpack.c.h.b16 %v1257
        %v4174 = vunpack.c.l.b16 %v1258
        %v4175 = vunpack.c.h.b16 %v1258
        %v4176 = vunpack.c.l.b16 %v1259
        %v4177 = vunpack.c.h.b16 %v1259
        %v4178 = vunpack.c.l.b16 %v1260
        %v4179 = vunpack.c.h.b16 %v1260
        %v4180 = vunpack.c.l.b16 %v1261
        %v4181 = vunpack.c.h.b16 %v1261
        %v4182 = vunpack.c.l.b16 %v1262
        %v4183 = vunpack.c.h.b16 %v1262
        %v4184 = vunpack.c.l.b16 %v1263
        %v4185 = vunpack.c.h.b16 %v1263
        %v4186 = vunpack.c.l.b16 %v1264
        %v4187 = vunpack.c.h.b16 %v1264
        %v4188 = vunpack.c.l.b16 %v1265
        %v4189 = vunpack.c.h.b16 %v1265
        %v4190 = vunpack.c.l.b16 %v1266
        %v4191 = vunpack.c.h.b16 %v1266
        %v4192 = vunpack.c.l.b16 %v1267
        %v4193 = vunpack.c.h.b16 %v1267
        %v4194 = vunpack.c.l.b16 %v1268
        %v4195 = vunpack.c.h.b16 %v1268
        %v4196 = vunpack.c.l.b16 %v1269
        %v4197 = vunpack.c.h.b16 %v1269
        %v4198 = vunpack.c.l.b16 %v1270
        %v4199 = vunpack.c.h.b16 %v1270
        %v4200 = vunpack.c.l.b16 %v1271
        %v4201 = vunpack.c.h.b16 %v1271
        %v4202 = vunpack.c.l.b16 %v1272
        %v4203 = vunpack.c.h.b16 %v1272
        %v4204 = vunpack.c.l.b16 %v1273
        %v4205 = vunpack.c.h.b16 %v1273
        %v4206 = vunpack.c.l.b16 %v1274
        %v4207 = vunpack.c.h.b16 %v1274
        %v4208 = vunpack.c.l.b16 %v1275
        %v4209 = vunpack.c.h.b16 %v1275
        %v4210 = vunpack.c.l.b16 %v1276
        %v4211 = vunpack.c.h.b16 %v1276
        %v4212 = vunpack.c.l.b16 %v1277
        %v4213 = vunpack.c.h.b16 %v1277
        %v4214 = vunpack.c.l.b16 %v1278
        %v4215 = vunpack.c.h.b16 %v1278
        %v4216 = vunpack.c.l.b16 %v1279
        %v4217 = vunpack.c.h.b16 %v1279
        %v4218 = vunpack.c.l.b16 %v1280
        %v4219 = vunpack.c.h.b16 %v1280
        %v4220 = vunpack.c.l.b16 %v1281
        %v4221 = vunpack.c.h.b16 %v1281
        %v4222 = vunpack.c.l.b16 %v1282
        %v4223 = vunpack.c.h.b16 %v1282
        %v4224 = vunpack.c.l.b16 %v1283
        %v4225 = vunpack.c.h.b16 %v1283
        %v4226 = vunpack.c.l.b16 %v1284
        %v4227 = vunpack.c.h.b16 %v1284
        %v4228 = vunpack.c.l.b16 %v1285
        %v4229 = vunpack.c.h.b16 %v1285
        %v4230 = vunpack.c.l.b16 %v1286
        %v4231 = vunpack.c.h.b16 %v1286
        %v4232 = vunpack.c.l.b16 %v1287
        %v4233 = vunpack.c.h.b16 %v1287
        %v4234 = vunpack.c.l.b16 %v1288
        %v4235 = vunpack.c.h.b16 %v1288
        %v4236 = vunpack.c.l.b16 %v1289
        %v4237 = vunpack.c.h.b16 %v1289
        %v4238 = vunpack.c.l.b16 %v1290
        %v4239 = vunpack.c.h.b16 %v1290
        %v4240 = vunpack.c.l.b16 %v1291
        %v4241 = vunpack.c.h.b16 %v1291
        %v4242 = vunpack.c.l.b16 %v1292
        %v4243 = vunpack.c.h.b16 %v1292
        %v4244 = vunpack.c.l.b16 %v1293
        %v4245 = vunpack.c.h.b16 %v1293
        %v4246 = vunpack.c.l.b16 %v1294
        %v4247 = vunpack.c.h.b16 %v1294
        %v4248 = vunpack.c.l.b16 %v1295
        %v4249 = vunpack.c.h.b16 %v1295
        %v4250 = vunpack.c.l.b16 %v1296
        %v4251 = vunpack.c.h.b16 %v1296
        %v4252 = vunpack.c.l.b16 %v1297
        %v4253 = vunpack.c.h.b16 %v1297
        %v4254 = vunpack.c.l.b16 %v1298
        %v4255 = vunpack.c.h.b16 %v1298
        %v4256 = vunpack.c.l.b16 %v1299
        %v4257 = vunpack.c.h.b16 %v1299
        %v4258 = vunpack.c.l.b16 %v1300
        %v4259 = vunpack.c.h.b16 %v1300
        %v4260 = vunpack.c.l.b16 %v1301
        %v4261 = vunpack.c.h.b16 %v1301
        %v4262 = vunpack.c.l.b16 %v1302
        %v4263 = vunpack.c.h.b16 %v1302
        %v4264 = vunpack.c.l.b16 %v1303
        %v4265 = vunpack.c.h.b16 %v1303
        %v4266 = vunpack.c.l.b16 %v1304
        %v4267 = vunpack.c.h.b16 %v1304
        %v4268 = vunpack.c.l.b16 %v1305
        %v4269 = vunpack.c.h.b16 %v1305
        %v4270 = vunpack.c.l.b16 %v1306
        %v4271 = vunpack.c.h.b16 %v1306
        %v4272 = vunpack.c.l.b16 %v1307
        %v4273 = vunpack.c.h.b16 %v1307
        %v4274 = vunpack.c.l.b16 %v1308
        %v4275 = vunpack.c.h.b16 %v1308
        %v4276 = vunpack.c.l.b16 %v1309
        %v4277 = vunpack.c.h.b16 %v1309
        %v4278 = vunpack.c.l.b16 %v1310
        %v4279 = vunpack.c.h.b16 %v1310
        %v4280 = vunpack.c.l.b16 %v1311
        %v4281 = vunpack.c.h.b16 %v1311
        %v4282 = vunpack.c.l.b16 %v1312
        %v4283 = vunpack.c.h.b16 %v1312
        %v4284 = vunpack.c.l.b16 %v1313
        %v4285 = vunpack.c.h.b16 %v1313
        %v4286 = vunpack.c.l.b16 %v1314
        %v4287 = vunpack.c.h.b16 %v1314
        %v4288 = vunpack.c.l.b16 %v1315
        %v4289 = vunpack.c.h.b16 %v1315
        %v4290 = vunpack.c.l.b16 %v1316
        %v4291 = vunpack.c.h.b16 %v1316
        %v4292 = vunpack.c.l.b16 %v1317
        %v4293 = vunpack.c.h.b16 %v1317
        %v4294 = vunpack.c.l.b16 %v1318
        %v4295 = vunpack.c.h.b16 %v1318
        %v4296 = vunpack.c.l.b16 %v1319
        %v4297 = vunpack.c.h.b16 %v1319
        %v4298 = vunpack.c.l.b16 %v1320
        %v4299 = vunpack.c.h.b16 %v1320
        %v4300 = vunpack.c.l.b16 %v1321
        %v4301 = vunpack.c.h.b16 %v1321
        %v4302 = vunpack.c.l.b16 %v1322
        %v4303 = vunpack.c.h.b16 %v1322
        %v4304 = vunpack.c.l.b16 %v1323
        %v4305 = vunpack.c.h.b16 %v1323
        %v4306 = vunpack.c.l.b16 %v1324
        %v4307 = vunpack.c.h.b16 %v1324
        %v4308 = vunpack.c.l.b16 %v1325
        %v4309 = vunpack.c.h.b16 %v1325
        %v4310 = vunpack.c.l.b16 %v1326
        %v4311 = vunpack.c.h.b16 %v1326
        %v4312 = vunpack.c.l.b16 %v1327
        %v4313 = vunpack.c.h.b16 %v1327
        %v4314 = vunpack.c.l.b16 %v1328
        %v4315 = vunpack.c.h.b16 %v1328
        %v4316 = vunpack.c.l.b16 %v1329
        %v4317 = vunpack.c.h.b16 %v1329
        %v4318 = vpack.c.b16 %v2336, %v2334
        %v4319 = vpack.c.b16 %v2337, %v2335
        %v4320 = vpack.c.b16 %v2340, %v2338
        %v4321 = vpack.c.b16 %v2341, %v2339
        %v4322 = vpack.c.b16 %v2344, %v2342
        %v4323 = vpack.c.b16 %v2345, %v2343
        %v4324 = vpack.c.b16 %v2348, %v2346
        %v4325 = vpack.c.b16 %v2349, %v2347
        %v4326 = vpack.c.b16 %v2352, %v2350
        %v4327 = vpack.c.b16 %v2353, %v2351
        %v4328 = vpack.c.b16 %v2356, %v2354
        %v4329 = vpack.c.b16 %v2357, %v2355
        %v4330 = vpack.c.b16 %v2360, %v2358
        %v4331 = vpack.c.b16 %v2361, %v2359
        %v4332 = vpack.c.b16 %v2364, %v2362
        %v4333 = vpack.c.b16 %v2365, %v2363
        %v4334 = vpack.c.b16 %v2368, %v2366
        %v4335 = vpack.c.b16 %v2369, %v2367
        %v4336 = vpack.c.b16 %v2372, %v2370
        %v4337 = vpack.c.b16 %v2373, %v2371
        %v4338 = vpack.c.b16 %v2376, %v2374
        %v4339 = vpack.c.b16 %v2377, %v2375
        %v4340 = vpack.c.b16 %v2380, %v2378
        %v4341 = vpack.c.b16 %v2381, %v2379
        %v4342 = vpack.c.b16 %v2384, %v2382
        %v4343 = vpack.c.b16 %v2385, %v2383
        %v4344 = vpack.c.b16 %v2388, %v2386
        %v4345 = vpack.c.b16 %v2389, %v2387
        %v4346 = vpack.c.b16 %v2392, %v2390
        %v4347 = vpack.c.b16 %v2393, %v2391
        %v4348 = vpack.c.b16 %v2396, %v2394
        %v4349 = vpack.c.b16 %v2397, %v2395
        %v4350 = vpack.c.b16 %v2400, %v2398
        %v4351 = vpack.c.b16 %v2401, %v2399
        %v4352 = vpack.c.b16 %v2404, %v2402
        %v4353 = vpack.c.b16 %v2405, %v2403
        %v4354 = vpack.c.b16 %v2408, %v2406
        %v4355 = vpack.c.b16 %v2409, %v2407
        %v4356 = vpack.c.b16 %v2412, %v2410
        %v4357 = vpack.c.b16 %v2413, %v2411
        %v4358 = vpack.c.b16 %v2416, %v2414
        %v4359 = vpack.c.b16 %v2417, %v2415
        %v4360 = vpack.c.b16 %v2420, %v2418
        %v4361 = vpack.c.b16 %v2421, %v2419
        %v4362 = vpack.c.b16 %v2424, %v2422
        %v4363 = vpack.c.b16 %v2425, %v2423
        %v4364 = vpack.c.b16 %v2428, %v2426
        %v4365 = vpack.c.b16 %v2429, %v2427
        %v4366 = vpack.c.b16 %v2432, %v2430
        %v4367 = vpack.c.b16 %v2433, %v2431
        %v4368 = vpack.c.b16 %v2436, %v2434
        %v4369 = vpack.c.b16 %v2437, %v2435
        %v4370 = vpack.c.b16 %v2440, %v2438
        %v4371 = vpack.c.b16 %v2441, %v2439
        %v4372 = vpack.c.b16 %v2444, %v2442
        %v4373 = vpack.c.b16 %v2445, %v2443
        %v4374 = vpack.c.b16 %v2448, %v2446
        %v4375 = vpack.c.b16 %v2449, %v2447
        %v4376 = vpack.c.b16 %v2452, %v2450
        %v4377 = vpack.c.b16 %v2453, %v2451
        %v4378 = vpack.c.b16 %v2456, %v2454
        %v4379 = vpack.c.b16 %v2457, %v2455
        %v4380 = vpack.c.b16 %v2460, %v2458
        %v4381 = vpack.c.b16 %v2461, %v2459
        %v4382 = vpack.c.b16 %v2464, %v2462
        %v4383 = vpack.c.b16 %v2465, %v2463
        %v4384 = vpack.c.b16 %v2468, %v2466
        %v4385 = vpack.c.b16 %v2469, %v2467
        %v4386 = vpack.c.b16 %v2472, %v2470
        %v4387 = vpack.c.b16 %v2473, %v2471
        %v4388 = vpack.c.b16 %v2476, %v2474
        %v4389 = vpack.c.b16 %v2477, %v2475
        %v4390 = vpack.c.b16 %v2480, %v2478
        %v4391 = vpack.c.b16 %v2481, %v2479
        %v4392 = vpack.c.b16 %v2484, %v2482
        %v4393 = vpack.c.b16 %v2485, %v2483
        %v4394 = vpack.c.b16 %v2488, %v2486
        %v4395 = vpack.c.b16 %v2489, %v2487
        %v4396 = vpack.c.b16 %v2492, %v2490
        %v4397 = vpack.c.b16 %v2493, %v2491
        %v4398 = vpack.c.b16 %v2496, %v2494
        %v4399 = vpack.c.b16 %v2497, %v2495
        %v4400 = vpack.c.b16 %v2500, %v2498
        %v4401 = vpack.c.b16 %v2501, %v2499
        %v4402 = vpack.c.b16 %v2504, %v2502
        %v4403 = vpack.c.b16 %v2505, %v2503
        %v4404 = vpack.c.b16 %v2508, %v2506
        %v4405 = vpack.c.b16 %v2509, %v2507
        %v4406 = vpack.c.b16 %v2512, %v2510
        %v4407 = vpack.c.b16 %v2513, %v2511
        %v4408 = vpack.c.b16 %v2516, %v2514
        %v4409 = vpack.c.b16 %v2517, %v2515
        %v4410 = vpack.c.b16 %v2520, %v2518
        %v4411 = vpack.c.b16 %v2521, %v2519
        %v4412 = vpack.c.b16 %v2524, %v2522
        %v4413 = vpack.c.b16 %v2525, %v2523
        %v4414 = vpack.c.b16 %v2528, %v2526
        %v4415 = vpack.c.b16 %v2529, %v2527
        %v4416 = vpack.c.b16 %v2532, %v2530
        %v4417 = vpack.c.b16 %v2533, %v2531
        %v4418 = vpack.c.b16 %v2536, %v2534
        %v4419 = vpack.c.b16 %v2537, %v2535
        %v4420 = vpack.c.b16 %v2540, %v2538
        %v4421 = vpack.c.b16 %v2541, %v2539
        %v4422 = vpack.c.b16 %v2544, %v2542
        %v4423 = vpack.c.b16 %v2545, %v2543
        %v4424 = vpack.c.b16 %v2548, %v2546
        %v4425 = vpack.c.b16 %v2549, %v2547
        %v4426 = vpack.c.b16 %v2552, %v2550
        %v4427 = vpack.c.b16 %v2553, %v2551
        %v4428 = vpack.c.b16 %v2556, %v2554
        %v4429 = vpack.c.b16 %v2557, %v2555
        %v4430 = vpack.c.b16 %v2560, %v2558
        %v4431 = vpack.c.b16 %v2561, %v2559
        %v4432 = vpack.c.b16 %v2564, %v2562
        %v4433 = vpack.c.b16 %v2565, %v2563
        %v4434 = vpack.c.b16 %v2568, %v2566
        %v4435 = vpack.c.b16 %v2569, %v2567
        %v4436 = vpack.c.b16 %v2572, %v2570
        %v4437 = vpack.c.b16 %v2573, %v2571
        %v4438 = vpack.c.b16 %v2576, %v2574
        %v4439 = vpack.c.b16 %v2577, %v2575
        %v4440 = vpack.c.b16 %v2580, %v2578
        %v4441 = vpack.c.b16 %v2581, %v2579
        %v4442 = vpack.c.b16 %v2584, %v2582
        %v4443 = vpack.c.b16 %v2585, %v2583
        %v4444 = vpack.c.b16 %v2588, %v2586
        %v4445 = vpack.c.b16 %v2589, %v2587
        %v4446 = vpack.c.b16 %v2592, %v2590
        %v4447 = vpack.c.b16 %v2593, %v2591
        %v4448 = vpack.c.b16 %v2596, %v2594
        %v4449 = vpack.c.b16 %v2597, %v2595
        %v4450 = vpack.c.b16 %v2600, %v2598
        %v4451 = vpack.c.b16 %v2601, %v2599
        %v4452 = vpack.c.b16 %v2604, %v2602
        %v4453 = vpack.c.b16 %v2605, %v2603
        %v4454 = vpack.c.b16 %v2608, %v2606
        %v4455 = vpack.c.b16 %v2609, %v2607
        %v4456 = vpack.c.b16 %v2612, %v2610
        %v4457 = vpack.c.b16 %v2613, %v2611
        %v4458 = vpack.c.b16 %v2616, %v2614
        %v4459 = vpack.c.b16 %v2617, %v2615
        %v4460 = vpack.c.b16 %v2620, %v2618
        %v4461 = vpack.c.b16 %v2621, %v2619
        %v4462 = vpack.c.b16 %v2624, %v2622
        %v4463 = vpack.c.b16 %v2625, %v2623
        %v4464 = vpack.c.b16 %v2628, %v2626
        %v4465 = vpack.c.b16 %v2629, %v2627
        %v4466 = vpack.c.b16 %v2632, %v2630
        %v4467 = vpack.c.b16 %v2633, %v2631
        %v4468 = vpack.c.b16 %v2636, %v2634
        %v4469 = vpack.c.b16 %v2637, %v2635
        %v4470 = vpack.c.b16 %v2640, %v2638
        %v4471 = vpack.c.b16 %v2641, %v2639
        %v4472 = vpack.c.b16 %v2644, %v2642
        %v4473 = vpack.c.b16 %v2645, %v2643
        %v4474 = vpack.c.b16 %v2648, %v2646
        %v4475 = vpack.c.b16 %v2649, %v2647
        %v4476 = vpack.c.b16 %v2652, %v2650
        %v4477 = vpack.c.b16 %v2653, %v2651
        %v4478 = vpack.c.b16 %v2656, %v2654
        %v4479 = vpack.c.b16 %v2657, %v2655
        %v4480 = vpack.c.b16 %v2660, %v2658
        %v4481 = vpack.c.b16 %v2661, %v2659
        %v4482 = vpack.c.b16 %v2664, %v2662
        %v4483 = vpack.c.b16 %v2665, %v2663
        %v4484 = vpack.c.b16 %v2668, %v2666
        %v4485 = vpack.c.b16 %v2669, %v2667
        %v4486 = vpack.c.b16 %v2672, %v2670
        %v4487 = vpack.c.b16 %v2673, %v2671
        %v4488 = vpack.c.b16 %v2676, %v2674
        %v4489 = vpack.c.b16 %v2677, %v2675
        %v4490 = vpack.c.b16 %v2680, %v2678
        %v4491 = vpack.c.b16 %v2681, %v2679
        %v4492 = vpack.c.b16 %v2684, %v2682
        %v4493 = vpack.c.b16 %v2685, %v2683
        %v4494 = vpack.c.b16 %v2688, %v2686
        %v4495 = vpack.c.b16 %v2689, %v2687
        %v4496 = vpack.c.b16 %v2692, %v2690
        %v4497 = vpack.c.b16 %v2693, %v2691
        %v4498 = vpack.c.b16 %v2696, %v2694
        %v4499 = vpack.c.b16 %v2697, %v2695
        %v4500 = vpack.c.b16 %v2700, %v2698
        %v4501 = vpack.c.b16 %v2701, %v2699
        %v4502 = vpack.c.b16 %v2704, %v2702
        %v4503 = vpack.c.b16 %v2705, %v2703
        %v4504 = vpack.c.b16 %v2708, %v2706
        %v4505 = vpack.c.b16 %v2709, %v2707
        %v4506 = vpack.c.b16 %v2712, %v2710
        %v4507 = vpack.c.b16 %v2713, %v2711
        %v4508 = vpack.c.b16 %v2716, %v2714
        %v4509 = vpack.c.b16 %v2717, %v2715
        %v4510 = vpack.c.b16 %v2720, %v2718
        %v4511 = vpack.c.b16 %v2721, %v2719
        %v4512 = vpack.c.b16 %v2724, %v2722
        %v4513 = vpack.c.b16 %v2725, %v2723
        %v4514 = vpack.c.b16 %v2728, %v2726
        %v4515 = vpack.c.b16 %v2729, %v2727
        %v4516 = vpack.c.b16 %v2732, %v2730
        %v4517 = vpack.c.b16 %v2733, %v2731
        %v4518 = vpack.c.b16 %v2736, %v2734
        %v4519 = vpack.c.b16 %v2737, %v2735
        %v4520 = vpack.c.b16 %v2740, %v2738
        %v4521 = vpack.c.b16 %v2741, %v2739
        %v4522 = vpack.c.b16 %v2744, %v2742
        %v4523 = vpack.c.b16 %v2745, %v2743
        %v4524 = vpack.c.b16 %v2748, %v2746
        %v4525 = vpack.c.b16 %v2749, %v2747
        %v4526 = vpack.c.b16 %v2752, %v2750
        %v4527 = vpack.c.b16 %v2753, %v2751
        %v4528 = vpack.c.b16 %v2756, %v2754
        %v4529 = vpack.c.b16 %v2757, %v2755
        %v4530 = vpack.c.b16 %v2760, %v2758
        %v4531 = vpack.c.b16 %v2761, %v2759
        %v4532 = vpack.c.b16 %v2764, %v2762
        %v4533 = vpack.c.b16 %v2765, %v2763
        %v4534 = vpack.c.b16 %v2768, %v2766
        %v4535 = vpack.c.b16 %v2769, %v2767
        %v4536 = vpack.c.b16 %v2772, %v2770
        %v4537 = vpack.c.b16 %v2773, %v2771
        %v4538 = vpack.c.b16 %v2776, %v2774
        %v4539 = vpack.c.b16 %v2777, %v2775
        %v4540 = vpack.c.b16 %v2780, %v2778
        %v4541 = vpack.c.b16 %v2781, %v2779
        %v4542 = vpack.c.b16 %v2784, %v2782
        %v4543 = vpack.c.b16 %v2785, %v2783
        %v4544 = vpack.c.b16 %v2788, %v2786
        %v4545 = vpack.c.b16 %v2789, %v2787
        %v4546 = vpack.c.b16 %v2792, %v2790
        %v4547 = vpack.c.b16 %v2793, %v2791
        %v4548 = vpack.c.b16 %v2796, %v2794
        %v4549 = vpack.c.b16 %v2797, %v2795
        %v4550 = vpack.c.b16 %v2800, %v2798
        %v4551 = vpack.c.b16 %v2801, %v2799
        %v4552 = vpack.c.b16 %v2804, %v2802
        %v4553 = vpack.c.b16 %v2805, %v2803
        %v4554 = vpack.c.b16 %v2808, %v2806
        %v4555 = vpack.c.b16 %v2809, %v2807
        %v4556 = vpack.c.b16 %v2812, %v2810
        %v4557 = vpack.c.b16 %v2813, %v2811
        %v4558 = vpack.c.b16 %v2816, %v2814
        %v4559 = vpack.c.b16 %v2817, %v2815
        %v4560 = vpack.c.b16 %v2820, %v2818
        %v4561 = vpack.c.b16 %v2821, %v2819
        %v4562 = vpack.c.b16 %v2824, %v2822
        %v4563 = vpack.c.b16 %v2825, %v2823
        %v4564 = vpack.c.b16 %v2828, %v2826
        %v4565 = vpack.c.b16 %v2829, %v2827
        %v4566 = vpack.c.b16 %v2832, %v2830
        %v4567 = vpack.c.b16 %v2833, %v2831
        %v4568 = vpack.c.b16 %v2836, %v2834
        %v4569 = vpack.c.b16 %v2837, %v2835
        %v4570 = vpack.c.b16 %v2840, %v2838
        %v4571 = vpack.c.b16 %v2841, %v2839
        %v4572 = vpack.c.b16 %v2844, %v2842
        %v4573 = vpack.c.b16 %v2845, %v2843
        %v4574 = vpack.c.b16 %v2848, %v2846
        %v4575 = vpack.c.b16 %v2849, %v2847
        %v4576 = vpack.c.b16 %v2852, %v2850
        %v4577 = vpack.c.b16 %v2853, %v2851
        %v4578 = vpack.c.b16 %v2856, %v2854
        %v4579 = vpack.c.b16 %v2857, %v2855
        %v4580 = vpack.c.b16 %v2860, %v2858
        %v4581 = vpack.c.b16 %v2861, %v2859
        %v4582 = vpack.c.b16 %v2864, %v2862
        %v4583 = vpack.c.b16 %v2865, %v2863
        %v4584 = vpack.c.b16 %v2868, %v2866
        %v4585 = vpack.c.b16 %v2869, %v2867
        %v4586 = vpack.c.b16 %v2872, %v2870
        %v4587 = vpack.c.b16 %v2873, %v2871
        %v4588 = vpack.c.b16 %v2876, %v2874
        %v4589 = vpack.c.b16 %v2877, %v2875
        %v4590 = vpack.c.b16 %v2880, %v2878
        %v4591 = vpack.c.b16 %v2881, %v2879
        %v4592 = vpack.c.b16 %v2884, %v2882
        %v4593 = vpack.c.b16 %v2885, %v2883
        %v4594 = vpack.c.b16 %v2888, %v2886
        %v4595 = vpack.c.b16 %v2889, %v2887
        %v4596 = vpack.c.b16 %v2892, %v2890
        %v4597 = vpack.c.b16 %v2893, %v2891
        %v4598 = vpack.c.b16 %v2896, %v2894
        %v4599 = vpack.c.b16 %v2897, %v2895
        %v4600 = vpack.c.b16 %v2900, %v2898
        %v4601 = vpack.c.b16 %v2901, %v2899
        %v4602 = vpack.c.b16 %v2904, %v2902
        %v4603 = vpack.c.b16 %v2905, %v2903
        %v4604 = vpack.c.b16 %v2908, %v2906
        %v4605 = vpack.c.b16 %v2909, %v2907
        %v4606 = vpack.c.b16 %v2912, %v2910
        %v4607 = vpack.c.b16 %v2913, %v2911
        %v4608 = vpack.c.b16 %v2916, %v2914
        %v4609 = vpack.c.b16 %v2917, %v2915
        %v4610 = vpack.c.b16 %v2920, %v2918
        %v4611 = vpack.c.b16 %v2921, %v2919
        %v4612 = vpack.c.b16 %v2924, %v2922
        %v4613 = vpack.c.b16 %v2925, %v2923
        %v4614 = vpack.c.b16 %v2928, %v2926
        %v4615 = vpack.c.b16 %v2929, %v2927
        %v4616 = vpack.c.b16 %v2932, %v2930
        %v4617 = vpack.c.b16 %v2933, %v2931
        %v4618 = vpack.c.b16 %v2936, %v2934
        %v4619 = vpack.c.b16 %v2937, %v2935
        %v4620 = vpack.c.b16 %v2940, %v2938
        %v4621 = vpack.c.b16 %v2941, %v2939
        %v4622 = vpack.c.b16 %v2944, %v2942
        %v4623 = vpack.c.b16 %v2945, %v2943
        %v4624 = vpack.c.b16 %v2948, %v2946
        %v4625 = vpack.c.b16 %v2949, %v2947
        %v4626 = vpack.c.b16 %v2952, %v2950
        %v4627 = vpack.c.b16 %v2953, %v2951
        %v4628 = vpack.c.b16 %v2956, %v2954
        %v4629 = vpack.c.b16 %v2957, %v2955
        %v4630 = vpack.c.b16 %v2960, %v2958
        %v4631 = vpack.c.b16 %v2961, %v2959
        %v4632 = vpack.c.b16 %v2964, %v2962
        %v4633 = vpack.c.b16 %v2965, %v2963
        %v4634 = vpack.c.b16 %v2968, %v2966
        %v4635 = vpack.c.b16 %v2969, %v2967
        %v4636 = vpack.c.b16 %v2972, %v2970
        %v4637 = vpack.c.b16 %v2973, %v2971
        %v4638 = vpack.c.b16 %v2976, %v2974
        %v4639 = vpack.c.b16 %v2977, %v2975
        %v4640 = vpack.c.b16 %v2980, %v2978
        %v4641 = vpack.c.b16 %v2981, %v2979
        %v4642 = vpack.c.b16 %v2984, %v2982
        %v4643 = vpack.c.b16 %v2985, %v2983
        %v4644 = vpack.c.b16 %v2988, %v2986
        %v4645 = vpack.c.b16 %v2989, %v2987
        %v4646 = vpack.c.b16 %v2992, %v2990
        %v4647 = vpack.c.b16 %v2993, %v2991
        %v4648 = vpack.c.b16 %v2996, %v2994
        %v4649 = vpack.c.b16 %v2997, %v2995
        %v4650 = vpack.c.b16 %v3000, %v2998
        %v4651 = vpack.c.b16 %v3001, %v2999
        %v4652 = vpack.c.b16 %v3004, %v3002
        %v4653 = vpack.c.b16 %v3005, %v3003
        %v4654 = vpack.c.b16 %v3008, %v3006
        %v4655 = vpack.c.b16 %v3009, %v3007
        %v4656 = vpack.c.b16 %v3012, %v3010
        %v4657 = vpack.c.b16 %v3013, %v3011
        %v4658 = vpack.c.b16 %v3016, %v3014
        %v4659 = vpack.c.b16 %v3017, %v3015
        %v4660 = vpack.c.b16 %v3020, %v3018
        %v4661 = vpack.c.b16 %v3021, %v3019
        %v4662 = vpack.c.b16 %v3024, %v3022
        %v4663 = vpack.c.b16 %v3025, %v3023
        %v4664 = vpack.c.b16 %v3028, %v3026
        %v4665 = vpack.c.b16 %v3029, %v3027
        %v4666 = vpack.c.b16 %v3032, %v3030
        %v4667 = vpack.c.b16 %v3033, %v3031
        %v4668 = vpack.c.b16 %v3036, %v3034
        %v4669 = vpack.c.b16 %v3037, %v3035
        %v4670 = vpack.c.b16 %v3040, %v3038
        %v4671 = vpack.c.b16 %v3041, %v3039
        %v4672 = vpack.c.b16 %v3044, %v3042
        %v4673 = vpack.c.b16 %v3045, %v3043
        %v4674 = vpack.c.b16 %v3048, %v3046
        %v4675 = vpack.c.b16 %v3049, %v3047
        %v4676 = vpack.c.b16 %v3052, %v3050
        %v4677 = vpack.c.b16 %v3053, %v3051
        %v4678 = vpack.c.b16 %v3056, %v3054
        %v4679 = vpack.c.b16 %v3057, %v3055
        %v4680 = vpack.c.b16 %v3060, %v3058
        %v4681 = vpack.c.b16 %v3061, %v3059
        %v4682 = vpack.c.b16 %v3064, %v3062
        %v4683 = vpack.c.b16 %v3065, %v3063
        %v4684 = vpack.c.b16 %v3068, %v3066
        %v4685 = vpack.c.b16 %v3069, %v3067
        %v4686 = vpack.c.b16 %v3072, %v3070
        %v4687 = vpack.c.b16 %v3073, %v3071
        %v4688 = vpack.c.b16 %v3076, %v3074
        %v4689 = vpack.c.b16 %v3077, %v3075
        %v4690 = vpack.c.b16 %v3080, %v3078
        %v4691 = vpack.c.b16 %v3081, %v3079
        %v4692 = vpack.c.b16 %v3084, %v3082
        %v4693 = vpack.c.b16 %v3085, %v3083
        %v4694 = vpack.c.b16 %v3088, %v3086
        %v4695 = vpack.c.b16 %v3089, %v3087
        %v4696 = vpack.c.b16 %v3092, %v3090
        %v4697 = vpack.c.b16 %v3093, %v3091
        %v4698 = vpack.c.b16 %v3096, %v3094
        %v4699 = vpack.c.b16 %v3097, %v3095
        %v4700 = vpack.c.b16 %v3100, %v3098
        %v4701 = vpack.c.b16 %v3101, %v3099
        %v4702 = vpack.c.b16 %v3104, %v3102
        %v4703 = vpack.c.b16 %v3105, %v3103
        %v4704 = vpack.c.b16 %v3108, %v3106
        %v4705 = vpack.c.b16 %v3109, %v3107
        %v4706 = vpack.c.b16 %v3112, %v3110
        %v4707 = vpack.c.b16 %v3113, %v3111
        %v4708 = vpack.c.b16 %v3116, %v3114
        %v4709 = vpack.c.b16 %v3117, %v3115
        %v4710 = vpack.c.b16 %v3120, %v3118
        %v4711 = vpack.c.b16 %v3121, %v3119
        %v4712 = vpack.c.b16 %v3124, %v3122
        %v4713 = vpack.c.b16 %v3125, %v3123
        %v4714 = vpack.c.b16 %v3128, %v3126
        %v4715 = vpack.c.b16 %v3129, %v3127
        %v4716 = vpack.c.b16 %v3132, %v3130
        %v4717 = vpack.c.b16 %v3133, %v3131
        %v4718 = vpack.c.b16 %v3136, %v3134
        %v4719 = vpack.c.b16 %v3137, %v3135
        %v4720 = vpack.c.b16 %v3140, %v3138
        %v4721 = vpack.c.b16 %v3141, %v3139
        %v4722 = vpack.c.b16 %v3144, %v3142
        %v4723 = vpack.c.b16 %v3145, %v3143
        %v4724 = vpack.c.b16 %v3148, %v3146
        %v4725 = vpack.c.b16 %v3149, %v3147
        %v4726 = vpack.c.b16 %v3152, %v3150
        %v4727 = vpack.c.b16 %v3153, %v3151
        %v4728 = vpack.c.b16 %v3156, %v3154
        %v4729 = vpack.c.b16 %v3157, %v3155
        %v4730 = vpack.c.b16 %v3160, %v3158
        %v4731 = vpack.c.b16 %v3161, %v3159
        %v4732 = vpack.c.b16 %v3164, %v3162
        %v4733 = vpack.c.b16 %v3165, %v3163
        %v4734 = vpack.c.b16 %v3168, %v3166
        %v4735 = vpack.c.b16 %v3169, %v3167
        %v4736 = vpack.c.b16 %v3172, %v3170
        %v4737 = vpack.c.b16 %v3173, %v3171
        %v4738 = vpack.c.b16 %v3176, %v3174
        %v4739 = vpack.c.b16 %v3177, %v3175
        %v4740 = vpack.c.b16 %v3180, %v3178
        %v4741 = vpack.c.b16 %v3181, %v3179
        %v4742 = vpack.c.b16 %v3184, %v3182
        %v4743 = vpack.c.b16 %v3185, %v3183
        %v4744 = vpack.c.b16 %v3188, %v3186
        %v4745 = vpack.c.b16 %v3189, %v3187
        %v4746 = vpack.c.b16 %v3192, %v3190
        %v4747 = vpack.c.b16 %v3193, %v3191
        %v4748 = vpack.c.b16 %v3196, %v3194
        %v4749 = vpack.c.b16 %v3197, %v3195
        %v4750 = vpack.c.b16 %v3200, %v3198
        %v4751 = vpack.c.b16 %v3201, %v3199
        %v4752 = vpack.c.b16 %v3204, %v3202
        %v4753 = vpack.c.b16 %v3205, %v3203
        %v4754 = vpack.c.b16 %v3208, %v3206
        %v4755 = vpack.c.b16 %v3209, %v3207
        %v4756 = vpack.c.b16 %v3212, %v3210
        %v4757 = vpack.c.b16 %v3213, %v3211
        %v4758 = vpack.c.b16 %v3216, %v3214
        %v4759 = vpack.c.b16 %v3217, %v3215
        %v4760 = vpack.c.b16 %v3220, %v3218
        %v4761 = vpack.c.b16 %v3221, %v3219
        %v4762 = vpack.c.b16 %v3224, %v3222
        %v4763 = vpack.c.b16 %v3225, %v3223
        %v4764 = vpack.c.b16 %v3228, %v3226
        %v4765 = vpack.c.b16 %v3229, %v3227
        %v4766 = vpack.c.b16 %v3232, %v3230
        %v4767 = vpack.c.b16 %v3233, %v3231
        %v4768 = vpack.c.b16 %v3236, %v3234
        %v4769 = vpack.c.b16 %v3237, %v3235
        %v4770 = vpack.c.b16 %v3240, %v3238
        %v4771 = vpack.c.b16 %v3241, %v3239
        %v4772 = vpack.c.b16 %v3244, %v3242
        %v4773 = vpack.c.b16 %v3245, %v3243
        %v4774 = vpack.c.b16 %v3248, %v3246
        %v4775 = vpack.c.b16 %v3249, %v3247
        %v4776 = vpack.c.b16 %v3252, %v3250
        %v4777 = vpack.c.b16 %v3253, %v3251
        %v4778 = vpack.c.b16 %v3256, %v3254
        %v4779 = vpack.c.b16 %v3257, %v3255
        %v4780 = vpack.c.b16 %v3260, %v3258
        %v4781 = vpack.c.b16 %v3261, %v3259
        %v4782 = vpack.c.b16 %v3264, %v3262
        %v4783 = vpack.c.b16 %v3265, %v3263
        %v4784 = vpack.c.b16 %v3268, %v3266
        %v4785 = vpack.c.b16 %v3269, %v3267
        %v4786 = vpack.c.b16 %v3272, %v3270
        %v4787 = vpack.c.b16 %v3273, %v3271
        %v4788 = vpack.c.b16 %v3276, %v3274
        %v4789 = vpack.c.b16 %v3277, %v3275
        %v4790 = vpack.c.b16 %v3280, %v3278
        %v4791 = vpack.c.b16 %v3281, %v3279
        %v4792 = vpack.c.b16 %v3284, %v3282
        %v4793 = vpack.c.b16 %v3285, %v3283
        %v4794 = vpack.c.b16 %v3288, %v3286
        %v4795 = vpack.c.b16 %v3289, %v3287
        %v4796 = vpack.c.b16 %v3292, %v3290
        %v4797 = vpack.c.b16 %v3293, %v3291
        %v4798 = vpack.c.b16 %v3296, %v3294
        %v4799 = vpack.c.b16 %v3297, %v3295
        %v4800 = vpack.c.b16 %v3300, %v3298
        %v4801 = vpack.c.b16 %v3301, %v3299
        %v4802 = vpack.c.b16 %v3304, %v3302
        %v4803 = vpack.c.b16 %v3305, %v3303
        %v4804 = vpack.c.b16 %v3308, %v3306
        %v4805 = vpack.c.b16 %v3309, %v3307
        %v4806 = vpack.c.b16 %v3312, %v3310
        %v4807 = vpack.c.b16 %v3313, %v3311
        %v4808 = vpack.c.b16 %v3316, %v3314
        %v4809 = vpack.c.b16 %v3317, %v3315
        %v4810 = vpack.c.b16 %v3320, %v3318
        %v4811 = vpack.c.b16 %v3321, %v3319
        %v4812 = vpack.c.b16 %v3324, %v3322
        %v4813 = vpack.c.b16 %v3325, %v3323
        %v4814 = vpack.c.b16 %v3328, %v3326
        %v4815 = vpack.c.b16 %v3329, %v3327
        %v4816 = vpack.c.b16 %v3332, %v3330
        %v4817 = vpack.c.b16 %v3333, %v3331
        %v4818 = vpack.c.b16 %v3336, %v3334
        %v4819 = vpack.c.b16 %v3337, %v3335
        %v4820 = vpack.c.b16 %v3340, %v3338
        %v4821 = vpack.c.b16 %v3341, %v3339
        %v4822 = vpack.c.b16 %v3344, %v3342
        %v4823 = vpack.c.b16 %v3345, %v3343
        %v4824 = vpack.c.b16 %v3348, %v3346
        %v4825 = vpack.c.b16 %v3349, %v3347
        %v4826 = vpack.c.b16 %v3352, %v3350
        %v4827 = vpack.c.b16 %v3353, %v3351
        %v4828 = vpack.c.b16 %v3356, %v3354
        %v4829 = vpack.c.b16 %v3357, %v3355
        %v4830 = vpack.c.b16 %v3360, %v3358
        %v4831 = vpack.c.b16 %v3361, %v3359
        %v4832 = vpack.c.b16 %v3364, %v3362
        %v4833 = vpack.c.b16 %v3365, %v3363
        %v4834 = vpack.c.b16 %v3368, %v3366
        %v4835 = vpack.c.b16 %v3369, %v3367
        %v4836 = vpack.c.b16 %v3372, %v3370
        %v4837 = vpack.c.b16 %v3373, %v3371
        %v4838 = vpack.c.b16 %v3376, %v3374
        %v4839 = vpack.c.b16 %v3377, %v3375
        %v4840 = vpack.c.b16 %v3380, %v3378
        %v4841 = vpack.c.b16 %v3381, %v3379
        %v4842 = vpack.c.b16 %v3384, %v3382
        %v4843 = vpack.c.b16 %v3385, %v3383
        %v4844 = vpack.c.b16 %v3388, %v3386
        %v4845 = vpack.c.b16 %v3389, %v3387
        %v4846 = vpack.c.b16 %v3392, %v3390
        %v4847 = vpack.c.b16 %v3393, %v3391
        %v4848 = vpack.c.b16 %v3396, %v3394
        %v4849 = vpack.c.b16 %v3397, %v3395
        %v4850 = vpack.c.b16 %v3400, %v3398
        %v4851 = vpack.c.b16 %v3401, %v3399
        %v4852 = vpack.c.b16 %v3404, %v3402
        %v4853 = vpack.c.b16 %v3405, %v3403
        %v4854 = vpack.c.b16 %v3408, %v3406
        %v4855 = vpack.c.b16 %v3409, %v3407
        %v4856 = vpack.c.b16 %v3412, %v3410
        %v4857 = vpack.c.b16 %v3413, %v3411
        %v4858 = vpack.c.b16 %v3416, %v3414
        %v4859 = vpack.c.b16 %v3417, %v3415
        %v4860 = vpack.c.b16 %v3420, %v3418
        %v4861 = vpack.c.b16 %v3421, %v3419
        %v4862 = vpack.c.b16 %v3424, %v3422
        %v4863 = vpack.c.b16 %v3425, %v3423
        %v4864 = vpack.c.b16 %v3428, %v3426
        %v4865 = vpack.c.b16 %v3429, %v3427
        %v4866 = vpack.c.b16 %v3432, %v3430
        %v4867 = vpack.c.b16 %v3433, %v3431
        %v4868 = vpack.c.b16 %v3436, %v3434
        %v4869 = vpack.c.b16 %v3437, %v3435
        %v4870 = vpack.c.b16 %v3440, %v3438
        %v4871 = vpack.c.b16 %v3441, %v3439
        %v4872 = vpack.c.b16 %v3444, %v3442
        %v4873 = vpack.c.b16 %v3445, %v3443
        %v4874 = vpack.c.b16 %v3448, %v3446
        %v4875 = vpack.c.b16 %v3449, %v3447
        %v4876 = vpack.c.b16 %v3452, %v3450
        %v4877 = vpack.c.b16 %v3453, %v3451
        %v4878 = vpack.c.b16 %v3456, %v3454
        %v4879 = vpack.c.b16 %v3457, %v3455
        %v4880 = vpack.c.b16 %v3460, %v3458
        %v4881 = vpack.c.b16 %v3461, %v3459
        %v4882 = vpack.c.b16 %v3464, %v3462
        %v4883 = vpack.c.b16 %v3465, %v3463
        %v4884 = vpack.c.b16 %v3468, %v3466
        %v4885 = vpack.c.b16 %v3469, %v3467
        %v4886 = vpack.c.b16 %v3472, %v3470
        %v4887 = vpack.c.b16 %v3473, %v3471
        %v4888 = vpack.c.b16 %v3476, %v3474
        %v4889 = vpack.c.b16 %v3477, %v3475
        %v4890 = vpack.c.b16 %v3480, %v3478
        %v4891 = vpack.c.b16 %v3481, %v3479
        %v4892 = vpack.c.b16 %v3484, %v3482
        %v4893 = vpack.c.b16 %v3485, %v3483
        %v4894 = vpack.c.b16 %v3488, %v3486
        %v4895 = vpack.c.b16 %v3489, %v3487
        %v4896 = vpack.c.b16 %v3492, %v3490
        %v4897 = vpack.c.b16 %v3493, %v3491
        %v4898 = vpack.c.b16 %v3496, %v3494
        %v4899 = vpack.c.b16 %v3497, %v3495
        %v4900 = vpack.c.b16 %v3500, %v3498
        %v4901 = vpack.c.b16 %v3501, %v3499
        %v4902 = vpack.c.b16 %v3504, %v3502
        %v4903 = vpack.c.b16 %v3505, %v3503
        %v4904 = vpack.c.b16 %v3508, %v3506
        %v4905 = vpack.c.b16 %v3509, %v3507
        %v4906 = vpack.c.b16 %v3512, %v3510
        %v4907 = vpack.c.b16 %v3513, %v3511
        %v4908 = vpack.c.b16 %v3516, %v3514
        %v4909 = vpack.c.b16 %v3517, %v3515
        %v4910 = vpack.c.b16 %v3520, %v3518
        %v4911 = vpack.c.b16 %v3521, %v3519
        %v4912 = vpack.c.b16 %v3524, %v3522
        %v4913 = vpack.c.b16 %v3525, %v3523
        %v4914 = vpack.c.b16 %v3528, %v3526
        %v4915 = vpack.c.b16 %v3529, %v3527
        %v4916 = vpack.c.b16 %v3532, %v3530
        %v4917 = vpack.c.b16 %v3533, %v3531
        %v4918 = vpack.c.b16 %v3536, %v3534
        %v4919 = vpack.c.b16 %v3537, %v3535
        %v4920 = vpack.c.b16 %v3540, %v3538
        %v4921 = vpack.c.b16 %v3541, %v3539
        %v4922 = vpack.c.b16 %v3544, %v3542
        %v4923 = vpack.c.b16 %v3545, %v3543
        %v4924 = vpack.c.b16 %v3548, %v3546
        %v4925 = vpack.c.b16 %v3549, %v3547
        %v4926 = vpack.c.b16 %v3552, %v3550
        %v4927 = vpack.c.b16 %v3553, %v3551
        %v4928 = vpack.c.b16 %v3556, %v3554
        %v4929 = vpack.c.b16 %v3557, %v3555
        %v4930 = vpack.c.b16 %v3560, %v3558
        %v4931 = vpack.c.b16 %v3561, %v3559
        %v4932 = vpack.c.b16 %v3564, %v3562
        %v4933 = vpack.c.b16 %v3565, %v3563
        %v4934 = vpack.c.b16 %v3568, %v3566
        %v4935 = vpack.c.b16 %v3569, %v3567
        %v4936 = vpack.c.b16 %v3572, %v3570
        %v4937 = vpack.c.b16 %v3573, %v3571
        %v4938 = vpack.c.b16 %v3576, %v3574
        %v4939 = vpack.c.b16 %v3577, %v3575
        %v4940 = vpack.c.b16 %v3580, %v3578
        %v4941 = vpack.c.b16 %v3581, %v3579
        %v4942 = vpack.c.b16 %v3584, %v3582
        %v4943 = vpack.c.b16 %v3585, %v3583
        %v4944 = vpack.c.b16 %v3588, %v3586
        %v4945 = vpack.c.b16 %v3589, %v3587
        %v4946 = vpack.c.b16 %v3592, %v3590
        %v4947 = vpack.c.b16 %v3593, %v3591
        %v4948 = vpack.c.b16 %v3596, %v3594
        %v4949 = vpack.c.b16 %v3597, %v3595
        %v4950 = vpack.c.b16 %v3600, %v3598
        %v4951 = vpack.c.b16 %v3601, %v3599
        %v4952 = vpack.c.b16 %v3604, %v3602
        %v4953 = vpack.c.b16 %v3605, %v3603
        %v4954 = vpack.c.b16 %v3608, %v3606
        %v4955 = vpack.c.b16 %v3609, %v3607
        %v4956 = vpack.c.b16 %v3612, %v3610
        %v4957 = vpack.c.b16 %v3613, %v3611
        %v4958 = vpack.c.b16 %v3616, %v3614
        %v4959 = vpack.c.b16 %v3617, %v3615
        %v4960 = vpack.c.b16 %v3620, %v3618
        %v4961 = vpack.c.b16 %v3621, %v3619
        %v4962 = vpack.c.b16 %v3624, %v3622
        %v4963 = vpack.c.b16 %v3625, %v3623
        %v4964 = vpack.c.b16 %v3628, %v3626
        %v4965 = vpack.c.b16 %v3629, %v3627
        %v4966 = vpack.c.b16 %v3632, %v3630
        %v4967 = vpack.c.b16 %v3633, %v3631
        %v4968 = vpack.c.b16 %v3636, %v3634
        %v4969 = vpack.c.b16 %v3637, %v3635
        %v4970 = vpack.c.b16 %v3640, %v3638
        %v4971 = vpack.c.b16 %v3641, %v3639
        %v4972 = vpack.c.b16 %v3644, %v3642
        %v4973 = vpack.c.b16 %v3645, %v3643
        %v4974 = vpack.c.b16 %v3648, %v3646
        %v4975 = vpack.c.b16 %v3649, %v3647
        %v4976 = vpack.c.b16 %v3652, %v3650
        %v4977 = vpack.c.b16 %v3653, %v3651
        %v4978 = vpack.c.b16 %v3656, %v3654
        %v4979 = vpack.c.b16 %v3657, %v3655
        %v4980 = vpack.c.b16 %v3660, %v3658
        %v4981 = vpack.c.b16 %v3661, %v3659
        %v4982 = vpack.c.b16 %v3664, %v3662
        %v4983 = vpack.c.b16 %v3665, %v3663
        %v4984 = vpack.c.b16 %v3668, %v3666
        %v4985 = vpack.c.b16 %v3669, %v3667
        %v4986 = vpack.c.b16 %v3672, %v3670
        %v4987 = vpack.c.b16 %v3673, %v3671
        %v4988 = vpack.c.b16 %v3676, %v3674
        %v4989 = vpack.c.b16 %v3677, %v3675
        %v4990 = vpack.c.b16 %v3680, %v3678
        %v4991 = vpack.c.b16 %v3681, %v3679
        %v4992 = vpack.c.b16 %v3684, %v3682
        %v4993 = vpack.c.b16 %v3685, %v3683
        %v4994 = vpack.c.b16 %v3688, %v3686
        %v4995 = vpack.c.b16 %v3689, %v3687
        %v4996 = vpack.c.b16 %v3692, %v3690
        %v4997 = vpack.c.b16 %v3693, %v3691
        %v4998 = vpack.c.b16 %v3696, %v3694
        %v4999 = vpack.c.b16 %v3697, %v3695
        %v5000 = vpack.c.b16 %v3700, %v3698
        %v5001 = vpack.c.b16 %v3701, %v3699
        %v5002 = vpack.c.b16 %v3704, %v3702
        %v5003 = vpack.c.b16 %v3705, %v3703
        %v5004 = vpack.c.b16 %v3708, %v3706
        %v5005 = vpack.c.b16 %v3709, %v3707
        %v5006 = vpack.c.b16 %v3712, %v3710
        %v5007 = vpack.c.b16 %v3713, %v3711
        %v5008 = vpack.c.b16 %v3716, %v3714
        %v5009 = vpack.c.b16 %v3717, %v3715
        %v5010 = vpack.c.b16 %v3720, %v3718
        %v5011 = vpack.c.b16 %v3721, %v3719
        %v5012 = vpack.c.b16 %v3724, %v3722
        %v5013 = vpack.c.b16 %v3725, %v3723
        %v5014 = vpack.c.b16 %v3728, %v3726
        %v5015 = vpack.c.b16 %v3729, %v3727
        %v5016 = vpack.c.b16 %v3732, %v3730
        %v5017 = vpack.c.b16 %v3733, %v3731
        %v5018 = vpack.c.b16 %v3736, %v3734
        %v5019 = vpack.c.b16 %v3737, %v3735
        %v5020 = vpack.c.b16 %v3740, %v3738
        %v5021 = vpack.c.b16 %v3741, %v3739
        %v5022 = vpack.c.b16 %v3744, %v3742
        %v5023 = vpack.c.b16 %v3745, %v3743
        %v5024 = vpack.c.b16 %v3748, %v3746
        %v5025 = vpack.c.b16 %v3749, %v3747
        %v5026 = vpack.c.b16 %v3752, %v3750
        %v5027 = vpack.c.b16 %v3753, %v3751
        %v5028 = vpack.c.b16 %v3756, %v3754
        %v5029 = vpack.c.b16 %v3757, %v3755
        %v5030 = vpack.c.b16 %v3760, %v3758
        %v5031 = vpack.c.b16 %v3761, %v3759
        %v5032 = vpack.c.b16 %v3764, %v3762
        %v5033 = vpack.c.b16 %v3765, %v3763
        %v5034 = vpack.c.b16 %v3768, %v3766
        %v5035 = vpack.c.b16 %v3769, %v3767
        %v5036 = vpack.c.b16 %v3772, %v3770
        %v5037 = vpack.c.b16 %v3773, %v3771
        %v5038 = vpack.c.b16 %v3776, %v3774
        %v5039 = vpack.c.b16 %v3777, %v3775
        %v5040 = vpack.c.b16 %v3780, %v3778
        %v5041 = vpack.c.b16 %v3781, %v3779
        %v5042 = vpack.c.b16 %v3784, %v3782
        %v5043 = vpack.c.b16 %v3785, %v3783
        %v5044 = vpack.c.b16 %v3788, %v3786
        %v5045 = vpack.c.b16 %v3789, %v3787
        %v5046 = vpack.c.b16 %v3792, %v3790
        %v5047 = vpack.c.b16 %v3793, %v3791
        %v5048 = vpack.c.b16 %v3796, %v3794
        %v5049 = vpack.c.b16 %v3797, %v3795
        %v5050 = vpack.c.b16 %v3800, %v3798
        %v5051 = vpack.c.b16 %v3801, %v3799
        %v5052 = vpack.c.b16 %v3804, %v3802
        %v5053 = vpack.c.b16 %v3805, %v3803
        %v5054 = vpack.c.b16 %v3808, %v3806
        %v5055 = vpack.c.b16 %v3809, %v3807
        %v5056 = vpack.c.b16 %v3812, %v3810
        %v5057 = vpack.c.b16 %v3813, %v3811
        %v5058 = vpack.c.b16 %v3816, %v3814
        %v5059 = vpack.c.b16 %v3817, %v3815
        %v5060 = vpack.c.b16 %v3820, %v3818
        %v5061 = vpack.c.b16 %v3821, %v3819
        %v5062 = vpack.c.b16 %v3824, %v3822
        %v5063 = vpack.c.b16 %v3825, %v3823
        %v5064 = vpack.c.b16 %v3828, %v3826
        %v5065 = vpack.c.b16 %v3829, %v3827
        %v5066 = vpack.c.b16 %v3832, %v3830
        %v5067 = vpack.c.b16 %v3833, %v3831
        %v5068 = vpack.c.b16 %v3836, %v3834
        %v5069 = vpack.c.b16 %v3837, %v3835
        %v5070 = vpack.c.b16 %v3840, %v3838
        %v5071 = vpack.c.b16 %v3841, %v3839
        %v5072 = vpack.c.b16 %v3844, %v3842
        %v5073 = vpack.c.b16 %v3845, %v3843
        %v5074 = vpack.c.b16 %v3848, %v3846
        %v5075 = vpack.c.b16 %v3849, %v3847
        %v5076 = vpack.c.b16 %v3852, %v3850
        %v5077 = vpack.c.b16 %v3853, %v3851
        %v5078 = vpack.c.b16 %v3856, %v3854
        %v5079 = vpack.c.b16 %v3857, %v3855
        %v5080 = vpack.c.b16 %v3860, %v3858
        %v5081 = vpack.c.b16 %v3861, %v3859
        %v5082 = vpack.c.b16 %v3864, %v3862
        %v5083 = vpack.c.b16 %v3865, %v3863
        %v5084 = vpack.c.b16 %v3868, %v3866
        %v5085 = vpack.c.b16 %v3869, %v3867
        %v5086 = vpack.c.b16 %v3872, %v3870
        %v5087 = vpack.c.b16 %v3873, %v3871
        %v5088 = vpack.c.b16 %v3876, %v3874
        %v5089 = vpack.c.b16 %v3877, %v3875
        %v5090 = vpack.c.b16 %v3880, %v3878
        %v5091 = vpack.c.b16 %v3881, %v3879
        %v5092 = vpack.c.b16 %v3884, %v3882
        %v5093 = vpack.c.b16 %v3885, %v3883
        %v5094 = vpack.c.b16 %v3888, %v3886
        %v5095 = vpack.c.b16 %v3889, %v3887
        %v5096 = vpack.c.b16 %v3892, %v3890
        %v5097 = vpack.c.b16 %v3893, %v3891
        %v5098 = vpack.c.b16 %v3896, %v3894
        %v5099 = vpack.c.b16 %v3897, %v3895
        %v5100 = vpack.c.b16 %v3900, %v3898
        %v5101 = vpack.c.b16 %v3901, %v3899
        %v5102 = vpack.c.b16 %v3904, %v3902
        %v5103 = vpack.c.b16 %v3905, %v3903
        %v5104 = vpack.c.b16 %v3908, %v3906
        %v5105 = vpack.c.b16 %v3909, %v3907
        %v5106 = vpack.c.b16 %v3912, %v3910
        %v5107 = vpack.c.b16 %v3913, %v3911
        %v5108 = vpack.c.b16 %v3916, %v3914
        %v5109 = vpack.c.b16 %v3917, %v3915
        %v5110 = vpack.c.b16 %v3920, %v3918
        %v5111 = vpack.c.b16 %v3921, %v3919
        %v5112 = vpack.c.b16 %v3924, %v3922
        %v5113 = vpack.c.b16 %v3925, %v3923
        %v5114 = vpack.c.b16 %v3928, %v3926
        %v5115 = vpack.c.b16 %v3929, %v3927
        %v5116 = vpack.c.b16 %v3932, %v3930
        %v5117 = vpack.c.b16 %v3933, %v3931
        %v5118 = vpack.c.b16 %v3936, %v3934
        %v5119 = vpack.c.b16 %v3937, %v3935
        %v5120 = vpack.c.b16 %v3940, %v3938
        %v5121 = vpack.c.b16 %v3941, %v3939
        %v5122 = vpack.c.b16 %v3944, %v3942
        %v5123 = vpack.c.b16 %v3945, %v3943
        %v5124 = vpack.c.b16 %v3948, %v3946
        %v5125 = vpack.c.b16 %v3949, %v3947
        %v5126 = vpack.c.b16 %v3952, %v3950
        %v5127 = vpack.c.b16 %v3953, %v3951
        %v5128 = vpack.c.b16 %v3956, %v3954
        %v5129 = vpack.c.b16 %v3957, %v3955
        %v5130 = vpack.c.b16 %v3960, %v3958
        %v5131 = vpack.c.b16 %v3961, %v3959
        %v5132 = vpack.c.b16 %v3964, %v3962
        %v5133 = vpack.c.b16 %v3965, %v3963
        %v5134 = vpack.c.b16 %v3968, %v3966
        %v5135 = vpack.c.b16 %v3969, %v3967
        %v5136 = vpack.c.b16 %v3972, %v3970
        %v5137 = vpack.c.b16 %v3973, %v3971
        %v5138 = vpack.c.b16 %v3976, %v3974
        %v5139 = vpack.c.b16 %v3977, %v3975
        %v5140 = vpack.c.b16 %v3980, %v3978
        %v5141 = vpack.c.b16 %v3981, %v3979
        %v5142 = vpack.c.b16 %v3984, %v3982
        %v5143 = vpack.c.b16 %v3985, %v3983
        %v5144 = vpack.c.b16 %v3988, %v3986
        %v5145 = vpack.c.b16 %v3989, %v3987
        %v5146 = vpack.c.b16 %v3992, %v3990
        %v5147 = vpack.c.b16 %v3993, %v3991
        %v5148 = vpack.c.b16 %v3996, %v3994
        %v5149 = vpack.c.b16 %v3997, %v3995
        %v5150 = vpack.c.b16 %v4000, %v3998
        %v5151 = vpack.c.b16 %v4001, %v3999
        %v5152 = vpack.c.b16 %v4004, %v4002
        %v5153 = vpack.c.b16 %v4005, %v4003
        %v5154 = vpack.c.b16 %v4008, %v4006
        %v5155 = vpack.c.b16 %v4009, %v4007
        %v5156 = vpack.c.b16 %v4012, %v4010
        %v5157 = vpack.c.b16 %v4013, %v4011
        %v5158 = vpack.c.b16 %v4016, %v4014
        %v5159 = vpack.c.b16 %v4017, %v4015
        %v5160 = vpack.c.b16 %v4020, %v4018
        %v5161 = vpack.c.b16 %v4021, %v4019
        %v5162 = vpack.c.b16 %v4024, %v4022
        %v5163 = vpack.c.b16 %v4025, %v4023
        %v5164 = vpack.c.b16 %v4028, %v4026
        %v5165 = vpack.c.b16 %v4029, %v4027
        %v5166 = vpack.c.b16 %v4032, %v4030
        %v5167 = vpack.c.b16 %v4033, %v4031
        %v5168 = vpack.c.b16 %v4036, %v4034
        %v5169 = vpack.c.b16 %v4037, %v4035
        %v5170 = vpack.c.b16 %v4040, %v4038
        %v5171 = vpack.c.b16 %v4041, %v4039
        %v5172 = vpack.c.b16 %v4044, %v4042
        %v5173 = vpack.c.b16 %v4045, %v4043
        %v5174 = vpack.c.b16 %v4048, %v4046
        %v5175 = vpack.c.b16 %v4049, %v4047
        %v5176 = vpack.c.b16 %v4052, %v4050
        %v5177 = vpack.c.b16 %v4053, %v4051
        %v5178 = vpack.c.b16 %v4056, %v4054
        %v5179 = vpack.c.b16 %v4057, %v4055
        %v5180 = vpack.c.b16 %v4060, %v4058
        %v5181 = vpack.c.b16 %v4061, %v4059
        %v5182 = vpack.c.b16 %v4064, %v4062
        %v5183 = vpack.c.b16 %v4065, %v4063
        %v5184 = vpack.c.b16 %v4068, %v4066
        %v5185 = vpack.c.b16 %v4069, %v4067
        %v5186 = vpack.c.b16 %v4072, %v4070
        %v5187 = vpack.c.b16 %v4073, %v4071
        %v5188 = vpack.c.b16 %v4076, %v4074
        %v5189 = vpack.c.b16 %v4077, %v4075
        %v5190 = vpack.c.b16 %v4080, %v4078
        %v5191 = vpack.c.b16 %v4081, %v4079
        %v5192 = vpack.c.b16 %v4084, %v4082
        %v5193 = vpack.c.b16 %v4085, %v4083
        %v5194 = vpack.c.b16 %v4088, %v4086
        %v5195 = vpack.c.b16 %v4089, %v4087
        %v5196 = vpack.c.b16 %v4092, %v4090
        %v5197 = vpack.c.b16 %v4093, %v4091
        %v5198 = vpack.c.b16 %v4096, %v4094
        %v5199 = vpack.c.b16 %v4097, %v4095
        %v5200 = vpack.c.b16 %v4100, %v4098
        %v5201 = vpack.c.b16 %v4101, %v4099
        %v5202 = vpack.c.b16 %v4104, %v4102
        %v5203 = vpack.c.b16 %v4105, %v4103
        %v5204 = vpack.c.b16 %v4108, %v4106
        %v5205 = vpack.c.b16 %v4109, %v4107
        %v5206 = vpack.c.b16 %v4112, %v4110
        %v5207 = vpack.c.b16 %v4113, %v4111
        %v5208 = vpack.c.b16 %v4116, %v4114
        %v5209 = vpack.c.b16 %v4117, %v4115
        %v5210 = vpack.c.b16 %v4120, %v4118
        %v5211 = vpack.c.b16 %v4121, %v4119
        %v5212 = vpack.c.b16 %v4124, %v4122
        %v5213 = vpack.c.b16 %v4125, %v4123
        %v5214 = vpack.c.b16 %v4128, %v4126
        %v5215 = vpack.c.b16 %v4129, %v4127
        %v5216 = vpack.c.b16 %v4132, %v4130
        %v5217 = vpack.c.b16 %v4133, %v4131
        %v5218 = vpack.c.b16 %v4136, %v4134
        %v5219 = vpack.c.b16 %v4137, %v4135
        %v5220 = vpack.c.b16 %v4140, %v4138
        %v5221 = vpack.c.b16 %v4141, %v4139
        %v5222 = vpack.c.b16 %v4144, %v4142
        %v5223 = vpack.c.b16 %v4145, %v4143
        %v5224 = vpack.c.b16 %v4148, %v4146
        %v5225 = vpack.c.b16 %v4149, %v4147
        %v5226 = vpack.c.b16 %v4152, %v4150
        %v5227 = vpack.c.b16 %v4153, %v4151
        %v5228 = vpack.c.b16 %v4156, %v4154
        %v5229 = vpack.c.b16 %v4157, %v4155
        %v5230 = vpack.c.b16 %v4160, %v4158
        %v5231 = vpack.c.b16 %v4161, %v4159
        %v5232 = vpack.c.b16 %v4164, %v4162
        %v5233 = vpack.c.b16 %v4165, %v4163
        %v5234 = vpack.c.b16 %v4168, %v4166
        %v5235 = vpack.c.b16 %v4169, %v4167
        %v5236 = vpack.c.b16 %v4172, %v4170
        %v5237 = vpack.c.b16 %v4173, %v4171
        %v5238 = vpack.c.b16 %v4176, %v4174
        %v5239 = vpack.c.b16 %v4177, %v4175
        %v5240 = vpack.c.b16 %v4180, %v4178
        %v5241 = vpack.c.b16 %v4181, %v4179
        %v5242 = vpack.c.b16 %v4184, %v4182
        %v5243 = vpack.c.b16 %v4185, %v4183
        %v5244 = vpack.c.b16 %v4188, %v4186
        %v5245 = vpack.c.b16 %v4189, %v4187
        %v5246 = vpack.c.b16 %v4192, %v4190
        %v5247 = vpack.c.b16 %v4193, %v4191
        %v5248 = vpack.c.b16 %v4196, %v4194
        %v5249 = vpack.c.b16 %v4197, %v4195
        %v5250 = vpack.c.b16 %v4200, %v4198
        %v5251 = vpack.c.b16 %v4201, %v4199
        %v5252 = vpack.c.b16 %v4204, %v4202
        %v5253 = vpack.c.b16 %v4205, %v4203
        %v5254 = vpack.c.b16 %v4208, %v4206
        %v5255 = vpack.c.b16 %v4209, %v4207
        %v5256 = vpack.c.b16 %v4212, %v4210
        %v5257 = vpack.c.b16 %v4213, %v4211
        %v5258 = vpack.c.b16 %v4216, %v4214
        %v5259 = vpack.c.b16 %v4217, %v4215
        %v5260 = vpack.c.b16 %v4220, %v4218
        %v5261 = vpack.c.b16 %v4221, %v4219
        %v5262 = vpack.c.b16 %v4224, %v4222
        %v5263 = vpack.c.b16 %v4225, %v4223
        %v5264 = vpack.c.b16 %v4228, %v4226
        %v5265 = vpack.c.b16 %v4229, %v4227
        %v5266 = vpack.c.b16 %v4232, %v4230
        %v5267 = vpack.c.b16 %v4233, %v4231
        %v5268 = vpack.c.b16 %v4236, %v4234
        %v5269 = vpack.c.b16 %v4237, %v4235
        %v5270 = vpack.c.b16 %v4240, %v4238
        %v5271 = vpack.c.b16 %v4241, %v4239
        %v5272 = vpack.c.b16 %v4244, %v4242
        %v5273 = vpack.c.b16 %v4245, %v4243
        %v5274 = vpack.c.b16 %v4248, %v4246
        %v5275 = vpack.c.b16 %v4249, %v4247
        %v5276 = vpack.c.b16 %v4252, %v4250
        %v5277 = vpack.c.b16 %v4253, %v4251
        %v5278 = vpack.c.b16 %v4256, %v4254
        %v5279 = vpack.c.b16 %v4257, %v4255
        %v5280 = vpack.c.b16 %v4260, %v4258
        %v5281 = vpack.c.b16 %v4261, %v4259
        %v5282 = vpack.c.b16 %v4264, %v4262
        %v5283 = vpack.c.b16 %v4265, %v4263
        %v5284 = vpack.c.b16 %v4268, %v4266
        %v5285 = vpack.c.b16 %v4269, %v4267
        %v5286 = vpack.c.b16 %v4272, %v4270
        %v5287 = vpack.c.b16 %v4273, %v4271
        %v5288 = vpack.c.b16 %v4276, %v4274
        %v5289 = vpack.c.b16 %v4277, %v4275
        %v5290 = vpack.c.b16 %v4280, %v4278
        %v5291 = vpack.c.b16 %v4281, %v4279
        %v5292 = vpack.c.b16 %v4284, %v4282
        %v5293 = vpack.c.b16 %v4285, %v4283
        %v5294 = vpack.c.b16 %v4288, %v4286
        %v5295 = vpack.c.b16 %v4289, %v4287
        %v5296 = vpack.c.b16 %v4292, %v4290
        %v5297 = vpack.c.b16 %v4293, %v4291
        %v5298 = vpack.c.b16 %v4296, %v4294
        %v5299 = vpack.c.b16 %v4297, %v4295
        %v5300 = vpack.c.b16 %v4300, %v4298
        %v5301 = vpack.c.b16 %v4301, %v4299
        %v5302 = vpack.c.b16 %v4304, %v4302
        %v5303 = vpack.c.b16 %v4305, %v4303
        %v5304 = vpack.c.b16 %v4308, %v4306
        %v5305 = vpack.c.b16 %v4309, %v4307
        %v5306 = vpack.c.b16 %v4312, %v4310
        %v5307 = vpack.c.b16 %v4313, %v4311
        %v5308 = vpack.c.b16 %v4316, %v4314
        %v5309 = vpack.c.b16 %v4317, %v4315
        %6302 = vmatprep.subr.bf16.mxu0 %v4319
        %6303 = vmatpush1.bf16.msra.mxu0 %v4318
        %6304 = vmatprep.subr.bf16.mxu0 %v4321
        %6305 = vmatpush1.bf16.msra.mxu0 %v4320
        %6306 = vmatprep.subr.bf16.mxu0 %v4323
        %6307 = vmatpush1.bf16.msra.mxu0 %v4322
        %6308 = vmatprep.subr.bf16.mxu0 %v4325
        %6309 = vmatpush1.bf16.msra.mxu0 %v4324
        %6310 = vmatprep.subr.bf16.mxu0 %v4327
        %6311 = vmatpush1.bf16.msra.mxu0 %v4326
        %6312 = vmatprep.subr.bf16.mxu0 %v4329
        %6313 = vmatpush1.bf16.msra.mxu0 %v4328
        %6314 = vmatprep.subr.bf16.mxu0 %v4331
        %6315 = vmatpush1.bf16.msra.mxu0 %v4330
        %6316 = vmatprep.subr.bf16.mxu0 %v4333
        %6317 = vmatpush1.bf16.msra.mxu0 %v4332
        %6318 = vmatprep.subr.bf16.mxu0 %v4335
        %6319 = vmatpush1.bf16.msra.mxu0 %v4334
        %6320 = vmatprep.subr.bf16.mxu0 %v4337
        %6321 = vmatpush1.bf16.msra.mxu0 %v4336
        %6322 = vmatprep.subr.bf16.mxu0 %v4339
        %6323 = vmatpush1.bf16.msra.mxu0 %v4338
        %6324 = vmatprep.subr.bf16.mxu0 %v4341
        %6325 = vmatpush1.bf16.msra.mxu0 %v4340
        %6326 = vmatprep.subr.bf16.mxu0 %v4343
        %6327 = vmatpush1.bf16.msra.mxu0 %v4342
        %6328 = vmatprep.subr.bf16.mxu0 %v4345
        %6329 = vmatpush1.bf16.msra.mxu0 %v4344
        %6330 = vmatprep.subr.bf16.mxu0 %v4347
        %6331 = vmatpush1.bf16.msra.mxu0 %v4346
        %6332 = vmatprep.subr.bf16.mxu0 %v4349
        %6333 = vmatpush1.bf16.msra.mxu0 %v4348
        %6334 = vmatprep.mubr.bf16.mxu0 %v277
        %6335 = vmatmul.mubr.bf16.gmra.mrb[0].mxu0 %v276
        %v6336 = vpop.f32.mrb[0].mxu0
        %v6337 = vadd.f32 %v1335, %v6336
        %v6338 = vpop.f32.mrb[0].mxu0
        %v6339 = vadd.f32 %v1339, %v6338
        %v6340 = vpop.f32.mrb[0].mxu0
        %v6341 = vpop.f32.mrb[0].mxu0
        %6342 = vdwg.mxu0
        %6343 = vmatprep.subr.bf16.mxu0 %v4351
        %6344 = vmatpush1.bf16.msra.mxu0 %v4350
        %6345 = vmatprep.subr.bf16.mxu0 %v4353
        %6346 = vmatpush1.bf16.msra.mxu0 %v4352
        %6347 = vmatprep.subr.bf16.mxu0 %v4355
        %6348 = vmatpush1.bf16.msra.mxu0 %v4354
        %6349 = vmatprep.subr.bf16.mxu0 %v4357
        %6350 = vmatpush1.bf16.msra.mxu0 %v4356
        %6351 = vmatprep.subr.bf16.mxu0 %v4359
        %6352 = vmatpush1.bf16.msra.mxu0 %v4358
        %6353 = vmatprep.subr.bf16.mxu0 %v4361
        %6354 = vmatpush1.bf16.msra.mxu0 %v4360
        %6355 = vmatprep.subr.bf16.mxu0 %v4363
        %6356 = vmatpush1.bf16.msra.mxu0 %v4362
        %6357 = vmatprep.subr.bf16.mxu0 %v4365
        %6358 = vmatpush1.bf16.msra.mxu0 %v4364
        %6359 = vmatprep.subr.bf16.mxu0 %v4367
        %6360 = vmatpush1.bf16.msra.mxu0 %v4366
        %6361 = vmatprep.subr.bf16.mxu0 %v4369
        %6362 = vmatpush1.bf16.msra.mxu0 %v4368
        %6363 = vmatprep.subr.bf16.mxu0 %v4371
        %6364 = vmatpush1.bf16.msra.mxu0 %v4370
        %6365 = vmatprep.subr.bf16.mxu0 %v4373
        %6366 = vmatpush1.bf16.msra.mxu0 %v4372
        %6367 = vmatprep.subr.bf16.mxu0 %v4375
        %6368 = vmatpush1.bf16.msra.mxu0 %v4374
        %6369 = vmatprep.subr.bf16.mxu0 %v4377
        %6370 = vmatpush1.bf16.msra.mxu0 %v4376
        %6371 = vmatprep.subr.bf16.mxu0 %v4379
        %6372 = vmatpush1.bf16.msra.mxu0 %v4378
        %6373 = vmatprep.subr.bf16.mxu0 %v4381
        %6374 = vmatpush1.bf16.msra.mxu0 %v4380
        %6375 = vmatprep.mubr.bf16.mxu0 %v279
        %6376 = vmatmul.mubr.bf16.gmra.mrb[0].mxu0 %v278
        %v6377 = vpop.f32.mrb[0].mxu0
        %v6378 = vadd.f32 %v6337, %v6377
        %v6379 = vpop.f32.mrb[0].mxu0
        %v6380 = vadd.f32 %v6339, %v6379
        %v6381 = vpop.f32.mrb[0].mxu0
        %v6382 = vpop.f32.mrb[0].mxu0
        %6383 = vdwg.mxu0
        %6384 = vmatprep.subr.bf16.mxu0 %v4383
        %6385 = vmatpush1.bf16.msra.mxu0 %v4382
        %6386 = vmatprep.subr.bf16.mxu0 %v4385
        %6387 = vmatpush1.bf16.msra.mxu0 %v4384
        %6388 = vmatprep.subr.bf16.mxu0 %v4387
        %6389 = vmatpush1.bf16.msra.mxu0 %v4386
        %6390 = vmatprep.subr.bf16.mxu0 %v4389
        %6391 = vmatpush1.bf16.msra.mxu0 %v4388
        %6392 = vmatprep.subr.bf16.mxu0 %v4391
        %6393 = vmatpush1.bf16.msra.mxu0 %v4390
        %6394 = vmatprep.subr.bf16.mxu0 %v4393
        %6395 = vmatpush1.bf16.msra.mxu0 %v4392
        %6396 = vmatprep.subr.bf16.mxu0 %v4395
        %6397 = vmatpush1.bf16.msra.mxu0 %v4394
        %6398 = vmatprep.subr.bf16.mxu0 %v4397
        %6399 = vmatpush1.bf16.msra.mxu0 %v4396
        %6400 = vmatprep.subr.bf16.mxu0 %v4399
        %6401 = vmatpush1.bf16.msra.mxu0 %v4398
        %6402 = vmatprep.subr.bf16.mxu0 %v4401
        %6403 = vmatpush1.bf16.msra.mxu0 %v4400
        %6404 = vmatprep.subr.bf16.mxu0 %v4403
        %6405 = vmatpush1.bf16.msra.mxu0 %v4402
        %6406 = vmatprep.subr.bf16.mxu0 %v4405
        %6407 = vmatpush1.bf16.msra.mxu0 %v4404
        %6408 = vmatprep.subr.bf16.mxu0 %v4407
        %6409 = vmatpush1.bf16.msra.mxu0 %v4406
        %6410 = vmatprep.subr.bf16.mxu0 %v4409
        %6411 = vmatpush1.bf16.msra.mxu0 %v4408
        %6412 = vmatprep.subr.bf16.mxu0 %v4411
        %6413 = vmatpush1.bf16.msra.mxu0 %v4410
        %6414 = vmatprep.subr.bf16.mxu0 %v4413
        %6415 = vmatpush1.bf16.msra.mxu0 %v4412
        %6416 = vmatprep.mubr.bf16.mxu0 %v281
        %6417 = vmatmul.mubr.bf16.gmra.mrb[0].mxu0 %v280
        %v6418 = vpop.f32.mrb[0].mxu0
        %v6419 = vadd.f32 %v6378, %v6418
        %v6420 = vpop.f32.mrb[0].mxu0
        %v6421 = vadd.f32 %v6380, %v6420
        %v6422 = vpop.f32.mrb[0].mxu0
        %v6423 = vpop.f32.mrb[0].mxu0
        %6424 = vdwg.mxu0
        %6425 = vmatprep.subr.bf16.mxu0 %v4415
        %6426 = vmatpush1.bf16.msra.mxu0 %v4414
        %6427 = vmatprep.subr.bf16.mxu0 %v4417
        %6428 = vmatpush1.bf16.msra.mxu0 %v4416
        %6429 = vmatprep.subr.bf16.mxu0 %v4419
        %6430 = vmatpush1.bf16.msra.mxu0 %v4418
        %6431 = vmatprep.subr.bf16.mxu0 %v4421
        %6432 = vmatpush1.bf16.msra.mxu0 %v4420
        %6433 = vmatprep.subr.bf16.mxu0 %v4423
        %6434 = vmatpush1.bf16.msra.mxu0 %v4422
        %6435 = vmatprep.subr.bf16.mxu0 %v4425
        %6436 = vmatpush1.bf16.msra.mxu0 %v4424
        %6437 = vmatprep.subr.bf16.mxu0 %v4427
        %6438 = vmatpush1.bf16.msra.mxu0 %v4426
        %6439 = vmatprep.subr.bf16.mxu0 %v4429
        %6440 = vmatpush1.bf16.msra.mxu0 %v4428
        %6441 = vmatprep.subr.bf16.mxu0 %v4431
        %6442 = vmatpush1.bf16.msra.mxu0 %v4430
        %6443 = vmatprep.subr.bf16.mxu0 %v4433
        %6444 = vmatpush1.bf16.msra.mxu0 %v4432
        %6445 = vmatprep.subr.bf16.mxu0 %v4435
        %6446 = vmatpush1.bf16.msra.mxu0 %v4434
        %6447 = vmatprep.subr.bf16.mxu0 %v4437
        %6448 = vmatpush1.bf16.msra.mxu0 %v4436
        %6449 = vmatprep.subr.bf16.mxu0 %v4439
        %6450 = vmatpush1.bf16.msra.mxu0 %v4438
        %6451 = vmatprep.subr.bf16.mxu0 %v4441
        %6452 = vmatpush1.bf16.msra.mxu0 %v4440
        %6453 = vmatprep.subr.bf16.mxu0 %v4443
        %6454 = vmatpush1.bf16.msra.mxu0 %v4442
        %6455 = vmatprep.subr.bf16.mxu0 %v4445
        %6456 = vmatpush1.bf16.msra.mxu0 %v4444
        %6457 = vmatprep.mubr.bf16.mxu0 %v283
        %6458 = vmatmul.mubr.bf16.gmra.mrb[0].mxu0 %v282
        %v6459 = vpop.f32.mrb[0].mxu0
        %v6460 = vadd.f32 %v6419, %v6459
        %v6461 = vpop.f32.mrb[0].mxu0
        %v6462 = vadd.f32 %v6421, %v6461
        %v6463 = vpop.f32.mrb[0].mxu0
        %v6464 = vpop.f32.mrb[0].mxu0
        %6465 = vdwg.mxu0
        %6466 = vmatprep.subr.bf16.mxu0 %v4447
        %6467 = vmatpush1.bf16.msra.mxu0 %v4446
        %6468 = vmatprep.subr.bf16.mxu0 %v4449
        %6469 = vmatpush1.bf16.msra.mxu0 %v4448
        %6470 = vmatprep.subr.bf16.mxu0 %v4451
        %6471 = vmatpush1.bf16.msra.mxu0 %v4450
        %6472 = vmatprep.subr.bf16.mxu0 %v4453
        %6473 = vmatpush1.bf16.msra.mxu0 %v4452
        %6474 = vmatprep.subr.bf16.mxu0 %v4455
        %6475 = vmatpush1.bf16.msra.mxu0 %v4454
        %6476 = vmatprep.subr.bf16.mxu0 %v4457
        %6477 = vmatpush1.bf16.msra.mxu0 %v4456
        %6478 = vmatprep.subr.bf16.mxu0 %v4459
        %6479 = vmatpush1.bf16.msra.mxu0 %v4458
        %6480 = vmatprep.subr.bf16.mxu0 %v4461
        %6481 = vmatpush1.bf16.msra.mxu0 %v4460
        %6482 = vmatprep.subr.bf16.mxu0 %v4463
        %6483 = vmatpush1.bf16.msra.mxu0 %v4462
        %6484 = vmatprep.subr.bf16.mxu0 %v4465
        %6485 = vmatpush1.bf16.msra.mxu0 %v4464
        %6486 = vmatprep.subr.bf16.mxu0 %v4467
        %6487 = vmatpush1.bf16.msra.mxu0 %v4466
        %6488 = vmatprep.subr.bf16.mxu0 %v4469
        %6489 = vmatpush1.bf16.msra.mxu0 %v4468
        %6490 = vmatprep.subr.bf16.mxu0 %v4471
        %6491 = vmatpush1.bf16.msra.mxu0 %v4470
        %6492 = vmatprep.subr.bf16.mxu0 %v4473
        %6493 = vmatpush1.bf16.msra.mxu0 %v4472
        %6494 = vmatprep.subr.bf16.mxu0 %v4475
        %6495 = vmatpush1.bf16.msra.mxu0 %v4474
        %6496 = vmatprep.subr.bf16.mxu0 %v4477
        %6497 = vmatpush1.bf16.msra.mxu0 %v4476
        %6498 = vmatprep.mubr.bf16.mxu0 %v285
        %6499 = vmatmul.mubr.bf16.gmra.mrb[0].mxu0 %v284
        %v6500 = vpop.f32.mrb[0].mxu0
        %v6501 = vadd.f32 %v6460, %v6500
        %v6502 = vpop.f32.mrb[0].mxu0
        %v6503 = vadd.f32 %v6462, %v6502
        %v6504 = vpop.f32.mrb[0].mxu0
        %v6505 = vpop.f32.mrb[0].mxu0
        %6506 = vdwg.mxu0
        %6507 = vmatprep.subr.bf16.mxu0 %v4479
        %6508 = vmatpush1.bf16.msra.mxu0 %v4478
        %6509 = vmatprep.subr.bf16.mxu0 %v4481
        %6510 = vmatpush1.bf16.msra.mxu0 %v4480
        %6511 = vmatprep.subr.bf16.mxu0 %v4483
        %6512 = vmatpush1.bf16.msra.mxu0 %v4482
        %6513 = vmatprep.subr.bf16.mxu0 %v4485
        %6514 = vmatpush1.bf16.msra.mxu0 %v4484
        %6515 = vmatprep.subr.bf16.mxu0 %v4487
        %6516 = vmatpush1.bf16.msra.mxu0 %v4486
        %6517 = vmatprep.subr.bf16.mxu0 %v4489
        %6518 = vmatpush1.bf16.msra.mxu0 %v4488
        %6519 = vmatprep.subr.bf16.mxu0 %v4491
        %6520 = vmatpush1.bf16.msra.mxu0 %v4490
        %6521 = vmatprep.subr.bf16.mxu0 %v4493
        %6522 = vmatpush1.bf16.msra.mxu0 %v4492
        %6523 = vmatprep.subr.bf16.mxu0 %v4495
        %6524 = vmatpush1.bf16.msra.mxu0 %v4494
        %6525 = vmatprep.subr.bf16.mxu0 %v4497
        %6526 = vmatpush1.bf16.msra.mxu0 %v4496
        %6527 = vmatprep.subr.bf16.mxu0 %v4499
        %6528 = vmatpush1.bf16.msra.mxu0 %v4498
        %6529 = vmatprep.subr.bf16.mxu0 %v4501
        %6530 = vmatpush1.bf16.msra.mxu0 %v4500
        %6531 = vmatprep.subr.bf16.mxu0 %v4503
        %6532 = vmatpush1.bf16.msra.mxu0 %v4502
        %6533 = vmatprep.subr.bf16.mxu0 %v4505
        %6534 = vmatpush1.bf16.msra.mxu0 %v4504
        %6535 = vmatprep.subr.bf16.mxu0 %v4507
        %6536 = vmatpush1.bf16.msra.mxu0 %v4506
        %6537 = vmatprep.subr.bf16.mxu0 %v4509
        %6538 = vmatpush1.bf16.msra.mxu0 %v4508
        %6539 = vmatprep.mubr.bf16.mxu0 %v287
        %6540 = vmatmul.mubr.bf16.gmra.mrb[0].mxu0 %v286
        %v6541 = vpop.f32.mrb[0].mxu0
        %v6542 = vadd.f32 %v6501, %v6541
        %v6543 = vpop.f32.mrb[0].mxu0
        %v6544 = vadd.f32 %v6503, %v6543
        %v6545 = vpop.f32.mrb[0].mxu0
        %v6546 = vpop.f32.mrb[0].mxu0
        %6547 = vdwg.mxu0
        %6548 = vmatprep.subr.bf16.mxu0 %v4511
        %6549 = vmatpush1.bf16.msra.mxu0 %v4510
        %6550 = vmatprep.subr.bf16.mxu0 %v4513
        %6551 = vmatpush1.bf16.msra.mxu0 %v4512
        %6552 = vmatprep.subr.bf16.mxu0 %v4515
        %6553 = vmatpush1.bf16.msra.mxu0 %v4514
        %6554 = vmatprep.subr.bf16.mxu0 %v4517
        %6555 = vmatpush1.bf16.msra.mxu0 %v4516
        %6556 = vmatprep.subr.bf16.mxu0 %v4519
        %6557 = vmatpush1.bf16.msra.mxu0 %v4518
        %6558 = vmatprep.subr.bf16.mxu0 %v4521
        %6559 = vmatpush1.bf16.msra.mxu0 %v4520
        %6560 = vmatprep.subr.bf16.mxu0 %v4523
        %6561 = vmatpush1.bf16.msra.mxu0 %v4522
        %6562 = vmatprep.subr.bf16.mxu0 %v4525
        %6563 = vmatpush1.bf16.msra.mxu0 %v4524
        %6564 = vmatprep.subr.bf16.mxu0 %v4527
        %6565 = vmatpush1.bf16.msra.mxu0 %v4526
        %6566 = vmatprep.subr.bf16.mxu0 %v4529
        %6567 = vmatpush1.bf16.msra.mxu0 %v4528
        %6568 = vmatprep.subr.bf16.mxu0 %v4531
        %6569 = vmatpush1.bf16.msra.mxu0 %v4530
        %6570 = vmatprep.subr.bf16.mxu0 %v4533
        %6571 = vmatpush1.bf16.msra.mxu0 %v4532
        %6572 = vmatprep.subr.bf16.mxu0 %v4535
        %6573 = vmatpush1.bf16.msra.mxu0 %v4534
        %6574 = vmatprep.subr.bf16.mxu0 %v4537
        %6575 = vmatpush1.bf16.msra.mxu0 %v4536
        %6576 = vmatprep.subr.bf16.mxu0 %v4539
        %6577 = vmatpush1.bf16.msra.mxu0 %v4538
        %6578 = vmatprep.subr.bf16.mxu0 %v4541
        %6579 = vmatpush1.bf16.msra.mxu0 %v4540
        %6580 = vmatprep.mubr.bf16.mxu0 %v289
        %6581 = vmatmul.mubr.bf16.gmra.mrb[0].mxu0 %v288
        %v6582 = vpop.f32.mrb[0].mxu0
        %v6583 = vadd.f32 %v6542, %v6582
        %v6584 = vpop.f32.mrb[0].mxu0
        %v6585 = vadd.f32 %v6544, %v6584
        %v6586 = vpop.f32.mrb[0].mxu0
        %v6587 = vpop.f32.mrb[0].mxu0
        %6588 = vdwg.mxu0
        %6589 = vmatprep.subr.bf16.mxu0 %v4543
        %6590 = vmatpush1.bf16.msra.mxu0 %v4542
        %6591 = vmatprep.subr.bf16.mxu0 %v4545
        %6592 = vmatpush1.bf16.msra.mxu0 %v4544
        %6593 = vmatprep.subr.bf16.mxu0 %v4547
        %6594 = vmatpush1.bf16.msra.mxu0 %v4546
        %6595 = vmatprep.subr.bf16.mxu0 %v4549
        %6596 = vmatpush1.bf16.msra.mxu0 %v4548
        %6597 = vmatprep.subr.bf16.mxu0 %v4551
        %6598 = vmatpush1.bf16.msra.mxu0 %v4550
        %6599 = vmatprep.subr.bf16.mxu0 %v4553
        %6600 = vmatpush1.bf16.msra.mxu0 %v4552
        %6601 = vmatprep.subr.bf16.mxu0 %v4555
        %6602 = vmatpush1.bf16.msra.mxu0 %v4554
        %6603 = vmatprep.subr.bf16.mxu0 %v4557
        %6604 = vmatpush1.bf16.msra.mxu0 %v4556
        %6605 = vmatprep.subr.bf16.mxu0 %v4559
        %6606 = vmatpush1.bf16.msra.mxu0 %v4558
        %6607 = vmatprep.subr.bf16.mxu0 %v4561
        %6608 = vmatpush1.bf16.msra.mxu0 %v4560
        %6609 = vmatprep.subr.bf16.mxu0 %v4563
        %6610 = vmatpush1.bf16.msra.mxu0 %v4562
        %6611 = vmatprep.subr.bf16.mxu0 %v4565
        %6612 = vmatpush1.bf16.msra.mxu0 %v4564
        %6613 = vmatprep.subr.bf16.mxu0 %v4567
        %6614 = vmatpush1.bf16.msra.mxu0 %v4566
        %6615 = vmatprep.subr.bf16.mxu0 %v4569
        %6616 = vmatpush1.bf16.msra.mxu0 %v4568
        %6617 = vmatprep.subr.bf16.mxu0 %v4571
        %6618 = vmatpush1.bf16.msra.mxu0 %v4570
        %6619 = vmatprep.subr.bf16.mxu0 %v4573
        %6620 = vmatpush1.bf16.msra.mxu0 %v4572
        %6621 = vmatprep.mubr.bf16.mxu0 %v291
        %6622 = vmatmul.mubr.bf16.gmra.mrb[0].mxu0 %v290
        %v6623 = vpop.f32.mrb[0].mxu0
        %v6624 = vadd.f32 %v6583, %v6623
        %v6625 = vpop.f32.mrb[0].mxu0
        %v6626 = vadd.f32 %v6585, %v6625
        %v6627 = vpop.f32.mrb[0].mxu0
        %v6628 = vpop.f32.mrb[0].mxu0
        %6629 = vdwg.mxu0
        %6630 = vmatprep.subr.bf16.mxu0 %v4575
        %6631 = vmatpush1.bf16.msra.mxu0 %v4574
        %6632 = vmatprep.subr.bf16.mxu0 %v4577
        %6633 = vmatpush1.bf16.msra.mxu0 %v4576
        %6634 = vmatprep.subr.bf16.mxu0 %v4579
        %6635 = vmatpush1.bf16.msra.mxu0 %v4578
        %6636 = vmatprep.subr.bf16.mxu0 %v4581
        %6637 = vmatpush1.bf16.msra.mxu0 %v4580
        %6638 = vmatprep.subr.bf16.mxu0 %v4583
        %6639 = vmatpush1.bf16.msra.mxu0 %v4582
        %6640 = vmatprep.subr.bf16.mxu0 %v4585
        %6641 = vmatpush1.bf16.msra.mxu0 %v4584
        %6642 = vmatprep.subr.bf16.mxu0 %v4587
        %6643 = vmatpush1.bf16.msra.mxu0 %v4586
        %6644 = vmatprep.subr.bf16.mxu0 %v4589
        %6645 = vmatpush1.bf16.msra.mxu0 %v4588
        %6646 = vmatprep.subr.bf16.mxu0 %v4591
        %6647 = vmatpush1.bf16.msra.mxu0 %v4590
        %6648 = vmatprep.subr.bf16.mxu0 %v4593
        %6649 = vmatpush1.bf16.msra.mxu0 %v4592
        %6650 = vmatprep.subr.bf16.mxu0 %v4595
        %6651 = vmatpush1.bf16.msra.mxu0 %v4594
        %6652 = vmatprep.subr.bf16.mxu0 %v4597
        %6653 = vmatpush1.bf16.msra.mxu0 %v4596
        %6654 = vmatprep.subr.bf16.mxu0 %v4599
        %6655 = vmatpush1.bf16.msra.mxu0 %v4598
        %6656 = vmatprep.subr.bf16.mxu0 %v4601
        %6657 = vmatpush1.bf16.msra.mxu0 %v4600
        %6658 = vmatprep.subr.bf16.mxu0 %v4603
        %6659 = vmatpush1.bf16.msra.mxu0 %v4602
        %6660 = vmatprep.subr.bf16.mxu0 %v4605
        %6661 = vmatpush1.bf16.msra.mxu0 %v4604
        %6662 = vmatprep.mubr.bf16.mxu0 %v293
        %6663 = vmatmul.mubr.bf16.gmra.mrb[0].mxu0 %v292
        %v6664 = vpop.f32.mrb[0].mxu0
        %v6665 = vadd.f32 %v6624, %v6664
        %v6666 = vpop.f32.mrb[0].mxu0
        %v6667 = vadd.f32 %v6626, %v6666
        %v6668 = vpop.f32.mrb[0].mxu0
        %v6669 = vpop.f32.mrb[0].mxu0
        %6670 = vdwg.mxu0
        %6671 = vmatprep.subr.bf16.mxu0 %v4607
        %6672 = vmatpush1.bf16.msra.mxu0 %v4606
        %6673 = vmatprep.subr.bf16.mxu0 %v4609
        %6674 = vmatpush1.bf16.msra.mxu0 %v4608
        %6675 = vmatprep.subr.bf16.mxu0 %v4611
        %6676 = vmatpush1.bf16.msra.mxu0 %v4610
        %6677 = vmatprep.subr.bf16.mxu0 %v4613
        %6678 = vmatpush1.bf16.msra.mxu0 %v4612
        %6679 = vmatprep.subr.bf16.mxu0 %v4615
        %6680 = vmatpush1.bf16.msra.mxu0 %v4614
        %6681 = vmatprep.subr.bf16.mxu0 %v4617
        %6682 = vmatpush1.bf16.msra.mxu0 %v4616
        %6683 = vmatprep.subr.bf16.mxu0 %v4619
        %6684 = vmatpush1.bf16.msra.mxu0 %v4618
        %6685 = vmatprep.subr.bf16.mxu0 %v4621
        %6686 = vmatpush1.bf16.msra.mxu0 %v4620
        %6687 = vmatprep.subr.bf16.mxu0 %v4623
        %6688 = vmatpush1.bf16.msra.mxu0 %v4622
        %6689 = vmatprep.subr.bf16.mxu0 %v4625
        %6690 = vmatpush1.bf16.msra.mxu0 %v4624
        %6691 = vmatprep.subr.bf16.mxu0 %v4627
        %6692 = vmatpush1.bf16.msra.mxu0 %v4626
        %6693 = vmatprep.subr.bf16.mxu0 %v4629
        %6694 = vmatpush1.bf16.msra.mxu0 %v4628
        %6695 = vmatprep.subr.bf16.mxu0 %v4631
        %6696 = vmatpush1.bf16.msra.mxu0 %v4630
        %6697 = vmatprep.subr.bf16.mxu0 %v4633
        %6698 = vmatpush1.bf16.msra.mxu0 %v4632
        %6699 = vmatprep.subr.bf16.mxu0 %v4635
        %6700 = vmatpush1.bf16.msra.mxu0 %v4634
        %6701 = vmatprep.subr.bf16.mxu0 %v4637
        %6702 = vmatpush1.bf16.msra.mxu0 %v4636
        %6703 = vmatprep.mubr.bf16.mxu0 %v295
        %6704 = vmatmul.mubr.bf16.gmra.mrb[0].mxu0 %v294
        %v6705 = vpop.f32.mrb[0].mxu0
        %v6706 = vadd.f32 %v6665, %v6705
        %v6707 = vpop.f32.mrb[0].mxu0
        %v6708 = vadd.f32 %v6667, %v6707
        %v6709 = vpop.f32.mrb[0].mxu0
        %v6710 = vpop.f32.mrb[0].mxu0
        %6711 = vdwg.mxu0
        %6712 = vmatprep.subr.bf16.mxu0 %v4639
        %6713 = vmatpush1.bf16.msra.mxu0 %v4638
        %6714 = vmatprep.subr.bf16.mxu0 %v4641
        %6715 = vmatpush1.bf16.msra.mxu0 %v4640
        %6716 = vmatprep.subr.bf16.mxu0 %v4643
        %6717 = vmatpush1.bf16.msra.mxu0 %v4642
        %6718 = vmatprep.subr.bf16.mxu0 %v4645
        %6719 = vmatpush1.bf16.msra.mxu0 %v4644
        %6720 = vmatprep.subr.bf16.mxu0 %v4647
        %6721 = vmatpush1.bf16.msra.mxu0 %v4646
        %6722 = vmatprep.subr.bf16.mxu0 %v4649
        %6723 = vmatpush1.bf16.msra.mxu0 %v4648
        %6724 = vmatprep.subr.bf16.mxu0 %v4651
        %6725 = vmatpush1.bf16.msra.mxu0 %v4650
        %6726 = vmatprep.subr.bf16.mxu0 %v4653
        %6727 = vmatpush1.bf16.msra.mxu0 %v4652
        %6728 = vmatprep.subr.bf16.mxu0 %v4655
        %6729 = vmatpush1.bf16.msra.mxu0 %v4654
        %6730 = vmatprep.subr.bf16.mxu0 %v4657
        %6731 = vmatpush1.bf16.msra.mxu0 %v4656
        %6732 = vmatprep.subr.bf16.mxu0 %v4659
        %6733 = vmatpush1.bf16.msra.mxu0 %v4658
        %6734 = vmatprep.subr.bf16.mxu0 %v4661
        %6735 = vmatpush1.bf16.msra.mxu0 %v4660
        %6736 = vmatprep.subr.bf16.mxu0 %v4663
        %6737 = vmatpush1.bf16.msra.mxu0 %v4662
        %6738 = vmatprep.subr.bf16.mxu0 %v4665
        %6739 = vmatpush1.bf16.msra.mxu0 %v4664
        %6740 = vmatprep.subr.bf16.mxu0 %v4667
        %6741 = vmatpush1.bf16.msra.mxu0 %v4666
        %6742 = vmatprep.subr.bf16.mxu0 %v4669
        %6743 = vmatpush1.bf16.msra.mxu0 %v4668
        %6744 = vmatprep.mubr.bf16.mxu0 %v297
        %6745 = vmatmul.mubr.bf16.gmra.mrb[0].mxu0 %v296
        %v6746 = vpop.f32.mrb[0].mxu0
        %v6747 = vadd.f32 %v6706, %v6746
        %v6748 = vpop.f32.mrb[0].mxu0
        %v6749 = vadd.f32 %v6708, %v6748
        %v6750 = vpop.f32.mrb[0].mxu0
        %v6751 = vpop.f32.mrb[0].mxu0
        %6752 = vdwg.mxu0
        %6753 = vmatprep.subr.bf16.mxu0 %v4671
        %6754 = vmatpush1.bf16.msra.mxu0 %v4670
        %6755 = vmatprep.subr.bf16.mxu0 %v4673
        %6756 = vmatpush1.bf16.msra.mxu0 %v4672
        %6757 = vmatprep.subr.bf16.mxu0 %v4675
        %6758 = vmatpush1.bf16.msra.mxu0 %v4674
        %6759 = vmatprep.subr.bf16.mxu0 %v4677
        %6760 = vmatpush1.bf16.msra.mxu0 %v4676
        %6761 = vmatprep.subr.bf16.mxu0 %v4679
        %6762 = vmatpush1.bf16.msra.mxu0 %v4678
        %6763 = vmatprep.subr.bf16.mxu0 %v4681
        %6764 = vmatpush1.bf16.msra.mxu0 %v4680
        %6765 = vmatprep.subr.bf16.mxu0 %v4683
        %6766 = vmatpush1.bf16.msra.mxu0 %v4682
        %6767 = vmatprep.subr.bf16.mxu0 %v4685
        %6768 = vmatpush1.bf16.msra.mxu0 %v4684
        %6769 = vmatprep.subr.bf16.mxu0 %v4687
        %6770 = vmatpush1.bf16.msra.mxu0 %v4686
        %6771 = vmatprep.subr.bf16.mxu0 %v4689
        %6772 = vmatpush1.bf16.msra.mxu0 %v4688
        %6773 = vmatprep.subr.bf16.mxu0 %v4691
        %6774 = vmatpush1.bf16.msra.mxu0 %v4690
        %6775 = vmatprep.subr.bf16.mxu0 %v4693
        %6776 = vmatpush1.bf16.msra.mxu0 %v4692
        %6777 = vmatprep.subr.bf16.mxu0 %v4695
        %6778 = vmatpush1.bf16.msra.mxu0 %v4694
        %6779 = vmatprep.subr.bf16.mxu0 %v4697
        %6780 = vmatpush1.bf16.msra.mxu0 %v4696
        %6781 = vmatprep.subr.bf16.mxu0 %v4699
        %6782 = vmatpush1.bf16.msra.mxu0 %v4698
        %6783 = vmatprep.subr.bf16.mxu0 %v4701
        %6784 = vmatpush1.bf16.msra.mxu0 %v4700
        %6785 = vmatprep.mubr.bf16.mxu0 %v299
        %6786 = vmatmul.mubr.bf16.gmra.mrb[0].mxu0 %v298
        %v6787 = vpop.f32.mrb[0].mxu0
        %v6788 = vadd.f32 %v6747, %v6787
        %v6789 = vpop.f32.mrb[0].mxu0
        %v6790 = vadd.f32 %v6749, %v6789
        %v6791 = vpop.f32.mrb[0].mxu0
        %v6792 = vpop.f32.mrb[0].mxu0
        %6793 = vdwg.mxu0
        %6794 = vmatprep.subr.bf16.mxu0 %v4703
        %6795 = vmatpush1.bf16.msra.mxu0 %v4702
        %6796 = vmatprep.subr.bf16.mxu0 %v4705
        %6797 = vmatpush1.bf16.msra.mxu0 %v4704
        %6798 = vmatprep.subr.bf16.mxu0 %v4707
        %6799 = vmatpush1.bf16.msra.mxu0 %v4706
        %6800 = vmatprep.subr.bf16.mxu0 %v4709
        %6801 = vmatpush1.bf16.msra.mxu0 %v4708
        %6802 = vmatprep.subr.bf16.mxu0 %v4711
        %6803 = vmatpush1.bf16.msra.mxu0 %v4710
        %6804 = vmatprep.subr.bf16.mxu0 %v4713
        %6805 = vmatpush1.bf16.msra.mxu0 %v4712
        %6806 = vmatprep.subr.bf16.mxu0 %v4715
        %6807 = vmatpush1.bf16.msra.mxu0 %v4714
        %6808 = vmatprep.subr.bf16.mxu0 %v4717
        %6809 = vmatpush1.bf16.msra.mxu0 %v4716
        %6810 = vmatprep.subr.bf16.mxu0 %v4719
        %6811 = vmatpush1.bf16.msra.mxu0 %v4718
        %6812 = vmatprep.subr.bf16.mxu0 %v4721
        %6813 = vmatpush1.bf16.msra.mxu0 %v4720
        %6814 = vmatprep.subr.bf16.mxu0 %v4723
        %6815 = vmatpush1.bf16.msra.mxu0 %v4722
        %6816 = vmatprep.subr.bf16.mxu0 %v4725
        %6817 = vmatpush1.bf16.msra.mxu0 %v4724
        %6818 = vmatprep.subr.bf16.mxu0 %v4727
        %6819 = vmatpush1.bf16.msra.mxu0 %v4726
        %6820 = vmatprep.subr.bf16.mxu0 %v4729
        %6821 = vmatpush1.bf16.msra.mxu0 %v4728
        %6822 = vmatprep.subr.bf16.mxu0 %v4731
        %6823 = vmatpush1.bf16.msra.mxu0 %v4730
        %6824 = vmatprep.subr.bf16.mxu0 %v4733
        %6825 = vmatpush1.bf16.msra.mxu0 %v4732
        %6826 = vmatprep.mubr.bf16.mxu0 %v301
        %6827 = vmatmul.mubr.bf16.gmra.mrb[0].mxu0 %v300
        %v6828 = vpop.f32.mrb[0].mxu0
        %v6829 = vadd.f32 %v6788, %v6828
        %v6830 = vpop.f32.mrb[0].mxu0
        %v6831 = vadd.f32 %v6790, %v6830
        %v6832 = vpop.f32.mrb[0].mxu0
        %v6833 = vpop.f32.mrb[0].mxu0
        %6834 = vdwg.mxu0
        %6835 = vmatprep.subr.bf16.mxu0 %v4735
        %6836 = vmatpush1.bf16.msra.mxu0 %v4734
        %6837 = vmatprep.subr.bf16.mxu0 %v4737
        %6838 = vmatpush1.bf16.msra.mxu0 %v4736
        %6839 = vmatprep.subr.bf16.mxu0 %v4739
        %6840 = vmatpush1.bf16.msra.mxu0 %v4738
        %6841 = vmatprep.subr.bf16.mxu0 %v4741
        %6842 = vmatpush1.bf16.msra.mxu0 %v4740
        %6843 = vmatprep.subr.bf16.mxu0 %v4743
        %6844 = vmatpush1.bf16.msra.mxu0 %v4742
        %6845 = vmatprep.subr.bf16.mxu0 %v4745
        %6846 = vmatpush1.bf16.msra.mxu0 %v4744
        %6847 = vmatprep.subr.bf16.mxu0 %v4747
        %6848 = vmatpush1.bf16.msra.mxu0 %v4746
        %6849 = vmatprep.subr.bf16.mxu0 %v4749
        %6850 = vmatpush1.bf16.msra.mxu0 %v4748
        %6851 = vmatprep.subr.bf16.mxu0 %v4751
        %6852 = vmatpush1.bf16.msra.mxu0 %v4750
        %6853 = vmatprep.subr.bf16.mxu0 %v4753
        %6854 = vmatpush1.bf16.msra.mxu0 %v4752
        %6855 = vmatprep.subr.bf16.mxu0 %v4755
        %6856 = vmatpush1.bf16.msra.mxu0 %v4754
        %6857 = vmatprep.subr.bf16.mxu0 %v4757
        %6858 = vmatpush1.bf16.msra.mxu0 %v4756
        %6859 = vmatprep.subr.bf16.mxu0 %v4759
        %6860 = vmatpush1.bf16.msra.mxu0 %v4758
        %6861 = vmatprep.subr.bf16.mxu0 %v4761
        %6862 = vmatpush1.bf16.msra.mxu0 %v4760
        %6863 = vmatprep.subr.bf16.mxu0 %v4763
        %6864 = vmatpush1.bf16.msra.mxu0 %v4762
        %6865 = vmatprep.subr.bf16.mxu0 %v4765
        %6866 = vmatpush1.bf16.msra.mxu0 %v4764
        %6867 = vmatprep.mubr.bf16.mxu0 %v303
        %6868 = vmatmul.mubr.bf16.gmra.mrb[0].mxu0 %v302
        %v6869 = vpop.f32.mrb[0].mxu0
        %v6870 = vadd.f32 %v6829, %v6869
        %v6871 = vpop.f32.mrb[0].mxu0
        %v6872 = vadd.f32 %v6831, %v6871
        %v6873 = vpop.f32.mrb[0].mxu0
        %v6874 = vpop.f32.mrb[0].mxu0
        %6875 = vdwg.mxu0
        %6876 = vmatprep.subr.bf16.mxu0 %v4767
        %6877 = vmatpush1.bf16.msra.mxu0 %v4766
        %6878 = vmatprep.subr.bf16.mxu0 %v4769
        %6879 = vmatpush1.bf16.msra.mxu0 %v4768
        %6880 = vmatprep.subr.bf16.mxu0 %v4771
        %6881 = vmatpush1.bf16.msra.mxu0 %v4770
        %6882 = vmatprep.subr.bf16.mxu0 %v4773
        %6883 = vmatpush1.bf16.msra.mxu0 %v4772
        %6884 = vmatprep.subr.bf16.mxu0 %v4775
        %6885 = vmatpush1.bf16.msra.mxu0 %v4774
        %6886 = vmatprep.subr.bf16.mxu0 %v4777
        %6887 = vmatpush1.bf16.msra.mxu0 %v4776
        %6888 = vmatprep.subr.bf16.mxu0 %v4779
        %6889 = vmatpush1.bf16.msra.mxu0 %v4778
        %6890 = vmatprep.subr.bf16.mxu0 %v4781
        %6891 = vmatpush1.bf16.msra.mxu0 %v4780
        %6892 = vmatprep.subr.bf16.mxu0 %v4783
        %6893 = vmatpush1.bf16.msra.mxu0 %v4782
        %6894 = vmatprep.subr.bf16.mxu0 %v4785
        %6895 = vmatpush1.bf16.msra.mxu0 %v4784
        %6896 = vmatprep.subr.bf16.mxu0 %v4787
        %6897 = vmatpush1.bf16.msra.mxu0 %v4786
        %6898 = vmatprep.subr.bf16.mxu0 %v4789
        %6899 = vmatpush1.bf16.msra.mxu0 %v4788
        %6900 = vmatprep.subr.bf16.mxu0 %v4791
        %6901 = vmatpush1.bf16.msra.mxu0 %v4790
        %6902 = vmatprep.subr.bf16.mxu0 %v4793
        %6903 = vmatpush1.bf16.msra.mxu0 %v4792
        %6904 = vmatprep.subr.bf16.mxu0 %v4795
        %6905 = vmatpush1.bf16.msra.mxu0 %v4794
        %6906 = vmatprep.subr.bf16.mxu0 %v4797
        %6907 = vmatpush1.bf16.msra.mxu0 %v4796
        %6908 = vmatprep.mubr.bf16.mxu0 %v305
        %6909 = vmatmul.mubr.bf16.gmra.mrb[0].mxu0 %v304
        %v6910 = vpop.f32.mrb[0].mxu0
        %v6911 = vadd.f32 %v6870, %v6910
        %v6912 = vpop.f32.mrb[0].mxu0
        %v6913 = vadd.f32 %v6872, %v6912
        %v6914 = vpop.f32.mrb[0].mxu0
        %v6915 = vpop.f32.mrb[0].mxu0
        %6916 = vdwg.mxu0
        %6917 = vmatprep.subr.bf16.mxu0 %v4799
        %6918 = vmatpush1.bf16.msra.mxu0 %v4798
        %6919 = vmatprep.subr.bf16.mxu0 %v4801
        %6920 = vmatpush1.bf16.msra.mxu0 %v4800
        %6921 = vmatprep.subr.bf16.mxu0 %v4803
        %6922 = vmatpush1.bf16.msra.mxu0 %v4802
        %6923 = vmatprep.subr.bf16.mxu0 %v4805
        %6924 = vmatpush1.bf16.msra.mxu0 %v4804
        %6925 = vmatprep.subr.bf16.mxu0 %v4807
        %6926 = vmatpush1.bf16.msra.mxu0 %v4806
        %6927 = vmatprep.subr.bf16.mxu0 %v4809
        %6928 = vmatpush1.bf16.msra.mxu0 %v4808
        %6929 = vmatprep.subr.bf16.mxu0 %v4811
        %6930 = vmatpush1.bf16.msra.mxu0 %v4810
        %6931 = vmatprep.subr.bf16.mxu0 %v4813
        %6932 = vmatpush1.bf16.msra.mxu0 %v4812
        %6933 = vmatprep.subr.bf16.mxu0 %v4815
        %6934 = vmatpush1.bf16.msra.mxu0 %v4814
        %6935 = vmatprep.subr.bf16.mxu0 %v4817
        %6936 = vmatpush1.bf16.msra.mxu0 %v4816
        %6937 = vmatprep.subr.bf16.mxu0 %v4819
        %6938 = vmatpush1.bf16.msra.mxu0 %v4818
        %6939 = vmatprep.subr.bf16.mxu0 %v4821
        %6940 = vmatpush1.bf16.msra.mxu0 %v4820
        %6941 = vmatprep.subr.bf16.mxu0 %v4823
        %6942 = vmatpush1.bf16.msra.mxu0 %v4822
        %6943 = vmatprep.subr.bf16.mxu0 %v4825
        %6944 = vmatpush1.bf16.msra.mxu0 %v4824
        %6945 = vmatprep.subr.bf16.mxu0 %v4827
        %6946 = vmatpush1.bf16.msra.mxu0 %v4826
        %6947 = vmatprep.subr.bf16.mxu0 %v4829
        %6948 = vmatpush1.bf16.msra.mxu0 %v4828
        %6949 = vmatprep.mubr.bf16.mxu0 %v307
        %6950 = vmatmul.mubr.bf16.gmra.mrb[0].mxu0 %v306
        %v6951 = vpop.f32.mrb[0].mxu0
        %v6952 = vadd.f32 %v6911, %v6951
        %v6953 = vpop.f32.mrb[0].mxu0
        %v6954 = vadd.f32 %v6913, %v6953
        %v6955 = vpop.f32.mrb[0].mxu0
        %v6956 = vpop.f32.mrb[0].mxu0
        %6957 = vdwg.mxu0
        %6958 = vmatprep.subr.bf16.mxu0 %v4831
        %6959 = vmatpush1.bf16.msra.mxu0 %v4830
        %6960 = vmatprep.subr.bf16.mxu0 %v4833
        %6961 = vmatpush1.bf16.msra.mxu0 %v4832
        %6962 = vmatprep.subr.bf16.mxu0 %v4835
        %6963 = vmatpush1.bf16.msra.mxu0 %v4834
        %6964 = vmatprep.subr.bf16.mxu0 %v4837
        %6965 = vmatpush1.bf16.msra.mxu0 %v4836
        %6966 = vmatprep.subr.bf16.mxu0 %v4839
        %6967 = vmatpush1.bf16.msra.mxu0 %v4838
        %6968 = vmatprep.subr.bf16.mxu0 %v4841
        %6969 = vmatpush1.bf16.msra.mxu0 %v4840
        %6970 = vmatprep.subr.bf16.mxu0 %v4843
        %6971 = vmatpush1.bf16.msra.mxu0 %v4842
        %6972 = vmatprep.subr.bf16.mxu0 %v4845
        %6973 = vmatpush1.bf16.msra.mxu0 %v4844
        %6974 = vmatprep.subr.bf16.mxu0 %v4847
        %6975 = vmatpush1.bf16.msra.mxu0 %v4846
        %6976 = vmatprep.subr.bf16.mxu0 %v4849
        %6977 = vmatpush1.bf16.msra.mxu0 %v4848
        %6978 = vmatprep.subr.bf16.mxu0 %v4851
        %6979 = vmatpush1.bf16.msra.mxu0 %v4850
        %6980 = vmatprep.subr.bf16.mxu0 %v4853
        %6981 = vmatpush1.bf16.msra.mxu0 %v4852
        %6982 = vmatprep.subr.bf16.mxu0 %v4855
        %6983 = vmatpush1.bf16.msra.mxu0 %v4854
        %6984 = vmatprep.subr.bf16.mxu0 %v4857
        %6985 = vmatpush1.bf16.msra.mxu0 %v4856
        %6986 = vmatprep.subr.bf16.mxu0 %v4859
        %6987 = vmatpush1.bf16.msra.mxu0 %v4858
        %6988 = vmatprep.subr.bf16.mxu0 %v4861
        %6989 = vmatpush1.bf16.msra.mxu0 %v4860
        %6990 = vmatprep.mubr.bf16.mxu0 %v309
        %6991 = vmatmul.mubr.bf16.gmra.mrb[0].mxu0 %v308
        %v6992 = vpop.f32.mrb[0].mxu0
        %v6993 = vadd.f32 %v6952, %v6992
        %v6994 = vpop.f32.mrb[0].mxu0
        %v6995 = vadd.f32 %v6954, %v6994
        %v6996 = vpop.f32.mrb[0].mxu0
        %v6997 = vpop.f32.mrb[0].mxu0
        %6998 = vdwg.mxu0
        %6999 = vmatprep.subr.bf16.mxu0 %v4863
        %7000 = vmatpush1.bf16.msra.mxu0 %v4862
        %7001 = vmatprep.subr.bf16.mxu0 %v4865
        %7002 = vmatpush1.bf16.msra.mxu0 %v4864
        %7003 = vmatprep.subr.bf16.mxu0 %v4867
        %7004 = vmatpush1.bf16.msra.mxu0 %v4866
        %7005 = vmatprep.subr.bf16.mxu0 %v4869
        %7006 = vmatpush1.bf16.msra.mxu0 %v4868
        %7007 = vmatprep.subr.bf16.mxu0 %v4871
        %7008 = vmatpush1.bf16.msra.mxu0 %v4870
        %7009 = vmatprep.subr.bf16.mxu0 %v4873
        %7010 = vmatpush1.bf16.msra.mxu0 %v4872
        %7011 = vmatprep.subr.bf16.mxu0 %v4875
        %7012 = vmatpush1.bf16.msra.mxu0 %v4874
        %7013 = vmatprep.subr.bf16.mxu0 %v4877
        %7014 = vmatpush1.bf16.msra.mxu0 %v4876
        %7015 = vmatprep.subr.bf16.mxu0 %v4879
        %7016 = vmatpush1.bf16.msra.mxu0 %v4878
        %7017 = vmatprep.subr.bf16.mxu0 %v4881
        %7018 = vmatpush1.bf16.msra.mxu0 %v4880
        %7019 = vmatprep.subr.bf16.mxu0 %v4883
        %7020 = vmatpush1.bf16.msra.mxu0 %v4882
        %7021 = vmatprep.subr.bf16.mxu0 %v4885
        %7022 = vmatpush1.bf16.msra.mxu0 %v4884
        %7023 = vmatprep.subr.bf16.mxu0 %v4887
        %7024 = vmatpush1.bf16.msra.mxu0 %v4886
        %7025 = vmatprep.subr.bf16.mxu0 %v4889
        %7026 = vmatpush1.bf16.msra.mxu0 %v4888
        %7027 = vmatprep.subr.bf16.mxu0 %v4891
        %7028 = vmatpush1.bf16.msra.mxu0 %v4890
        %7029 = vmatprep.subr.bf16.mxu0 %v4893
        %7030 = vmatpush1.bf16.msra.mxu0 %v4892
        %7031 = vmatprep.mubr.bf16.mxu0 %v311
        %7032 = vmatmul.mubr.bf16.gmra.mrb[0].mxu0 %v310
        %v7033 = vpop.f32.mrb[0].mxu0
        %v7034 = vadd.f32 %v6993, %v7033
        %v7035 = vpop.f32.mrb[0].mxu0
        %v7036 = vadd.f32 %v6995, %v7035
        %v7037 = vpop.f32.mrb[0].mxu0
        %v7038 = vpop.f32.mrb[0].mxu0
        %7039 = vdwg.mxu0
        %7040 = vmatprep.subr.bf16.mxu0 %v4895
        %7041 = vmatpush1.bf16.msra.mxu0 %v4894
        %7042 = vmatprep.subr.bf16.mxu0 %v4897
        %7043 = vmatpush1.bf16.msra.mxu0 %v4896
        %7044 = vmatprep.subr.bf16.mxu0 %v4899
        %7045 = vmatpush1.bf16.msra.mxu0 %v4898
        %7046 = vmatprep.subr.bf16.mxu0 %v4901
        %7047 = vmatpush1.bf16.msra.mxu0 %v4900
        %7048 = vmatprep.subr.bf16.mxu0 %v4903
        %7049 = vmatpush1.bf16.msra.mxu0 %v4902
        %7050 = vmatprep.subr.bf16.mxu0 %v4905
        %7051 = vmatpush1.bf16.msra.mxu0 %v4904
        %7052 = vmatprep.subr.bf16.mxu0 %v4907
        %7053 = vmatpush1.bf16.msra.mxu0 %v4906
        %7054 = vmatprep.subr.bf16.mxu0 %v4909
        %7055 = vmatpush1.bf16.msra.mxu0 %v4908
        %7056 = vmatprep.subr.bf16.mxu0 %v4911
        %7057 = vmatpush1.bf16.msra.mxu0 %v4910
        %7058 = vmatprep.subr.bf16.mxu0 %v4913
        %7059 = vmatpush1.bf16.msra.mxu0 %v4912
        %7060 = vmatprep.subr.bf16.mxu0 %v4915
        %7061 = vmatpush1.bf16.msra.mxu0 %v4914
        %7062 = vmatprep.subr.bf16.mxu0 %v4917
        %7063 = vmatpush1.bf16.msra.mxu0 %v4916
        %7064 = vmatprep.subr.bf16.mxu0 %v4919
        %7065 = vmatpush1.bf16.msra.mxu0 %v4918
        %7066 = vmatprep.subr.bf16.mxu0 %v4921
        %7067 = vmatpush1.bf16.msra.mxu0 %v4920
        %7068 = vmatprep.subr.bf16.mxu0 %v4923
        %7069 = vmatpush1.bf16.msra.mxu0 %v4922
        %7070 = vmatprep.subr.bf16.mxu0 %v4925
        %7071 = vmatpush1.bf16.msra.mxu0 %v4924
        %7072 = vmatprep.mubr.bf16.mxu0 %v313
        %7073 = vmatmul.mubr.bf16.gmra.mrb[0].mxu0 %v312
        %v7074 = vpop.f32.mrb[0].mxu0
        %v7075 = vadd.f32 %v7034, %v7074
        %v7076 = vpop.f32.mrb[0].mxu0
        %v7077 = vadd.f32 %v7036, %v7076
        %v7078 = vpop.f32.mrb[0].mxu0
        %v7079 = vpop.f32.mrb[0].mxu0
        %7080 = vdwg.mxu0
        %7081 = vmatprep.subr.bf16.mxu0 %v4927
        %7082 = vmatpush1.bf16.msra.mxu0 %v4926
        %7083 = vmatprep.subr.bf16.mxu0 %v4929
        %7084 = vmatpush1.bf16.msra.mxu0 %v4928
        %7085 = vmatprep.subr.bf16.mxu0 %v4931
        %7086 = vmatpush1.bf16.msra.mxu0 %v4930
        %7087 = vmatprep.subr.bf16.mxu0 %v4933
        %7088 = vmatpush1.bf16.msra.mxu0 %v4932
        %7089 = vmatprep.subr.bf16.mxu0 %v4935
        %7090 = vmatpush1.bf16.msra.mxu0 %v4934
        %7091 = vmatprep.subr.bf16.mxu0 %v4937
        %7092 = vmatpush1.bf16.msra.mxu0 %v4936
        %7093 = vmatprep.subr.bf16.mxu0 %v4939
        %7094 = vmatpush1.bf16.msra.mxu0 %v4938
        %7095 = vmatprep.subr.bf16.mxu0 %v4941
        %7096 = vmatpush1.bf16.msra.mxu0 %v4940
        %7097 = vmatprep.subr.bf16.mxu0 %v4943
        %7098 = vmatpush1.bf16.msra.mxu0 %v4942
        %7099 = vmatprep.subr.bf16.mxu0 %v4945
        %7100 = vmatpush1.bf16.msra.mxu0 %v4944
        %7101 = vmatprep.subr.bf16.mxu0 %v4947
        %7102 = vmatpush1.bf16.msra.mxu0 %v4946
        %7103 = vmatprep.subr.bf16.mxu0 %v4949
        %7104 = vmatpush1.bf16.msra.mxu0 %v4948
        %7105 = vmatprep.subr.bf16.mxu0 %v4951
        %7106 = vmatpush1.bf16.msra.mxu0 %v4950
        %7107 = vmatprep.subr.bf16.mxu0 %v4953
        %7108 = vmatpush1.bf16.msra.mxu0 %v4952
        %7109 = vmatprep.subr.bf16.mxu0 %v4955
        %7110 = vmatpush1.bf16.msra.mxu0 %v4954
        %7111 = vmatprep.subr.bf16.mxu0 %v4957
        %7112 = vmatpush1.bf16.msra.mxu0 %v4956
        %7113 = vmatprep.mubr.bf16.mxu0 %v315
        %7114 = vmatmul.mubr.bf16.gmra.mrb[0].mxu0 %v314
        %v7115 = vpop.f32.mrb[0].mxu0
        %v7116 = vadd.f32 %v7075, %v7115
        %v7117 = vpop.f32.mrb[0].mxu0
        %v7118 = vadd.f32 %v7077, %v7117
        %v7119 = vpop.f32.mrb[0].mxu0
        %v7120 = vpop.f32.mrb[0].mxu0
        %7121 = vdwg.mxu0
        %7122 = vmatprep.subr.bf16.mxu0 %v4959
        %7123 = vmatpush1.bf16.msra.mxu0 %v4958
        %7124 = vmatprep.subr.bf16.mxu0 %v4961
        %7125 = vmatpush1.bf16.msra.mxu0 %v4960
        %7126 = vmatprep.subr.bf16.mxu0 %v4963
        %7127 = vmatpush1.bf16.msra.mxu0 %v4962
        %7128 = vmatprep.subr.bf16.mxu0 %v4965
        %7129 = vmatpush1.bf16.msra.mxu0 %v4964
        %7130 = vmatprep.subr.bf16.mxu0 %v4967
        %7131 = vmatpush1.bf16.msra.mxu0 %v4966
        %7132 = vmatprep.subr.bf16.mxu0 %v4969
        %7133 = vmatpush1.bf16.msra.mxu0 %v4968
        %7134 = vmatprep.subr.bf16.mxu0 %v4971
        %7135 = vmatpush1.bf16.msra.mxu0 %v4970
        %7136 = vmatprep.subr.bf16.mxu0 %v4973
        %7137 = vmatpush1.bf16.msra.mxu0 %v4972
        %7138 = vmatprep.subr.bf16.mxu0 %v4975
        %7139 = vmatpush1.bf16.msra.mxu0 %v4974
        %7140 = vmatprep.subr.bf16.mxu0 %v4977
        %7141 = vmatpush1.bf16.msra.mxu0 %v4976
        %7142 = vmatprep.subr.bf16.mxu0 %v4979
        %7143 = vmatpush1.bf16.msra.mxu0 %v4978
        %7144 = vmatprep.subr.bf16.mxu0 %v4981
        %7145 = vmatpush1.bf16.msra.mxu0 %v4980
        %7146 = vmatprep.subr.bf16.mxu0 %v4983
        %7147 = vmatpush1.bf16.msra.mxu0 %v4982
        %7148 = vmatprep.subr.bf16.mxu0 %v4985
        %7149 = vmatpush1.bf16.msra.mxu0 %v4984
        %7150 = vmatprep.subr.bf16.mxu0 %v4987
        %7151 = vmatpush1.bf16.msra.mxu0 %v4986
        %7152 = vmatprep.subr.bf16.mxu0 %v4989
        %7153 = vmatpush1.bf16.msra.mxu0 %v4988
        %7154 = vmatprep.mubr.bf16.mxu0 %v317
        %7155 = vmatmul.mubr.bf16.gmra.mrb[0].mxu0 %v316
        %v7156 = vpop.f32.mrb[0].mxu0
        %v7157 = vadd.f32 %v7116, %v7156
        %v7158 = vpop.f32.mrb[0].mxu0
        %v7159 = vadd.f32 %v7118, %v7158
        %v7160 = vpop.f32.mrb[0].mxu0
        %v7161 = vpop.f32.mrb[0].mxu0
        %7162 = vdwg.mxu0
        %7163 = vmatprep.subr.bf16.mxu0 %v4991
        %7164 = vmatpush1.bf16.msra.mxu0 %v4990
        %7165 = vmatprep.subr.bf16.mxu0 %v4993
        %7166 = vmatpush1.bf16.msra.mxu0 %v4992
        %7167 = vmatprep.subr.bf16.mxu0 %v4995
        %7168 = vmatpush1.bf16.msra.mxu0 %v4994
        %7169 = vmatprep.subr.bf16.mxu0 %v4997
        %7170 = vmatpush1.bf16.msra.mxu0 %v4996
        %7171 = vmatprep.subr.bf16.mxu0 %v4999
        %7172 = vmatpush1.bf16.msra.mxu0 %v4998
        %7173 = vmatprep.subr.bf16.mxu0 %v5001
        %7174 = vmatpush1.bf16.msra.mxu0 %v5000
        %7175 = vmatprep.subr.bf16.mxu0 %v5003
        %7176 = vmatpush1.bf16.msra.mxu0 %v5002
        %7177 = vmatprep.subr.bf16.mxu0 %v5005
        %7178 = vmatpush1.bf16.msra.mxu0 %v5004
        %7179 = vmatprep.subr.bf16.mxu0 %v5007
        %7180 = vmatpush1.bf16.msra.mxu0 %v5006
        %7181 = vmatprep.subr.bf16.mxu0 %v5009
        %7182 = vmatpush1.bf16.msra.mxu0 %v5008
        %7183 = vmatprep.subr.bf16.mxu0 %v5011
        %7184 = vmatpush1.bf16.msra.mxu0 %v5010
        %7185 = vmatprep.subr.bf16.mxu0 %v5013
        %7186 = vmatpush1.bf16.msra.mxu0 %v5012
        %7187 = vmatprep.subr.bf16.mxu0 %v5015
        %7188 = vmatpush1.bf16.msra.mxu0 %v5014
        %7189 = vmatprep.subr.bf16.mxu0 %v5017
        %7190 = vmatpush1.bf16.msra.mxu0 %v5016
        %7191 = vmatprep.subr.bf16.mxu0 %v5019
        %7192 = vmatpush1.bf16.msra.mxu0 %v5018
        %7193 = vmatprep.subr.bf16.mxu0 %v5021
        %7194 = vmatpush1.bf16.msra.mxu0 %v5020
        %7195 = vmatprep.mubr.bf16.mxu0 %v319
        %7196 = vmatmul.mubr.bf16.gmra.mrb[0].mxu0 %v318
        %v7197 = vpop.f32.mrb[0].mxu0
        %v7198 = vadd.f32 %v7157, %v7197
        %v7199 = vpop.f32.mrb[0].mxu0
        %v7200 = vadd.f32 %v7159, %v7199
        %v7201 = vpop.f32.mrb[0].mxu0
        %v7202 = vpop.f32.mrb[0].mxu0
        %7203 = vdwg.mxu0
        %7204 = vmatprep.subr.bf16.mxu0 %v5023
        %7205 = vmatpush1.bf16.msra.mxu0 %v5022
        %7206 = vmatprep.subr.bf16.mxu0 %v5025
        %7207 = vmatpush1.bf16.msra.mxu0 %v5024
        %7208 = vmatprep.subr.bf16.mxu0 %v5027
        %7209 = vmatpush1.bf16.msra.mxu0 %v5026
        %7210 = vmatprep.subr.bf16.mxu0 %v5029
        %7211 = vmatpush1.bf16.msra.mxu0 %v5028
        %7212 = vmatprep.subr.bf16.mxu0 %v5031
        %7213 = vmatpush1.bf16.msra.mxu0 %v5030
        %7214 = vmatprep.subr.bf16.mxu0 %v5033
        %7215 = vmatpush1.bf16.msra.mxu0 %v5032
        %7216 = vmatprep.subr.bf16.mxu0 %v5035
        %7217 = vmatpush1.bf16.msra.mxu0 %v5034
        %7218 = vmatprep.subr.bf16.mxu0 %v5037
        %7219 = vmatpush1.bf16.msra.mxu0 %v5036
        %7220 = vmatprep.subr.bf16.mxu0 %v5039
        %7221 = vmatpush1.bf16.msra.mxu0 %v5038
        %7222 = vmatprep.subr.bf16.mxu0 %v5041
        %7223 = vmatpush1.bf16.msra.mxu0 %v5040
        %7224 = vmatprep.subr.bf16.mxu0 %v5043
        %7225 = vmatpush1.bf16.msra.mxu0 %v5042
        %7226 = vmatprep.subr.bf16.mxu0 %v5045
        %7227 = vmatpush1.bf16.msra.mxu0 %v5044
        %7228 = vmatprep.subr.bf16.mxu0 %v5047
        %7229 = vmatpush1.bf16.msra.mxu0 %v5046
        %7230 = vmatprep.subr.bf16.mxu0 %v5049
        %7231 = vmatpush1.bf16.msra.mxu0 %v5048
        %7232 = vmatprep.subr.bf16.mxu0 %v5051
        %7233 = vmatpush1.bf16.msra.mxu0 %v5050
        %7234 = vmatprep.subr.bf16.mxu0 %v5053
        %7235 = vmatpush1.bf16.msra.mxu0 %v5052
        %7236 = vmatprep.mubr.bf16.mxu0 %v321
        %7237 = vmatmul.mubr.bf16.gmra.mrb[0].mxu0 %v320
        %v7238 = vpop.f32.mrb[0].mxu0
        %v7239 = vadd.f32 %v7198, %v7238
        %v7240 = vpop.f32.mrb[0].mxu0
        %v7241 = vadd.f32 %v7200, %v7240
        %v7242 = vpop.f32.mrb[0].mxu0
        %v7243 = vpop.f32.mrb[0].mxu0
        %7244 = vdwg.mxu0
        %7245 = vmatprep.subr.bf16.mxu0 %v5055
        %7246 = vmatpush1.bf16.msra.mxu0 %v5054
        %7247 = vmatprep.subr.bf16.mxu0 %v5057
        %7248 = vmatpush1.bf16.msra.mxu0 %v5056
        %7249 = vmatprep.subr.bf16.mxu0 %v5059
        %7250 = vmatpush1.bf16.msra.mxu0 %v5058
        %7251 = vmatprep.subr.bf16.mxu0 %v5061
        %7252 = vmatpush1.bf16.msra.mxu0 %v5060
        %7253 = vmatprep.subr.bf16.mxu0 %v5063
        %7254 = vmatpush1.bf16.msra.mxu0 %v5062
        %7255 = vmatprep.subr.bf16.mxu0 %v5065
        %7256 = vmatpush1.bf16.msra.mxu0 %v5064
        %7257 = vmatprep.subr.bf16.mxu0 %v5067
        %7258 = vmatpush1.bf16.msra.mxu0 %v5066
        %7259 = vmatprep.subr.bf16.mxu0 %v5069
        %7260 = vmatpush1.bf16.msra.mxu0 %v5068
        %7261 = vmatprep.subr.bf16.mxu0 %v5071
        %7262 = vmatpush1.bf16.msra.mxu0 %v5070
        %7263 = vmatprep.subr.bf16.mxu0 %v5073
        %7264 = vmatpush1.bf16.msra.mxu0 %v5072
        %7265 = vmatprep.subr.bf16.mxu0 %v5075
        %7266 = vmatpush1.bf16.msra.mxu0 %v5074
        %7267 = vmatprep.subr.bf16.mxu0 %v5077
        %7268 = vmatpush1.bf16.msra.mxu0 %v5076
        %7269 = vmatprep.subr.bf16.mxu0 %v5079
        %7270 = vmatpush1.bf16.msra.mxu0 %v5078
        %7271 = vmatprep.subr.bf16.mxu0 %v5081
        %7272 = vmatpush1.bf16.msra.mxu0 %v5080
        %7273 = vmatprep.subr.bf16.mxu0 %v5083
        %7274 = vmatpush1.bf16.msra.mxu0 %v5082
        %7275 = vmatprep.subr.bf16.mxu0 %v5085
        %7276 = vmatpush1.bf16.msra.mxu0 %v5084
        %7277 = vmatprep.mubr.bf16.mxu0 %v323
        %7278 = vmatmul.mubr.bf16.gmra.mrb[0].mxu0 %v322
        %v7279 = vpop.f32.mrb[0].mxu0
        %v7280 = vadd.f32 %v7239, %v7279
        %v7281 = vpop.f32.mrb[0].mxu0
        %v7282 = vadd.f32 %v7241, %v7281
        %v7283 = vpop.f32.mrb[0].mxu0
        %v7284 = vpop.f32.mrb[0].mxu0
        %7285 = vdwg.mxu0
        %7286 = vmatprep.subr.bf16.mxu0 %v5087
        %7287 = vmatpush1.bf16.msra.mxu0 %v5086
        %7288 = vmatprep.subr.bf16.mxu0 %v5089
        %7289 = vmatpush1.bf16.msra.mxu0 %v5088
        %7290 = vmatprep.subr.bf16.mxu0 %v5091
        %7291 = vmatpush1.bf16.msra.mxu0 %v5090
        %7292 = vmatprep.subr.bf16.mxu0 %v5093
        %7293 = vmatpush1.bf16.msra.mxu0 %v5092
        %7294 = vmatprep.subr.bf16.mxu0 %v5095
        %7295 = vmatpush1.bf16.msra.mxu0 %v5094
        %7296 = vmatprep.subr.bf16.mxu0 %v5097
        %7297 = vmatpush1.bf16.msra.mxu0 %v5096
        %7298 = vmatprep.subr.bf16.mxu0 %v5099
        %7299 = vmatpush1.bf16.msra.mxu0 %v5098
        %7300 = vmatprep.subr.bf16.mxu0 %v5101
        %7301 = vmatpush1.bf16.msra.mxu0 %v5100
        %7302 = vmatprep.subr.bf16.mxu0 %v5103
        %7303 = vmatpush1.bf16.msra.mxu0 %v5102
        %7304 = vmatprep.subr.bf16.mxu0 %v5105
        %7305 = vmatpush1.bf16.msra.mxu0 %v5104
        %7306 = vmatprep.subr.bf16.mxu0 %v5107
        %7307 = vmatpush1.bf16.msra.mxu0 %v5106
        %7308 = vmatprep.subr.bf16.mxu0 %v5109
        %7309 = vmatpush1.bf16.msra.mxu0 %v5108
        %7310 = vmatprep.subr.bf16.mxu0 %v5111
        %7311 = vmatpush1.bf16.msra.mxu0 %v5110
        %7312 = vmatprep.subr.bf16.mxu0 %v5113
        %7313 = vmatpush1.bf16.msra.mxu0 %v5112
        %7314 = vmatprep.subr.bf16.mxu0 %v5115
        %7315 = vmatpush1.bf16.msra.mxu0 %v5114
        %7316 = vmatprep.subr.bf16.mxu0 %v5117
        %7317 = vmatpush1.bf16.msra.mxu0 %v5116
        %7318 = vmatprep.mubr.bf16.mxu0 %v325
        %7319 = vmatmul.mubr.bf16.gmra.mrb[0].mxu0 %v324
        %v7320 = vpop.f32.mrb[0].mxu0
        %v7321 = vadd.f32 %v7280, %v7320
        %v7322 = vpop.f32.mrb[0].mxu0
        %v7323 = vadd.f32 %v7282, %v7322
        %v7324 = vpop.f32.mrb[0].mxu0
        %v7325 = vpop.f32.mrb[0].mxu0
        %7326 = vdwg.mxu0
        %7327 = vmatprep.subr.bf16.mxu0 %v5119
        %7328 = vmatpush1.bf16.msra.mxu0 %v5118
        %7329 = vmatprep.subr.bf16.mxu0 %v5121
        %7330 = vmatpush1.bf16.msra.mxu0 %v5120
        %7331 = vmatprep.subr.bf16.mxu0 %v5123
        %7332 = vmatpush1.bf16.msra.mxu0 %v5122
        %7333 = vmatprep.subr.bf16.mxu0 %v5125
        %7334 = vmatpush1.bf16.msra.mxu0 %v5124
        %7335 = vmatprep.subr.bf16.mxu0 %v5127
        %7336 = vmatpush1.bf16.msra.mxu0 %v5126
        %7337 = vmatprep.subr.bf16.mxu0 %v5129
        %7338 = vmatpush1.bf16.msra.mxu0 %v5128
        %7339 = vmatprep.subr.bf16.mxu0 %v5131
        %7340 = vmatpush1.bf16.msra.mxu0 %v5130
        %7341 = vmatprep.subr.bf16.mxu0 %v5133
        %7342 = vmatpush1.bf16.msra.mxu0 %v5132
        %7343 = vmatprep.subr.bf16.mxu0 %v5135
        %7344 = vmatpush1.bf16.msra.mxu0 %v5134
        %7345 = vmatprep.subr.bf16.mxu0 %v5137
        %7346 = vmatpush1.bf16.msra.mxu0 %v5136
        %7347 = vmatprep.subr.bf16.mxu0 %v5139
        %7348 = vmatpush1.bf16.msra.mxu0 %v5138
        %7349 = vmatprep.subr.bf16.mxu0 %v5141
        %7350 = vmatpush1.bf16.msra.mxu0 %v5140
        %7351 = vmatprep.subr.bf16.mxu0 %v5143
        %7352 = vmatpush1.bf16.msra.mxu0 %v5142
        %7353 = vmatprep.subr.bf16.mxu0 %v5145
        %7354 = vmatpush1.bf16.msra.mxu0 %v5144
        %7355 = vmatprep.subr.bf16.mxu0 %v5147
        %7356 = vmatpush1.bf16.msra.mxu0 %v5146
        %7357 = vmatprep.subr.bf16.mxu0 %v5149
        %7358 = vmatpush1.bf16.msra.mxu0 %v5148
        %7359 = vmatprep.mubr.bf16.mxu0 %v327
        %7360 = vmatmul.mubr.bf16.gmra.mrb[0].mxu0 %v326
        %v7361 = vpop.f32.mrb[0].mxu0
        %v7362 = vadd.f32 %v7321, %v7361
        %v7363 = vpop.f32.mrb[0].mxu0
        %v7364 = vadd.f32 %v7323, %v7363
        %v7365 = vpop.f32.mrb[0].mxu0
        %v7366 = vpop.f32.mrb[0].mxu0
        %7367 = vdwg.mxu0
        %7368 = vmatprep.subr.bf16.mxu0 %v5151
        %7369 = vmatpush1.bf16.msra.mxu0 %v5150
        %7370 = vmatprep.subr.bf16.mxu0 %v5153
        %7371 = vmatpush1.bf16.msra.mxu0 %v5152
        %7372 = vmatprep.subr.bf16.mxu0 %v5155
        %7373 = vmatpush1.bf16.msra.mxu0 %v5154
        %7374 = vmatprep.subr.bf16.mxu0 %v5157
        %7375 = vmatpush1.bf16.msra.mxu0 %v5156
        %7376 = vmatprep.subr.bf16.mxu0 %v5159
        %7377 = vmatpush1.bf16.msra.mxu0 %v5158
        %7378 = vmatprep.subr.bf16.mxu0 %v5161
        %7379 = vmatpush1.bf16.msra.mxu0 %v5160
        %7380 = vmatprep.subr.bf16.mxu0 %v5163
        %7381 = vmatpush1.bf16.msra.mxu0 %v5162
        %7382 = vmatprep.subr.bf16.mxu0 %v5165
        %7383 = vmatpush1.bf16.msra.mxu0 %v5164
        %7384 = vmatprep.subr.bf16.mxu0 %v5167
        %7385 = vmatpush1.bf16.msra.mxu0 %v5166
        %7386 = vmatprep.subr.bf16.mxu0 %v5169
        %7387 = vmatpush1.bf16.msra.mxu0 %v5168
        %7388 = vmatprep.subr.bf16.mxu0 %v5171
        %7389 = vmatpush1.bf16.msra.mxu0 %v5170
        %7390 = vmatprep.subr.bf16.mxu0 %v5173
        %7391 = vmatpush1.bf16.msra.mxu0 %v5172
        %7392 = vmatprep.subr.bf16.mxu0 %v5175
        %7393 = vmatpush1.bf16.msra.mxu0 %v5174
        %7394 = vmatprep.subr.bf16.mxu0 %v5177
        %7395 = vmatpush1.bf16.msra.mxu0 %v5176
        %7396 = vmatprep.subr.bf16.mxu0 %v5179
        %7397 = vmatpush1.bf16.msra.mxu0 %v5178
        %7398 = vmatprep.subr.bf16.mxu0 %v5181
        %7399 = vmatpush1.bf16.msra.mxu0 %v5180
        %7400 = vmatprep.mubr.bf16.mxu0 %v329
        %7401 = vmatmul.mubr.bf16.gmra.mrb[0].mxu0 %v328
        %v7402 = vpop.f32.mrb[0].mxu0
        %v7403 = vadd.f32 %v7362, %v7402
        %v7404 = vpop.f32.mrb[0].mxu0
        %v7405 = vadd.f32 %v7364, %v7404
        %v7406 = vpop.f32.mrb[0].mxu0
        %v7407 = vpop.f32.mrb[0].mxu0
        %7408 = vdwg.mxu0
        %7409 = vmatprep.subr.bf16.mxu0 %v5183
        %7410 = vmatpush1.bf16.msra.mxu0 %v5182
        %7411 = vmatprep.subr.bf16.mxu0 %v5185
        %7412 = vmatpush1.bf16.msra.mxu0 %v5184
        %7413 = vmatprep.subr.bf16.mxu0 %v5187
        %7414 = vmatpush1.bf16.msra.mxu0 %v5186
        %7415 = vmatprep.subr.bf16.mxu0 %v5189
        %7416 = vmatpush1.bf16.msra.mxu0 %v5188
        %7417 = vmatprep.subr.bf16.mxu0 %v5191
        %7418 = vmatpush1.bf16.msra.mxu0 %v5190
        %7419 = vmatprep.subr.bf16.mxu0 %v5193
        %7420 = vmatpush1.bf16.msra.mxu0 %v5192
        %7421 = vmatprep.subr.bf16.mxu0 %v5195
        %7422 = vmatpush1.bf16.msra.mxu0 %v5194
        %7423 = vmatprep.subr.bf16.mxu0 %v5197
        %7424 = vmatpush1.bf16.msra.mxu0 %v5196
        %7425 = vmatprep.subr.bf16.mxu0 %v5199
        %7426 = vmatpush1.bf16.msra.mxu0 %v5198
        %7427 = vmatprep.subr.bf16.mxu0 %v5201
        %7428 = vmatpush1.bf16.msra.mxu0 %v5200
        %7429 = vmatprep.subr.bf16.mxu0 %v5203
        %7430 = vmatpush1.bf16.msra.mxu0 %v5202
        %7431 = vmatprep.subr.bf16.mxu0 %v5205
        %7432 = vmatpush1.bf16.msra.mxu0 %v5204
        %7433 = vmatprep.subr.bf16.mxu0 %v5207
        %7434 = vmatpush1.bf16.msra.mxu0 %v5206
        %7435 = vmatprep.subr.bf16.mxu0 %v5209
        %7436 = vmatpush1.bf16.msra.mxu0 %v5208
        %7437 = vmatprep.subr.bf16.mxu0 %v5211
        %7438 = vmatpush1.bf16.msra.mxu0 %v5210
        %7439 = vmatprep.subr.bf16.mxu0 %v5213
        %7440 = vmatpush1.bf16.msra.mxu0 %v5212
        %7441 = vmatprep.mubr.bf16.mxu0 %v331
        %7442 = vmatmul.mubr.bf16.gmra.mrb[0].mxu0 %v330
        %v7443 = vpop.f32.mrb[0].mxu0
        %v7444 = vadd.f32 %v7403, %v7443
        %v7445 = vpop.f32.mrb[0].mxu0
        %v7446 = vadd.f32 %v7405, %v7445
        %v7447 = vpop.f32.mrb[0].mxu0
        %v7448 = vpop.f32.mrb[0].mxu0
        %7449 = vdwg.mxu0
        %7450 = vmatprep.subr.bf16.mxu0 %v5215
        %7451 = vmatpush1.bf16.msra.mxu0 %v5214
        %7452 = vmatprep.subr.bf16.mxu0 %v5217
        %7453 = vmatpush1.bf16.msra.mxu0 %v5216
        %7454 = vmatprep.subr.bf16.mxu0 %v5219
        %7455 = vmatpush1.bf16.msra.mxu0 %v5218
        %7456 = vmatprep.subr.bf16.mxu0 %v5221
        %7457 = vmatpush1.bf16.msra.mxu0 %v5220
        %7458 = vmatprep.subr.bf16.mxu0 %v5223
        %7459 = vmatpush1.bf16.msra.mxu0 %v5222
        %7460 = vmatprep.subr.bf16.mxu0 %v5225
        %7461 = vmatpush1.bf16.msra.mxu0 %v5224
        %7462 = vmatprep.subr.bf16.mxu0 %v5227
        %7463 = vmatpush1.bf16.msra.mxu0 %v5226
        %7464 = vmatprep.subr.bf16.mxu0 %v5229
        %7465 = vmatpush1.bf16.msra.mxu0 %v5228
        %7466 = vmatprep.subr.bf16.mxu0 %v5231
        %7467 = vmatpush1.bf16.msra.mxu0 %v5230
        %7468 = vmatprep.subr.bf16.mxu0 %v5233
        %7469 = vmatpush1.bf16.msra.mxu0 %v5232
        %7470 = vmatprep.subr.bf16.mxu0 %v5235
        %7471 = vmatpush1.bf16.msra.mxu0 %v5234
        %7472 = vmatprep.subr.bf16.mxu0 %v5237
        %7473 = vmatpush1.bf16.msra.mxu0 %v5236
        %7474 = vmatprep.subr.bf16.mxu0 %v5239
        %7475 = vmatpush1.bf16.msra.mxu0 %v5238
        %7476 = vmatprep.subr.bf16.mxu0 %v5241
        %7477 = vmatpush1.bf16.msra.mxu0 %v5240
        %7478 = vmatprep.subr.bf16.mxu0 %v5243
        %7479 = vmatpush1.bf16.msra.mxu0 %v5242
        %7480 = vmatprep.subr.bf16.mxu0 %v5245
        %7481 = vmatpush1.bf16.msra.mxu0 %v5244
        %7482 = vmatprep.mubr.bf16.mxu0 %v333
        %7483 = vmatmul.mubr.bf16.gmra.mrb[0].mxu0 %v332
        %v7484 = vpop.f32.mrb[0].mxu0
        %v7485 = vadd.f32 %v7444, %v7484
        %v7486 = vpop.f32.mrb[0].mxu0
        %v7487 = vadd.f32 %v7446, %v7486
        %v7488 = vpop.f32.mrb[0].mxu0
        %v7489 = vpop.f32.mrb[0].mxu0
        %7490 = vdwg.mxu0
        %7491 = vmatprep.subr.bf16.mxu0 %v5247
        %7492 = vmatpush1.bf16.msra.mxu0 %v5246
        %7493 = vmatprep.subr.bf16.mxu0 %v5249
        %7494 = vmatpush1.bf16.msra.mxu0 %v5248
        %7495 = vmatprep.subr.bf16.mxu0 %v5251
        %7496 = vmatpush1.bf16.msra.mxu0 %v5250
        %7497 = vmatprep.subr.bf16.mxu0 %v5253
        %7498 = vmatpush1.bf16.msra.mxu0 %v5252
        %7499 = vmatprep.subr.bf16.mxu0 %v5255
        %7500 = vmatpush1.bf16.msra.mxu0 %v5254
        %7501 = vmatprep.subr.bf16.mxu0 %v5257
        %7502 = vmatpush1.bf16.msra.mxu0 %v5256
        %7503 = vmatprep.subr.bf16.mxu0 %v5259
        %7504 = vmatpush1.bf16.msra.mxu0 %v5258
        %7505 = vmatprep.subr.bf16.mxu0 %v5261
        %7506 = vmatpush1.bf16.msra.mxu0 %v5260
        %7507 = vmatprep.subr.bf16.mxu0 %v5263
        %7508 = vmatpush1.bf16.msra.mxu0 %v5262
        %7509 = vmatprep.subr.bf16.mxu0 %v5265
        %7510 = vmatpush1.bf16.msra.mxu0 %v5264
        %7511 = vmatprep.subr.bf16.mxu0 %v5267
        %7512 = vmatpush1.bf16.msra.mxu0 %v5266
        %7513 = vmatprep.subr.bf16.mxu0 %v5269
        %7514 = vmatpush1.bf16.msra.mxu0 %v5268
        %7515 = vmatprep.subr.bf16.mxu0 %v5271
        %7516 = vmatpush1.bf16.msra.mxu0 %v5270
        %7517 = vmatprep.subr.bf16.mxu0 %v5273
        %7518 = vmatpush1.bf16.msra.mxu0 %v5272
        %7519 = vmatprep.subr.bf16.mxu0 %v5275
        %7520 = vmatpush1.bf16.msra.mxu0 %v5274
        %7521 = vmatprep.subr.bf16.mxu0 %v5277
        %7522 = vmatpush1.bf16.msra.mxu0 %v5276
        %7523 = vmatprep.mubr.bf16.mxu0 %v335
        %7524 = vmatmul.mubr.bf16.gmra.mrb[0].mxu0 %v334
        %v7525 = vpop.f32.mrb[0].mxu0
        %v7526 = vadd.f32 %v7485, %v7525
        %v7527 = vpop.f32.mrb[0].mxu0
        %v7528 = vadd.f32 %v7487, %v7527
        %v7529 = vpop.f32.mrb[0].mxu0
        %v7530 = vpop.f32.mrb[0].mxu0
        %7531 = vdwg.mxu0
        %7532 = vmatprep.subr.bf16.mxu0 %v5279
        %7533 = vmatpush1.bf16.msra.mxu0 %v5278
        %7534 = vmatprep.subr.bf16.mxu0 %v5281
        %7535 = vmatpush1.bf16.msra.mxu0 %v5280
        %7536 = vmatprep.subr.bf16.mxu0 %v5283
        %7537 = vmatpush1.bf16.msra.mxu0 %v5282
        %7538 = vmatprep.subr.bf16.mxu0 %v5285
        %7539 = vmatpush1.bf16.msra.mxu0 %v5284
        %7540 = vmatprep.subr.bf16.mxu0 %v5287
        %7541 = vmatpush1.bf16.msra.mxu0 %v5286
        %7542 = vmatprep.subr.bf16.mxu0 %v5289
        %7543 = vmatpush1.bf16.msra.mxu0 %v5288
        %7544 = vmatprep.subr.bf16.mxu0 %v5291
        %7545 = vmatpush1.bf16.msra.mxu0 %v5290
        %7546 = vmatprep.subr.bf16.mxu0 %v5293
        %7547 = vmatpush1.bf16.msra.mxu0 %v5292
        %7548 = vmatprep.subr.bf16.mxu0 %v5295
        %7549 = vmatpush1.bf16.msra.mxu0 %v5294
        %7550 = vmatprep.subr.bf16.mxu0 %v5297
        %7551 = vmatpush1.bf16.msra.mxu0 %v5296
        %7552 = vmatprep.subr.bf16.mxu0 %v5299
        %7553 = vmatpush1.bf16.msra.mxu0 %v5298
        %7554 = vmatprep.subr.bf16.mxu0 %v5301
        %7555 = vmatpush1.bf16.msra.mxu0 %v5300
        %7556 = vmatprep.subr.bf16.mxu0 %v5303
        %7557 = vmatpush1.bf16.msra.mxu0 %v5302
        %7558 = vmatprep.subr.bf16.mxu0 %v5305
        %7559 = vmatpush1.bf16.msra.mxu0 %v5304
        %7560 = vmatprep.subr.bf16.mxu0 %v5307
        %7561 = vmatpush1.bf16.msra.mxu0 %v5306
        %7562 = vmatprep.subr.bf16.mxu0 %v5309
        %7563 = vmatpush1.bf16.msra.mxu0 %v5308
        %7564 = vmatprep.mubr.bf16.mxu0 %v337
        %7565 = vmatmul.mubr.bf16.gmra.mrb[0].mxu0 %v336
        %v7566 = vpop.f32.mrb[0].mxu0
        %v7567 = vadd.f32 %v7526, %v7566
        %v7568 = vpop.f32.mrb[0].mxu0
        %v7569 = vadd.f32 %v7528, %v7568
        %v7570 = vpop.f32.mrb[0].mxu0
        %v7571 = vpop.f32.mrb[0].mxu0
        %7572 = vdwg.mxu0
        %7573 = vst [vmem:[%s213] sm:$0xff] %v7567
        %7574 = vst [vmem:[%s213 + $0x8] sm:$0xff] %v7569
        %s7575 = sand.u32 %s97, 1
        %s7576 = scalar_lea.sflag [#allocation4], %s7575
        %s7577 = sand.u32 %s97, 1
        %s7578 = smul.addr %s7577, 16
        %s7579 = scalar_lea.vmem [#allocation8], %s7578
        // Predicated region
        $region45: #{tpu_custom_call.1} parent=31 // pred_check
          %p7580 = pneg %p107
        $region46: #{tpu_custom_call.1} parent=31 // pred_check_branch
          %7582 = sbr.rel (%p7580) target = $region48
        $region47: #{tpu_custom_call.1} parent=31 // pred_region
          %s7584 = ssub.s32 256, 256
          %7585 = vsyncadd %s7576, %s7584
          %s7586 = smul.addr %s21, 2
          %s7587 = smul.addr %s7586, 128
          %s7588 = scalar_lea.hbm %s3, %s7587
          %s7590 = sshll.u32 %s7579, 4
          %s7591 = int_to_ptr.vmem [resolvable:$true] %s7590
          %7593 = dma.vmem_to_hbm [thread:$0]  %s7591, 256, %s7588, %s7576
        $region48: #{tpu_custom_call.1} parent=31 // pred_fallthru
          _
      $region32: #{tpu_custom_call.1} parent=5 // pred_fallthru
        _
      %p7594 = scmp.le.s32.totalorder 2, %s16
      // Predicated region
      $region49: #{tpu_custom_call.1} parent=5 // pred_check
        %p7595 = pneg %p7594
      $region50: #{tpu_custom_call.1} parent=5 // pred_check_branch
        %7597 = sbr.rel (%p7595) target = $region52
      $region51: #{tpu_custom_call.1} parent=5 // pred_region
        %s7598 = ssub.s32 %s16, 2
        // Predicated region
        $region53: #{tpu_custom_call.1} parent=51 // pred_check
          %p7599 = pneg %p113
        $region54: #{tpu_custom_call.1} parent=51 // pred_check_branch
          %7601 = sbr.rel (%p7599) target = $region56
        $region55: #{tpu_custom_call.1} parent=51 // pred_region
          %s7602 = sand.u32 %s98, 1
          %s7603 = scalar_lea.sflag [#allocation4], %s7602
          %s7604 = sand.u32 %s98, 1
          %s7605 = smul.addr %s7604, 16
          %s7606 = scalar_lea.vmem [#allocation8], %s7605
          %7607 = dma.done %s7603, 256
        $region56: #{tpu_custom_call.1} parent=51 // pred_fallthru
          _
      $region52: #{tpu_custom_call.1} parent=5 // pred_fallthru
        _
    $region6: #{tpu_custom_call.1} parent=1 // loop_footer
      %s20 = sadd.s32 1, %s16
    $region7: #{tpu_custom_call.1} parent=1 // loop_footer_branch
      %15 = sbr.rel target = $region3
    $region8: #{tpu_custom_call.1} parent=1 // loop_exit
      _
    %7608 = vsyncpa [#allocation3], 1
    %s7609 = scalar_lea.sflag [#allocation3], 1
    %7610 = vsyncpa %s7609, 1
    %7611 = vsyncpa [#allocation6], 1
    %7612 = vsyncpa [#allocation4], 1
    %s7613 = scalar_lea.sflag [#allocation4], 1
    %7614 = vsyncpa %s7613, 1

</llo_original>
